<compile_context>
chip_gen: v6e
topology: v6e:2x2x1
jax: 0.10.0
libtpu: 0.0.40
codegen_flags: <defaults>
</compile_context>

<pallas_src>
import jax
import jax.numpy as jnp
from jax.experimental import pallas as pl
from jax.experimental.pallas import tpu as pltpu

NEG_SLOPE = 0.01  # torch.nn.LeakyReLU default
LN_EPS = 1e-5     # torch.nn.LayerNorm default

# ---------------- small config ----------------
B = 2            # batch
L = 8            # number of atoms
N = 4            # number of fragments (scaf nodes)
NODE_IN = 7 + 1  # l_label_node_hidden + 1 (pad_mask channel)
EDGE_IN = 7 + 1  # l_label_edge_hidden + 1
AA_NODE_H = 32
AA_EDGE_H = 16
NODE_H = 32
EDGE_H = 16
RNN_H = 32
NOISE_H = 16
N_SCAF = 10
EDGE_VOCAB = 8 * 8 + 2  # ppl_force_max_atom_with_ring**2 + 2
HEAD_W = RNN_H + 3 * NOISE_H  # packed head slab: [pooling | mean | logvar | noise]

_VMEM = pl.BlockSpec(memory_space=pltpu.MemorySpace.VMEM)
_SMEM = pl.BlockSpec(memory_space=pltpu.MemorySpace.SMEM)


# ---------------------------------------------------------------------------
# in-kernel helpers
# ---------------------------------------------------------------------------
def _leaky(x):
    return jnp.where(x > 0, x, NEG_SLOPE * x)


def _ln(x, w, b):
    mu = jnp.mean(x, axis=-1, keepdims=True)
    var = jnp.mean((x - mu) ** 2, axis=-1, keepdims=True)
    return (x - mu) * jax.lax.rsqrt(var + LN_EPS) * w + b


def _dot(a, b):
    return jnp.dot(a, b, preferred_element_type=jnp.float32)


def _gru_step(x, h, wih, whh, bih, bhh):
    # torch.nn.GRUCell semantics; gate layout [r | z | n].
    gi = _dot(x, wih) + bih
    gh = _dot(h, whh) + bhh
    H = RNN_H
    r = jax.nn.sigmoid(gi[:, :H] + gh[:, :H])
    z = jax.nn.sigmoid(gi[:, H:2 * H] + gh[:, H:2 * H])
    n = jnp.tanh(gi[:, 2 * H:] + r * gh[:, 2 * H:])
    return (1.0 - z) * n + z * h


# ---------------------------------------------------------------------------
# single fused kernel — everything stays in VMEM
# ---------------------------------------------------------------------------
def _scaf_encoder_kernel(*refs):
    (x_in_ref, e_in_ref, pn_ref, q_ref, pbfs_ref, qbfs_ref, scaf_oh_ref,
     edge_oh_ref, eps_ref, pmask_ref,
     l_node_w_ref, l_node_b_ref, l_edge_w_ref, l_edge_b_ref,
     xpool_w_ref, xpool_b_ref, epool_w_ref, epool_b_ref,
     x_emb_ref, e_emb_ref,
     gru_wih_ref, gru_whh_ref, gru_bih_ref, gru_bhh_ref,
     enc_start_ref, enc_end_ref,
     ln1w_ref, ln1b_ref, w1_ref, b1_ref, ln2w_ref, ln2b_ref, w2_ref, b2_ref,
     head_ref, xpb_ref, epb_ref, einit_ref) = refs

    # Load all weights ONCE (they stay vreg/VMEM resident across the unrolled loops).
    l_node_w = l_node_w_ref[...]; l_node_b = l_node_b_ref[...]
    l_edge_w = l_edge_w_ref[...]; l_edge_b = l_edge_b_ref[...]
    xpool_w = xpool_w_ref[...]; xpool_b = xpool_b_ref[...]
    epool_w = epool_w_ref[...]; epool_b = epool_b_ref[...]
    x_emb_tab = x_emb_ref[...]; e_emb_tab = e_emb_ref[...]
    wih = gru_wih_ref[...]; whh = gru_whh_ref[...]
    bih = gru_bih_ref[...]; bhh = gru_bhh_ref[...]
    enc_start = enc_start_ref[...]; enc_end = enc_end_ref[...]
    ln1w = ln1w_ref[...]; ln1b = ln1b_ref[...]
    w1 = w1_ref[...]; b1 = b1_ref[...]
    ln2w = ln2w_ref[...]; ln2b = ln2b_ref[...]
    w2 = w2_ref[...]; b2 = b2_ref[...]

    # ---- encode_aa: Linear + LeakyReLU over all atoms / atom pairs (both batches at once)
    xa = _leaky(_dot(x_in_ref[...], l_node_w) + l_node_b)    # (B*L,   AA_NODE_H)
    ea = _leaky(_dot(e_in_ref[...], l_edge_w) + l_edge_b)    # (B*L*L, AA_EDGE_H)
    # TODO(synk): GNNBlock (aa_blocks) message passing is not defined in the reference; identity.

    row_ids = jax.lax.broadcasted_iota(jnp.int32, (N, 1), 0)  # hoisted; reused every GRU step

    for b in range(B):  # B=2, fully unrolled at trace time — no launches, no HBM traffic
        xa_b = xa[b * L:(b + 1) * L, :]              # (L, AA_NODE_H)
        ea_b = ea[b * L * L:(b + 1) * L * L, :]      # (L*L, AA_EDGE_H)

        # scatter_mean pooling as matmuls: normalized one-hot (nodes), Kronecker (edges)
        x_pool = _dot(pn_ref[b], xa_b)               # (N, AA_NODE_H)
        e_pool = _dot(q_ref[b], ea_b)                # (N*N, AA_EDGE_H)

        x_pooling = _leaky(_dot(x_pool, xpool_w) + xpool_b)   # (N, NODE_H)
        e_pooling = _leaky(_dot(e_pool, epool_w) + epool_b)   # (N*N, EDGE_H)

        # BFS reorder as permutation-matrix matmuls on the MXU
        x_pooling_bfs = _dot(pbfs_ref[b], x_pooling)          # (N, NODE_H)
        e_pooling_bfs = _dot(qbfs_ref[b], e_pooling)          # (N*N, EDGE_H)

        # encoder_scaf_bias: embedding lookups as one-hot matmuls
        x_init = _dot(scaf_oh_ref[b], x_emb_tab) + x_pooling_bfs      # (N, NODE_H)
        edge_init = _dot(edge_oh_ref[b], e_emb_tab) + e_pooling_bfs   # (N*N, EDGE_H)
        # frag_mask is None on the unmasked pass -> the (1 - mask) multiply is a no-op.

        xpb_ref[b] = x_pooling_bfs
        epb_ref[b] = e_pooling_bfs
        einit_ref[b] = edge_init

        # ---- RNNGNNBlock recurrence: fully unrolled GRU, h stays in vregs ----------
        # TODO(synk): RNNGNNBlock's GNN message passing is not defined in the reference;
        # modeled as masked-mean node readout feeding its GRU cell (edge_init unused here).
        h = enc_start                                          # (1, RNN_H)
        for i in reversed(range(N)):
            step_mask = (row_ids <= i).astype(jnp.float32)     # (N, 1)
            x_step = jnp.sum(x_init * step_mask, axis=0, keepdims=True) * (1.0 / (i + 1))
            new_h = _gru_step(x_step, h, wih, whh, bih, bhh)
            hm = pmask_ref[b, i]                               # scalar from SMEM
            h = new_h * hm + h * (1.0 - hm)
        h = _gru_step(enc_end, h, wih, whh, bih, bhh)          # dropout p=0 is identity

        # ---- graph_to_noise head: LN -> Linear -> LeakyReLU -> LN -> Linear --------
        g = _ln(h, ln1w, ln1b)
        g = _leaky(_dot(g, w1) + b1)                           # Dropout(p=0) is identity
        g = _ln(g, ln2w, ln2b)
        out = _dot(g, w2) + b2                                 # (1, 2*NOISE_H)
        mean = out[:, :NOISE_H]
        logvar = out[:, NOISE_H:]
        noise = eps_ref[b] * jnp.exp(0.5 * logvar) + mean      # reparameterization

        # lane-packed per-graph output slab: [pooling | mean | logvar | noise]
        head_ref[b, :, 0:RNN_H] = h
        head_ref[b, :, RNN_H:RNN_H + NOISE_H] = mean
        head_ref[b, :, RNN_H + NOISE_H:RNN_H + 2 * NOISE_H] = logvar
        head_ref[b, :, RNN_H + 2 * NOISE_H:HEAD_W] = noise


# ---------------------------------------------------------------------------
# Parameter init (deterministic, synthetic)
# ---------------------------------------------------------------------------
def init_params(key):
    ks = iter(jax.random.split(key, 16))

    def lin(k, din, dout):
        return 0.1 * jax.random.normal(k, (din, dout), jnp.float32)

    p = {}
    p["l_node_w"] = lin(next(ks), NODE_IN, AA_NODE_H)
    p["l_node_b"] = jnp.zeros((1, AA_NODE_H), jnp.float32)
    p["l_edge_w"] = lin(next(ks), EDGE_IN, AA_EDGE_H)
    p["l_edge_b"] = jnp.zeros((1, AA_EDGE_H), jnp.float32)
    p["xpool_w"] = lin(next(ks), AA_NODE_H, NODE_H)
    p["xpool_b"] = jnp.zeros((1, NODE_H), jnp.float32)
    p["epool_w"] = lin(next(ks), AA_EDGE_H, EDGE_H)
    p["epool_b"] = jnp.zeros((1, EDGE_H), jnp.float32)
    # encoder_scaf_bias embeddings
    p["x_in_emb"] = 0.1 * jax.random.normal(next(ks), (N_SCAF, NODE_H), jnp.float32)
    p["edge_in_emb"] = 0.1 * jax.random.normal(next(ks), (EDGE_VOCAB, EDGE_H), jnp.float32)
    # RNNGNNBlock GRU cell (1 cell): input RNN_H, hidden RNN_H
    p["gru_wih"] = lin(next(ks), RNN_H, 3 * RNN_H)
    p["gru_whh"] = lin(next(ks), RNN_H, 3 * RNN_H)
    p["gru_bih"] = jnp.zeros((1, 3 * RNN_H), jnp.float32)
    p["gru_bhh"] = jnp.zeros((1, 3 * RNN_H), jnp.float32)
    # encoder start / end (torch.zeros parameters)
    p["encoder_start"] = jnp.zeros((1, RNN_H), jnp.float32)
    p["encoder_end"] = jnp.zeros((1, RNN_H), jnp.float32)
    # graph_to_noise head (with_aux=False -> pooling_hidden = RNN_H)
    P = RNN_H
    p["g2n_ln1_w"] = jnp.ones((1, P), jnp.float32)
    p["g2n_ln1_b"] = jnp.zeros((1, P), jnp.float32)
    p["g2n_w1"] = lin(next(ks), P, P)
    p["g2n_b1"] = jnp.zeros((1, P), jnp.float32)
    p["g2n_ln2_w"] = jnp.ones((1, P), jnp.float32)
    p["g2n_ln2_b"] = jnp.zeros((1, P), jnp.float32)
    p["g2n_w2"] = lin(next(ks), P, 2 * NOISE_H)
    p["g2n_b2"] = jnp.zeros((1, 2 * NOISE_H), jnp.float32)
    return p


# ---------------------------------------------------------------------------
# Forward pass (mirrors ScafEncoder.forward / train_encoder, with_aux=False)
# ---------------------------------------------------------------------------
@jax.jit
def scaf_encoder_forward(params, data, noise_key):
    # pooling_mask = (scaf_idx_bfs > 0).float()
    pooling_mask = (data["scaf_idx_bfs"] > 0).astype(jnp.float32)          # (B, N)

    # pad_mask: append mask-position channel (zeros for the unmasked pass)
    # TODO(synk): pad_mask() is not defined in the reference; modeled as appending a zero channel.
    x_aa_init = jnp.concatenate(
        [data["l_x_init"], jnp.zeros(data["l_x_init"].shape[:-1] + (1,), jnp.float32)], axis=-1)
    edge_aa_init = jnp.concatenate(
        [data["l_edge_init"], jnp.zeros(data["l_edge_init"].shape[:-1] + (1,), jnp.float32)], axis=-1)
    x_in = x_aa_init.reshape(B * L, NODE_IN)
    e_in = edge_aa_init.reshape(B * L * L, EDGE_IN)

    # ---- index preprocessing (tiny, int-derived; no activations touch HBM) --------
    # scatter_mean as count-normalized one-hot matmul
    oh = jax.nn.one_hot(data["component_idx"], N, dtype=jnp.float32)        # (B, L, N)
    cnt = jnp.maximum(jnp.sum(oh, axis=1, keepdims=True), 1.0)              # (B, 1, N)
    pn = jnp.transpose(oh / cnt, (0, 2, 1))                                 # (B, N, L)
    # two-sided edge pooling matrix = Kron(pn, pn)
    q = jnp.einsum("bni,bmj->bnmij", pn, pn).reshape(B, N * N, L * L)       # (B, N*N, L*L)
    # BFS gather as permutation matrices (and their Kronecker product for edges)
    pbfs = jax.nn.one_hot(data["bfs_idx"], N, dtype=jnp.float32)            # (B, N, N)
    qbfs = jnp.einsum("bni,bmj->bnmij", pbfs, pbfs).reshape(B, N * N, N * N)
    # embedding lookups as one-hot matmuls
    scaf_oh = jax.nn.one_hot(data["scaf_idx_bfs"], N_SCAF, dtype=jnp.float32)            # (B, N, N_SCAF)
    edge_oh = jax.nn.one_hot(data["reordered_scaf_sparse_adj_bfs"].reshape(B, N * N),
                             EDGE_VOCAB, dtype=jnp.float32)                               # (B, N*N, VOCAB)

    eps = jax.random.normal(noise_key, (B, 1, NOISE_H), jnp.float32)

    p = params
    head, xpb, epb, einit = pl.pallas_call(
        _scaf_encoder_kernel,
        out_shape=(
            jax.ShapeDtypeStruct((B, 1, HEAD_W), jnp.float32),       # packed head slab
            jax.ShapeDtypeStruct((B, N, NODE_H), jnp.float32),       # x_pooling_bfs
            jax.ShapeDtypeStruct((B, N * N, EDGE_H), jnp.float32),   # edge_pooling_bfs (flat)
            jax.ShapeDtypeStruct((B, N * N, EDGE_H), jnp.float32),   # edge_init (flat)
        ),
        in_specs=[_VMEM] * 9 + [_SMEM] + [_VMEM] * 24,
        out_specs=(_VMEM, _VMEM, _VMEM, _VMEM),
    )(x_in, e_in, pn, q, pbfs, qbfs, scaf_oh, edge_oh, eps, pooling_mask,
      p["l_node_w"], p["l_node_b"], p["l_edge_w"], p["l_edge_b"],
      p["xpool_w"], p["xpool_b"], p["epool_w"], p["epool_b"],
      p["x_in_emb"], p["edge_in_emb"],
      p["gru_wih"], p["gru_whh"], p["gru_bih"], p["gru_bhh"],
      p["encoder_start"], p["encoder_end"],
      p["g2n_ln1_w"], p["g2n_ln1_b"], p["g2n_w1"], p["g2n_b1"],
      p["g2n_ln2_w"], p["g2n_ln2_b"], p["g2n_w2"], p["g2n_b2"])

    pooling = head[:, 0, :RNN_H]
    noise_mean = head[:, 0, RNN_H:RNN_H + NOISE_H]
    noise_logvar = head[:, 0, RNN_H + NOISE_H:RNN_H + 2 * NOISE_H]
    noise = head[:, 0, RNN_H + 2 * NOISE_H:HEAD_W]

    return {
        "pooling_mask": pooling_mask,
        "x_pooling_bfs": xpb,
        "edge_pooling_bfs": epb.reshape(B, N, N, EDGE_H),
        "edge_init": einit.reshape(B, N, N, EDGE_H),
        "pooling": pooling,
        "noise_mean": noise_mean,
        "noise_logvar": noise_logvar,
        "noise": noise,
    }


# ---------------------------------------------------------------------------
if __name__ == "__main__":
    key = jax.random.PRNGKey(0)
    k_par, k_x, k_e, k_c, k_b, k_s, k_a, k_n = jax.random.split(key, 8)

    params = init_params(k_par)

    data = {
        "l_x_init": jax.random.normal(k_x, (B, L, NODE_IN - 1), jnp.float32),
        "l_edge_init": jax.random.normal(k_e, (B, L, L, EDGE_IN - 1), jnp.float32),
        "component_idx": jax.random.randint(k_c, (B, L), 0, N, jnp.int32),
        "bfs_idx": jnp.stack(
            [jax.random.permutation(jax.random.fold_in(k_b, b), N) for b in range(B)]
        ).astype(jnp.int32),
        "scaf_idx_bfs": jax.random.randint(k_s, (B, N), 0, N_SCAF, jnp.int32),
        "reordered_scaf_sparse_adj_bfs": jax.random.randint(k_a, (B, N, N), 0, EDGE_VOCAB, jnp.int32),
    }

    out = scaf_encoder_forward(params, data, k_n)
    jax.block_until_ready(out)

    assert out["noise_mean"].shape == (B, NOISE_H)
    assert out["noise_logvar"].shape == (B, NOISE_H)
    assert out["noise"].shape == (B, NOISE_H)
    assert out["pooling"].shape == (B, RNN_H)
    assert out["x_pooling_bfs"].shape == (B, N, NODE_H)
    assert out["edge_pooling_bfs"].shape == (B, N, N, EDGE_H)
    assert out["edge_init"].shape == (B, N, N, EDGE_H)
    assert bool(jnp.all(jnp.isfinite(out["noise"])))
    assert bool(jnp.all(jnp.isfinite(out["pooling"])))
    print("KERNEL_OK")
</pallas_src>

<mosaic_0001>
module attributes {stable_mosaic.version = 11 : i64} {
  func.func @_scaf_encoder_kernel(%arg0: memref<16x8xf32, #tpu.memory_space<vmem>>, %arg1: memref<128x8xf32, #tpu.memory_space<vmem>>, %arg2: memref<2x4x8xf32, #tpu.memory_space<vmem>>, %arg3: memref<2x16x64xf32, #tpu.memory_space<vmem>>, %arg4: memref<2x4x4xf32, #tpu.memory_space<vmem>>, %arg5: memref<2x16x16xf32, #tpu.memory_space<vmem>>, %arg6: memref<2x4x10xf32, #tpu.memory_space<vmem>>, %arg7: memref<2x16x66xf32, #tpu.memory_space<vmem>>, %arg8: memref<2x1x16xf32, #tpu.memory_space<vmem>>, %arg9: memref<2x4xf32, #tpu.memory_space<smem>>, %arg10: memref<8x32xf32, #tpu.memory_space<vmem>>, %arg11: memref<1x32xf32, #tpu.memory_space<vmem>>, %arg12: memref<8x16xf32, #tpu.memory_space<vmem>>, %arg13: memref<1x16xf32, #tpu.memory_space<vmem>>, %arg14: memref<32x32xf32, #tpu.memory_space<vmem>>, %arg15: memref<1x32xf32, #tpu.memory_space<vmem>>, %arg16: memref<16x16xf32, #tpu.memory_space<vmem>>, %arg17: memref<1x16xf32, #tpu.memory_space<vmem>>, %arg18: memref<10x32xf32, #tpu.memory_space<vmem>>, %arg19: memref<66x16xf32, #tpu.memory_space<vmem>>, %arg20: memref<32x96xf32, #tpu.memory_space<vmem>>, %arg21: memref<32x96xf32, #tpu.memory_space<vmem>>, %arg22: memref<1x96xf32, #tpu.memory_space<vmem>>, %arg23: memref<1x96xf32, #tpu.memory_space<vmem>>, %arg24: memref<1x32xf32, #tpu.memory_space<vmem>>, %arg25: memref<1x32xf32, #tpu.memory_space<vmem>>, %arg26: memref<1x32xf32, #tpu.memory_space<vmem>>, %arg27: memref<1x32xf32, #tpu.memory_space<vmem>>, %arg28: memref<32x32xf32, #tpu.memory_space<vmem>>, %arg29: memref<1x32xf32, #tpu.memory_space<vmem>>, %arg30: memref<1x32xf32, #tpu.memory_space<vmem>>, %arg31: memref<1x32xf32, #tpu.memory_space<vmem>>, %arg32: memref<32x32xf32, #tpu.memory_space<vmem>>, %arg33: memref<1x32xf32, #tpu.memory_space<vmem>>, %arg34: memref<2x1x80xf32, #tpu.memory_space<vmem>>, %arg35: memref<2x4x32xf32, #tpu.memory_space<vmem>>, %arg36: memref<2x16x16xf32, #tpu.memory_space<vmem>>, %arg37: memref<2x16x16xf32, #tpu.memory_space<vmem>>) attributes {dimension_semantics = [], scalar_prefetch = 0 : i64, scratch_operands = 0 : i64, tpu.core_type = #tpu.core_type<tc>} {
    %c0 = arith.constant 0 : index
    %c0_0 = arith.constant 0 : index
    %0 = vector.load %arg10[%c0, %c0_0] : memref<8x32xf32, #tpu.memory_space<vmem>>, vector<8x32xf32>
    %c0_1 = arith.constant 0 : index
    %c0_2 = arith.constant 0 : index
    %1 = vector.load %arg11[%c0_1, %c0_2] : memref<1x32xf32, #tpu.memory_space<vmem>>, vector<1x32xf32>
    %c0_3 = arith.constant 0 : index
    %c0_4 = arith.constant 0 : index
    %2 = vector.load %arg12[%c0_3, %c0_4] : memref<8x16xf32, #tpu.memory_space<vmem>>, vector<8x16xf32>
    %c0_5 = arith.constant 0 : index
    %c0_6 = arith.constant 0 : index
    %3 = vector.load %arg13[%c0_5, %c0_6] : memref<1x16xf32, #tpu.memory_space<vmem>>, vector<1x16xf32>
    %c0_7 = arith.constant 0 : index
    %c0_8 = arith.constant 0 : index
    %4 = vector.load %arg14[%c0_7, %c0_8] : memref<32x32xf32, #tpu.memory_space<vmem>>, vector<32x32xf32>
    %c0_9 = arith.constant 0 : index
    %c0_10 = arith.constant 0 : index
    %5 = vector.load %arg15[%c0_9, %c0_10] : memref<1x32xf32, #tpu.memory_space<vmem>>, vector<1x32xf32>
    %c0_11 = arith.constant 0 : index
    %c0_12 = arith.constant 0 : index
    %6 = vector.load %arg16[%c0_11, %c0_12] : memref<16x16xf32, #tpu.memory_space<vmem>>, vector<16x16xf32>
    %c0_13 = arith.constant 0 : index
    %c0_14 = arith.constant 0 : index
    %7 = vector.load %arg17[%c0_13, %c0_14] : memref<1x16xf32, #tpu.memory_space<vmem>>, vector<1x16xf32>
    %c0_15 = arith.constant 0 : index
    %c0_16 = arith.constant 0 : index
    %8 = vector.load %arg18[%c0_15, %c0_16] : memref<10x32xf32, #tpu.memory_space<vmem>>, vector<10x32xf32>
    %c0_17 = arith.constant 0 : index
    %c0_18 = arith.constant 0 : index
    %9 = vector.load %arg19[%c0_17, %c0_18] : memref<66x16xf32, #tpu.memory_space<vmem>>, vector<66x16xf32>
    %c0_19 = arith.constant 0 : index
    %c0_20 = arith.constant 0 : index
    %10 = vector.load %arg20[%c0_19, %c0_20] : memref<32x96xf32, #tpu.memory_space<vmem>>, vector<32x96xf32>
    %c0_21 = arith.constant 0 : index
    %c0_22 = arith.constant 0 : index
    %11 = vector.load %arg21[%c0_21, %c0_22] : memref<32x96xf32, #tpu.memory_space<vmem>>, vector<32x96xf32>
    %c0_23 = arith.constant 0 : index
    %c0_24 = arith.constant 0 : index
    %12 = vector.load %arg22[%c0_23, %c0_24] : memref<1x96xf32, #tpu.memory_space<vmem>>, vector<1x96xf32>
    %c0_25 = arith.constant 0 : index
    %c0_26 = arith.constant 0 : index
    %13 = vector.load %arg23[%c0_25, %c0_26] : memref<1x96xf32, #tpu.memory_space<vmem>>, vector<1x96xf32>
    %c0_27 = arith.constant 0 : index
    %c0_28 = arith.constant 0 : index
    %14 = vector.load %arg24[%c0_27, %c0_28] : memref<1x32xf32, #tpu.memory_space<vmem>>, vector<1x32xf32>
    %c0_29 = arith.constant 0 : index
    %c0_30 = arith.constant 0 : index
    %15 = vector.load %arg25[%c0_29, %c0_30] : memref<1x32xf32, #tpu.memory_space<vmem>>, vector<1x32xf32>
    %c0_31 = arith.constant 0 : index
    %c0_32 = arith.constant 0 : index
    %16 = vector.load %arg26[%c0_31, %c0_32] : memref<1x32xf32, #tpu.memory_space<vmem>>, vector<1x32xf32>
    %c0_33 = arith.constant 0 : index
    %c0_34 = arith.constant 0 : index
    %17 = vector.load %arg27[%c0_33, %c0_34] : memref<1x32xf32, #tpu.memory_space<vmem>>, vector<1x32xf32>
    %c0_35 = arith.constant 0 : index
    %c0_36 = arith.constant 0 : index
    %18 = vector.load %arg28[%c0_35, %c0_36] : memref<32x32xf32, #tpu.memory_space<vmem>>, vector<32x32xf32>
    %c0_37 = arith.constant 0 : index
    %c0_38 = arith.constant 0 : index
    %19 = vector.load %arg29[%c0_37, %c0_38] : memref<1x32xf32, #tpu.memory_space<vmem>>, vector<1x32xf32>
    %c0_39 = arith.constant 0 : index
    %c0_40 = arith.constant 0 : index
    %20 = vector.load %arg30[%c0_39, %c0_40] : memref<1x32xf32, #tpu.memory_space<vmem>>, vector<1x32xf32>
    %c0_41 = arith.constant 0 : index
    %c0_42 = arith.constant 0 : index
    %21 = vector.load %arg31[%c0_41, %c0_42] : memref<1x32xf32, #tpu.memory_space<vmem>>, vector<1x32xf32>
    %c0_43 = arith.constant 0 : index
    %c0_44 = arith.constant 0 : index
    %22 = vector.load %arg32[%c0_43, %c0_44] : memref<32x32xf32, #tpu.memory_space<vmem>>, vector<32x32xf32>
    %c0_45 = arith.constant 0 : index
    %c0_46 = arith.constant 0 : index
    %23 = vector.load %arg33[%c0_45, %c0_46] : memref<1x32xf32, #tpu.memory_space<vmem>>, vector<1x32xf32>
    %c0_47 = arith.constant 0 : index
    %c0_48 = arith.constant 0 : index
    %24 = vector.load %arg0[%c0_47, %c0_48] : memref<16x8xf32, #tpu.memory_space<vmem>>, vector<16x8xf32>
    %cst = arith.constant dense<0.000000e+00> : vector<16x32xf32>
    %25 = tpu.matmul %24, %0, %cst {dimension_numbers = #tpu.dot_dimension_numbers<[1], [0], [0], [1], [0, 0, 1, 1], [], []>} : vector<16x8xf32>, vector<8x32xf32>, vector<16x32xf32> -> vector<16x32xf32>
    %26 = vector.broadcast %1 : vector<1x32xf32> to vector<16x32xf32>
    %27 = arith.addf %25, %26 : vector<16x32xf32>
    %cst_49 = arith.constant 0.000000e+00 : f32
    %28 = vector.broadcast %cst_49 : f32 to vector<16x32xf32>
    %29 = arith.cmpf ogt, %27, %28 : vector<16x32xf32>
    %cst_50 = arith.constant 0.00999999977 : f32
    %30 = vector.broadcast %cst_50 : f32 to vector<16x32xf32>
    %31 = arith.mulf %30, %27 : vector<16x32xf32>
    %32 = arith.select %29, %27, %31 : vector<16x32xi1>, vector<16x32xf32>
    %c0_51 = arith.constant 0 : index
    %c0_52 = arith.constant 0 : index
    %33 = vector.load %arg1[%c0_51, %c0_52] : memref<128x8xf32, #tpu.memory_space<vmem>>, vector<128x8xf32>
    %cst_53 = arith.constant dense<0.000000e+00> : vector<128x16xf32>
    %34 = tpu.matmul %33, %2, %cst_53 {dimension_numbers = #tpu.dot_dimension_numbers<[1], [0], [0], [1], [0, 0, 1, 1], [], []>} : vector<128x8xf32>, vector<8x16xf32>, vector<128x16xf32> -> vector<128x16xf32>
    %35 = vector.broadcast %3 : vector<1x16xf32> to vector<128x16xf32>
    %36 = arith.addf %34, %35 : vector<128x16xf32>
    %cst_54 = arith.constant 0.000000e+00 : f32
    %37 = vector.broadcast %cst_54 : f32 to vector<128x16xf32>
    %38 = arith.cmpf ogt, %36, %37 : vector<128x16xf32>
    %cst_55 = arith.constant 0.00999999977 : f32
    %39 = vector.broadcast %cst_55 : f32 to vector<128x16xf32>
    %40 = arith.mulf %39, %36 : vector<128x16xf32>
    %41 = arith.select %38, %36, %40 : vector<128x16xi1>, vector<128x16xf32>
    %42 = tpu.iota {dimensions = array<i32: 0>} : vector<4x1xi32>
    %43 = vector.extract_strided_slice %32 {offsets = [0, 0], sizes = [8, 32], strides = [1, 1]} : vector<16x32xf32> to vector<8x32xf32>
    %44 = vector.extract_strided_slice %41 {offsets = [0, 0], sizes = [64, 16], strides = [1, 1]} : vector<128x16xf32> to vector<64x16xf32>
    %c0_56 = arith.constant 0 : index
    %c0_57 = arith.constant 0 : index
    %c0_58 = arith.constant 0 : index
    %45 = vector.load %arg2[%c0_56, %c0_57, %c0_58] : memref<2x4x8xf32, #tpu.memory_space<vmem>>, vector<1x4x8xf32>
    %46 = vector.shape_cast %45 : vector<1x4x8xf32> to vector<4x8xf32>
    %cst_59 = arith.constant dense<0.000000e+00> : vector<4x32xf32>
    %47 = tpu.matmul %46, %43, %cst_59 {dimension_numbers = #tpu.dot_dimension_numbers<[1], [0], [0], [1], [0, 0, 1, 1], [], []>} : vector<4x8xf32>, vector<8x32xf32>, vector<4x32xf32> -> vector<4x32xf32>
    %c0_60 = arith.constant 0 : index
    %c0_61 = arith.constant 0 : index
    %c0_62 = arith.constant 0 : index
    %48 = vector.load %arg3[%c0_60, %c0_61, %c0_62] : memref<2x16x64xf32, #tpu.memory_space<vmem>>, vector<1x16x64xf32>
    %49 = vector.shape_cast %48 : vector<1x16x64xf32> to vector<16x64xf32>
    %cst_63 = arith.constant dense<0.000000e+00> : vector<16x16xf32>
    %50 = tpu.matmul %49, %44, %cst_63 {dimension_numbers = #tpu.dot_dimension_numbers<[1], [0], [0], [1], [0, 0, 1, 1], [], []>} : vector<16x64xf32>, vector<64x16xf32>, vector<16x16xf32> -> vector<16x16xf32>
    %cst_64 = arith.constant dense<0.000000e+00> : vector<4x32xf32>
    %51 = tpu.matmul %47, %4, %cst_64 {dimension_numbers = #tpu.dot_dimension_numbers<[1], [0], [0], [1], [0, 0, 1, 1], [], []>} : vector<4x32xf32>, vector<32x32xf32>, vector<4x32xf32> -> vector<4x32xf32>
    %52 = vector.broadcast %5 : vector<1x32xf32> to vector<4x32xf32>
    %53 = arith.addf %51, %52 : vector<4x32xf32>
    %cst_65 = arith.constant 0.000000e+00 : f32
    %54 = vector.broadcast %cst_65 : f32 to vector<4x32xf32>
    %55 = arith.cmpf ogt, %53, %54 : vector<4x32xf32>
    %cst_66 = arith.constant 0.00999999977 : f32
    %56 = vector.broadcast %cst_66 : f32 to vector<4x32xf32>
    %57 = arith.mulf %56, %53 : vector<4x32xf32>
    %58 = arith.select %55, %53, %57 : vector<4x32xi1>, vector<4x32xf32>
    %cst_67 = arith.constant dense<0.000000e+00> : vector<16x16xf32>
    %59 = tpu.matmul %50, %6, %cst_67 {dimension_numbers = #tpu.dot_dimension_numbers<[1], [0], [0], [1], [0, 0, 1, 1], [], []>} : vector<16x16xf32>, vector<16x16xf32>, vector<16x16xf32> -> vector<16x16xf32>
    %60 = vector.broadcast %7 : vector<1x16xf32> to vector<16x16xf32>
    %61 = arith.addf %59, %60 : vector<16x16xf32>
    %cst_68 = arith.constant 0.000000e+00 : f32
    %62 = vector.broadcast %cst_68 : f32 to vector<16x16xf32>
    %63 = arith.cmpf ogt, %61, %62 : vector<16x16xf32>
    %cst_69 = arith.constant 0.00999999977 : f32
    %64 = vector.broadcast %cst_69 : f32 to vector<16x16xf32>
    %65 = arith.mulf %64, %61 : vector<16x16xf32>
    %66 = arith.select %63, %61, %65 : vector<16x16xi1>, vector<16x16xf32>
    %c0_70 = arith.constant 0 : index
    %c0_71 = arith.constant 0 : index
    %c0_72 = arith.constant 0 : index
    %67 = vector.load %arg4[%c0_70, %c0_71, %c0_72] : memref<2x4x4xf32, #tpu.memory_space<vmem>>, vector<1x4x4xf32>
    %68 = vector.shape_cast %67 : vector<1x4x4xf32> to vector<4x4xf32>
    %cst_73 = arith.constant dense<0.000000e+00> : vector<4x32xf32>
    %69 = tpu.matmul %68, %58, %cst_73 {dimension_numbers = #tpu.dot_dimension_numbers<[1], [0], [0], [1], [0, 0, 1, 1], [], []>} : vector<4x4xf32>, vector<4x32xf32>, vector<4x32xf32> -> vector<4x32xf32>
    %c0_74 = arith.constant 0 : index
    %c0_75 = arith.constant 0 : index
    %c0_76 = arith.constant 0 : index
    %70 = vector.load %arg5[%c0_74, %c0_75, %c0_76] : memref<2x16x16xf32, #tpu.memory_space<vmem>>, vector<1x16x16xf32>
    %71 = vector.shape_cast %70 : vector<1x16x16xf32> to vector<16x16xf32>
    %cst_77 = arith.constant dense<0.000000e+00> : vector<16x16xf32>
    %72 = tpu.matmul %71, %66, %cst_77 {dimension_numbers = #tpu.dot_dimension_numbers<[1], [0], [0], [1], [0, 0, 1, 1], [], []>} : vector<16x16xf32>, vector<16x16xf32>, vector<16x16xf32> -> vector<16x16xf32>
    %c0_78 = arith.constant 0 : index
    %c0_79 = arith.constant 0 : index
    %c0_80 = arith.constant 0 : index
    %73 = vector.load %arg6[%c0_78, %c0_79, %c0_80] : memref<2x4x10xf32, #tpu.memory_space<vmem>>, vector<1x4x10xf32>
    %74 = vector.shape_cast %73 : vector<1x4x10xf32> to vector<4x10xf32>
    %cst_81 = arith.constant dense<0.000000e+00> : vector<4x32xf32>
    %75 = tpu.matmul %74, %8, %cst_81 {dimension_numbers = #tpu.dot_dimension_numbers<[1], [0], [0], [1], [0, 0, 1, 1], [], []>} : vector<4x10xf32>, vector<10x32xf32>, vector<4x32xf32> -> vector<4x32xf32>
    %76 = arith.addf %75, %69 : vector<4x32xf32>
    %c0_82 = arith.constant 0 : index
    %c0_83 = arith.constant 0 : index
    %c0_84 = arith.constant 0 : index
    %77 = vector.load %arg7[%c0_82, %c0_83, %c0_84] : memref<2x16x66xf32, #tpu.memory_space<vmem>>, vector<1x16x66xf32>
    %78 = vector.shape_cast %77 : vector<1x16x66xf32> to vector<16x66xf32>
    %cst_85 = arith.constant dense<0.000000e+00> : vector<16x16xf32>
    %79 = tpu.matmul %78, %9, %cst_85 {dimension_numbers = #tpu.dot_dimension_numbers<[1], [0], [0], [1], [0, 0, 1, 1], [], []>} : vector<16x66xf32>, vector<66x16xf32>, vector<16x16xf32> -> vector<16x16xf32>
    %80 = arith.addf %79, %72 : vector<16x16xf32>
    %c0_86 = arith.constant 0 : index
    %c0_87 = arith.constant 0 : index
    %c0_88 = arith.constant 0 : index
    %81 = vector.load %arg35[%c0_86, %c0_87, %c0_88] : memref<2x4x32xf32, #tpu.memory_space<vmem>>, vector<1x4x32xf32>
    %82 = vector.shape_cast %81 : vector<1x4x32xf32> to vector<4x32xf32>
    %83 = vector.shape_cast %69 : vector<4x32xf32> to vector<1x4x32xf32>
    tpu.vector_store %arg35[%c0_86, %c0_87, %c0_88], %83 {strides = array<i32>} : memref<2x4x32xf32, #tpu.memory_space<vmem>>, vector<1x4x32xf32>,
    %c0_89 = arith.constant 0 : index
    %c0_90 = arith.constant 0 : index
    %c0_91 = arith.constant 0 : index
    %84 = vector.load %arg36[%c0_89, %c0_90, %c0_91] : memref<2x16x16xf32, #tpu.memory_space<vmem>>, vector<1x16x16xf32>
    %85 = vector.shape_cast %84 : vector<1x16x16xf32> to vector<16x16xf32>
    %86 = vector.shape_cast %72 : vector<16x16xf32> to vector<1x16x16xf32>
    tpu.vector_store %arg36[%c0_89, %c0_90, %c0_91], %86 {strides = array<i32>} : memref<2x16x16xf32, #tpu.memory_space<vmem>>, vector<1x16x16xf32>,
    %c0_92 = arith.constant 0 : index
    %c0_93 = arith.constant 0 : index
    %c0_94 = arith.constant 0 : index
    %87 = vector.load %arg37[%c0_92, %c0_93, %c0_94] : memref<2x16x16xf32, #tpu.memory_space<vmem>>, vector<1x16x16xf32>
    %88 = vector.shape_cast %87 : vector<1x16x16xf32> to vector<16x16xf32>
    %89 = vector.shape_cast %80 : vector<16x16xf32> to vector<1x16x16xf32>
    tpu.vector_store %arg37[%c0_92, %c0_93, %c0_94], %89 {strides = array<i32>} : memref<2x16x16xf32, #tpu.memory_space<vmem>>, vector<1x16x16xf32>,
    %c3_i32 = arith.constant 3 : i32
    %90 = vector.broadcast %c3_i32 : i32 to vector<4x1xi32>
    %91 = arith.cmpi sle, %42, %90 : vector<4x1xi32>
    %92 = arith.extui %91 : vector<4x1xi1> to vector<4x1xi32>
    %93 = arith.sitofp %92 : vector<4x1xi32> to vector<4x1xf32>
    %94 = vector.broadcast %93 : vector<4x1xf32> to vector<4x32xf32>
    %95 = arith.mulf %76, %94 : vector<4x32xf32>
    %cst_95 = arith.constant dense<0.000000e+00> : vector<32xf32>
    %96 = vector.multi_reduction <add>, %95, %cst_95 [0] : vector<4x32xf32> to vector<32xf32>
    %97 = vector.shape_cast %96 : vector<32xf32> to vector<1x32xf32>
    %cst_96 = arith.constant 2.500000e-01 : f32
    %98 = vector.broadcast %cst_96 : f32 to vector<1x32xf32>
    %99 = arith.mulf %97, %98 : vector<1x32xf32>
    %cst_97 = arith.constant dense<0.000000e+00> : vector<1x96xf32>
    %100 = tpu.matmul %99, %10, %cst_97 {dimension_numbers = #tpu.dot_dimension_numbers<[1], [0], [0], [1], [0, 0, 1, 1], [], []>} : vector<1x32xf32>, vector<32x96xf32>, vector<1x96xf32> -> vector<1x96xf32>
    %101 = arith.addf %100, %12 : vector<1x96xf32>
    %cst_98 = arith.constant dense<0.000000e+00> : vector<1x96xf32>
    %102 = tpu.matmul %14, %11, %cst_98 {dimension_numbers = #tpu.dot_dimension_numbers<[1], [0], [0], [1], [0, 0, 1, 1], [], []>} : vector<1x32xf32>, vector<32x96xf32>, vector<1x96xf32> -> vector<1x96xf32>
    %103 = arith.addf %102, %13 : vector<1x96xf32>
    %104 = vector.extract_strided_slice %101 {offsets = [0, 0], sizes = [1, 32], strides = [1, 1]} : vector<1x96xf32> to vector<1x32xf32>
    %105 = vector.extract_strided_slice %103 {offsets = [0, 0], sizes = [1, 32], strides = [1, 1]} : vector<1x96xf32> to vector<1x32xf32>
    %106 = arith.addf %104, %105 : vector<1x32xf32>
    %107 = arith.negf %106 : vector<1x32xf32>
    %108 = math.exp %107 : vector<1x32xf32>
    %cst_99 = arith.constant 1.000000e+00 : f32
    %109 = vector.broadcast %cst_99 : f32 to vector<1x32xf32>
    %110 = arith.addf %109, %108 : vector<1x32xf32>
    %111 = arith.divf %109, %110 : vector<1x32xf32>
    %112 = vector.extract_strided_slice %101 {offsets = [0, 32], sizes = [1, 32], strides = [1, 1]} : vector<1x96xf32> to vector<1x32xf32>
    %113 = vector.extract_strided_slice %103 {offsets = [0, 32], sizes = [1, 32], strides = [1, 1]} : vector<1x96xf32> to vector<1x32xf32>
    %114 = arith.addf %112, %113 : vector<1x32xf32>
    %115 = arith.negf %114 : vector<1x32xf32>
    %116 = math.exp %115 : vector<1x32xf32>
    %cst_100 = arith.constant 1.000000e+00 : f32
    %117 = vector.broadcast %cst_100 : f32 to vector<1x32xf32>
    %118 = arith.addf %117, %116 : vector<1x32xf32>
    %119 = arith.divf %117, %118 : vector<1x32xf32>
    %120 = vector.extract_strided_slice %101 {offsets = [0, 64], sizes = [1, 32], strides = [1, 1]} : vector<1x96xf32> to vector<1x32xf32>
    %121 = vector.extract_strided_slice %103 {offsets = [0, 64], sizes = [1, 32], strides = [1, 1]} : vector<1x96xf32> to vector<1x32xf32>
    %122 = arith.mulf %111, %121 : vector<1x32xf32>
    %123 = arith.addf %120, %122 : vector<1x32xf32>
    %124 = math.tanh %123 : vector<1x32xf32>
    %cst_101 = arith.constant 1.000000e+00 : f32
    %125 = vector.broadcast %cst_101 : f32 to vector<1x32xf32>
    %126 = arith.subf %125, %119 : vector<1x32xf32>
    %127 = arith.mulf %126, %124 : vector<1x32xf32>
    %128 = arith.mulf %119, %14 : vector<1x32xf32>
    %129 = arith.addf %127, %128 : vector<1x32xf32>
    %c0_102 = arith.constant 0 : index
    %c3 = arith.constant 3 : index
    %130 = memref.load %arg9[%c0_102, %c3] : memref<2x4xf32, #tpu.memory_space<smem>>
    %131 = vector.broadcast %130 : f32 to vector<1x32xf32>
    %132 = arith.mulf %129, %131 : vector<1x32xf32>
    %cst_103 = arith.constant 1.000000e+00 : f32
    %133 = arith.subf %cst_103, %130 : f32
    %134 = vector.broadcast %133 : f32 to vector<1x32xf32>
    %135 = arith.mulf %14, %134 : vector<1x32xf32>
    %136 = arith.addf %132, %135 : vector<1x32xf32>
    %c2_i32 = arith.constant 2 : i32
    %137 = vector.broadcast %c2_i32 : i32 to vector<4x1xi32>
    %138 = arith.cmpi sle, %42, %137 : vector<4x1xi32>
    %139 = arith.extui %138 : vector<4x1xi1> to vector<4x1xi32>
    %140 = arith.sitofp %139 : vector<4x1xi32> to vector<4x1xf32>
    %141 = vector.broadcast %140 : vector<4x1xf32> to vector<4x32xf32>
    %142 = arith.mulf %76, %141 : vector<4x32xf32>
    %cst_104 = arith.constant dense<0.000000e+00> : vector<32xf32>
    %143 = vector.multi_reduction <add>, %142, %cst_104 [0] : vector<4x32xf32> to vector<32xf32>
    %144 = vector.shape_cast %143 : vector<32xf32> to vector<1x32xf32>
    %cst_105 = arith.constant 0.333333343 : f32
    %145 = vector.broadcast %cst_105 : f32 to vector<1x32xf32>
    %146 = arith.mulf %144, %145 : vector<1x32xf32>
    %cst_106 = arith.constant dense<0.000000e+00> : vector<1x96xf32>
    %147 = tpu.matmul %146, %10, %cst_106 {dimension_numbers = #tpu.dot_dimension_numbers<[1], [0], [0], [1], [0, 0, 1, 1], [], []>} : vector<1x32xf32>, vector<32x96xf32>, vector<1x96xf32> -> vector<1x96xf32>
    %148 = arith.addf %147, %12 : vector<1x96xf32>
    %cst_107 = arith.constant dense<0.000000e+00> : vector<1x96xf32>
    %149 = tpu.matmul %136, %11, %cst_107 {dimension_numbers = #tpu.dot_dimension_numbers<[1], [0], [0], [1], [0, 0, 1, 1], [], []>} : vector<1x32xf32>, vector<32x96xf32>, vector<1x96xf32> -> vector<1x96xf32>
    %150 = arith.addf %149, %13 : vector<1x96xf32>
    %151 = vector.extract_strided_slice %148 {offsets = [0, 0], sizes = [1, 32], strides = [1, 1]} : vector<1x96xf32> to vector<1x32xf32>
    %152 = vector.extract_strided_slice %150 {offsets = [0, 0], sizes = [1, 32], strides = [1, 1]} : vector<1x96xf32> to vector<1x32xf32>
    %153 = arith.addf %151, %152 : vector<1x32xf32>
    %154 = arith.negf %153 : vector<1x32xf32>
    %155 = math.exp %154 : vector<1x32xf32>
    %cst_108 = arith.constant 1.000000e+00 : f32
    %156 = vector.broadcast %cst_108 : f32 to vector<1x32xf32>
    %157 = arith.addf %156, %155 : vector<1x32xf32>
    %158 = arith.divf %156, %157 : vector<1x32xf32>
    %159 = vector.extract_strided_slice %148 {offsets = [0, 32], sizes = [1, 32], strides = [1, 1]} : vector<1x96xf32> to vector<1x32xf32>
    %160 = vector.extract_strided_slice %150 {offsets = [0, 32], sizes = [1, 32], strides = [1, 1]} : vector<1x96xf32> to vector<1x32xf32>
    %161 = arith.addf %159, %160 : vector<1x32xf32>
    %162 = arith.negf %161 : vector<1x32xf32>
    %163 = math.exp %162 : vector<1x32xf32>
    %cst_109 = arith.constant 1.000000e+00 : f32
    %164 = vector.broadcast %cst_109 : f32 to vector<1x32xf32>
    %165 = arith.addf %164, %163 : vector<1x32xf32>
    %166 = arith.divf %164, %165 : vector<1x32xf32>
    %167 = vector.extract_strided_slice %148 {offsets = [0, 64], sizes = [1, 32], strides = [1, 1]} : vector<1x96xf32> to vector<1x32xf32>
    %168 = vector.extract_strided_slice %150 {offsets = [0, 64], sizes = [1, 32], strides = [1, 1]} : vector<1x96xf32> to vector<1x32xf32>
    %169 = arith.mulf %158, %168 : vector<1x32xf32>
    %170 = arith.addf %167, %169 : vector<1x32xf32>
    %171 = math.tanh %170 : vector<1x32xf32>
    %cst_110 = arith.constant 1.000000e+00 : f32
    %172 = vector.broadcast %cst_110 : f32 to vector<1x32xf32>
    %173 = arith.subf %172, %166 : vector<1x32xf32>
    %174 = arith.mulf %173, %171 : vector<1x32xf32>
    %175 = arith.mulf %166, %136 : vector<1x32xf32>
    %176 = arith.addf %174, %175 : vector<1x32xf32>
    %c0_111 = arith.constant 0 : index
    %c2 = arith.constant 2 : index
    %177 = memref.load %arg9[%c0_111, %c2] : memref<2x4xf32, #tpu.memory_space<smem>>
    %178 = vector.broadcast %177 : f32 to vector<1x32xf32>
    %179 = arith.mulf %176, %178 : vector<1x32xf32>
    %cst_112 = arith.constant 1.000000e+00 : f32
    %180 = arith.subf %cst_112, %177 : f32
    %181 = vector.broadcast %180 : f32 to vector<1x32xf32>
    %182 = arith.mulf %136, %181 : vector<1x32xf32>
    %183 = arith.addf %179, %182 : vector<1x32xf32>
    %c1_i32 = arith.constant 1 : i32
    %184 = vector.broadcast %c1_i32 : i32 to vector<4x1xi32>
    %185 = arith.cmpi sle, %42, %184 : vector<4x1xi32>
    %186 = arith.extui %185 : vector<4x1xi1> to vector<4x1xi32>
    %187 = arith.sitofp %186 : vector<4x1xi32> to vector<4x1xf32>
    %188 = vector.broadcast %187 : vector<4x1xf32> to vector<4x32xf32>
    %189 = arith.mulf %76, %188 : vector<4x32xf32>
    %cst_113 = arith.constant dense<0.000000e+00> : vector<32xf32>
    %190 = vector.multi_reduction <add>, %189, %cst_113 [0] : vector<4x32xf32> to vector<32xf32>
    %191 = vector.shape_cast %190 : vector<32xf32> to vector<1x32xf32>
    %cst_114 = arith.constant 5.000000e-01 : f32
    %192 = vector.broadcast %cst_114 : f32 to vector<1x32xf32>
    %193 = arith.mulf %191, %192 : vector<1x32xf32>
    %cst_115 = arith.constant dense<0.000000e+00> : vector<1x96xf32>
    %194 = tpu.matmul %193, %10, %cst_115 {dimension_numbers = #tpu.dot_dimension_numbers<[1], [0], [0], [1], [0, 0, 1, 1], [], []>} : vector<1x32xf32>, vector<32x96xf32>, vector<1x96xf32> -> vector<1x96xf32>
    %195 = arith.addf %194, %12 : vector<1x96xf32>
    %cst_116 = arith.constant dense<0.000000e+00> : vector<1x96xf32>
    %196 = tpu.matmul %183, %11, %cst_116 {dimension_numbers = #tpu.dot_dimension_numbers<[1], [0], [0], [1], [0, 0, 1, 1], [], []>} : vector<1x32xf32>, vector<32x96xf32>, vector<1x96xf32> -> vector<1x96xf32>
    %197 = arith.addf %196, %13 : vector<1x96xf32>
    %198 = vector.extract_strided_slice %195 {offsets = [0, 0], sizes = [1, 32], strides = [1, 1]} : vector<1x96xf32> to vector<1x32xf32>
    %199 = vector.extract_strided_slice %197 {offsets = [0, 0], sizes = [1, 32], strides = [1, 1]} : vector<1x96xf32> to vector<1x32xf32>
    %200 = arith.addf %198, %199 : vector<1x32xf32>
    %201 = arith.negf %200 : vector<1x32xf32>
    %202 = math.exp %201 : vector<1x32xf32>
    %cst_117 = arith.constant 1.000000e+00 : f32
    %203 = vector.broadcast %cst_117 : f32 to vector<1x32xf32>
    %204 = arith.addf %203, %202 : vector<1x32xf32>
    %205 = arith.divf %203, %204 : vector<1x32xf32>
    %206 = vector.extract_strided_slice %195 {offsets = [0, 32], sizes = [1, 32], strides = [1, 1]} : vector<1x96xf32> to vector<1x32xf32>
    %207 = vector.extract_strided_slice %197 {offsets = [0, 32], sizes = [1, 32], strides = [1, 1]} : vector<1x96xf32> to vector<1x32xf32>
    %208 = arith.addf %206, %207 : vector<1x32xf32>
    %209 = arith.negf %208 : vector<1x32xf32>
    %210 = math.exp %209 : vector<1x32xf32>
    %cst_118 = arith.constant 1.000000e+00 : f32
    %211 = vector.broadcast %cst_118 : f32 to vector<1x32xf32>
    %212 = arith.addf %211, %210 : vector<1x32xf32>
    %213 = arith.divf %211, %212 : vector<1x32xf32>
    %214 = vector.extract_strided_slice %195 {offsets = [0, 64], sizes = [1, 32], strides = [1, 1]} : vector<1x96xf32> to vector<1x32xf32>
    %215 = vector.extract_strided_slice %197 {offsets = [0, 64], sizes = [1, 32], strides = [1, 1]} : vector<1x96xf32> to vector<1x32xf32>
    %216 = arith.mulf %205, %215 : vector<1x32xf32>
    %217 = arith.addf %214, %216 : vector<1x32xf32>
    %218 = math.tanh %217 : vector<1x32xf32>
    %cst_119 = arith.constant 1.000000e+00 : f32
    %219 = vector.broadcast %cst_119 : f32 to vector<1x32xf32>
    %220 = arith.subf %219, %213 : vector<1x32xf32>
    %221 = arith.mulf %220, %218 : vector<1x32xf32>
    %222 = arith.mulf %213, %183 : vector<1x32xf32>
    %223 = arith.addf %221, %222 : vector<1x32xf32>
    %c0_120 = arith.constant 0 : index
    %c1 = arith.constant 1 : index
    %224 = memref.load %arg9[%c0_120, %c1] : memref<2x4xf32, #tpu.memory_space<smem>>
    %225 = vector.broadcast %224 : f32 to vector<1x32xf32>
    %226 = arith.mulf %223, %225 : vector<1x32xf32>
    %cst_121 = arith.constant 1.000000e+00 : f32
    %227 = arith.subf %cst_121, %224 : f32
    %228 = vector.broadcast %227 : f32 to vector<1x32xf32>
    %229 = arith.mulf %183, %228 : vector<1x32xf32>
    %230 = arith.addf %226, %229 : vector<1x32xf32>
    %c0_i32 = arith.constant 0 : i32
    %231 = vector.broadcast %c0_i32 : i32 to vector<4x1xi32>
    %232 = arith.cmpi sle, %42, %231 : vector<4x1xi32>
    %233 = arith.extui %232 : vector<4x1xi1> to vector<4x1xi32>
    %234 = arith.sitofp %233 : vector<4x1xi32> to vector<4x1xf32>
    %235 = vector.broadcast %234 : vector<4x1xf32> to vector<4x32xf32>
    %236 = arith.mulf %76, %235 : vector<4x32xf32>
    %cst_122 = arith.constant dense<0.000000e+00> : vector<32xf32>
    %237 = vector.multi_reduction <add>, %236, %cst_122 [0] : vector<4x32xf32> to vector<32xf32>
    %238 = vector.shape_cast %237 : vector<32xf32> to vector<1x32xf32>
    %cst_123 = arith.constant 1.000000e+00 : f32
    %239 = vector.broadcast %cst_123 : f32 to vector<1x32xf32>
    %240 = arith.mulf %238, %239 : vector<1x32xf32>
    %cst_124 = arith.constant dense<0.000000e+00> : vector<1x96xf32>
    %241 = tpu.matmul %240, %10, %cst_124 {dimension_numbers = #tpu.dot_dimension_numbers<[1], [0], [0], [1], [0, 0, 1, 1], [], []>} : vector<1x32xf32>, vector<32x96xf32>, vector<1x96xf32> -> vector<1x96xf32>
    %242 = arith.addf %241, %12 : vector<1x96xf32>
    %cst_125 = arith.constant dense<0.000000e+00> : vector<1x96xf32>
    %243 = tpu.matmul %230, %11, %cst_125 {dimension_numbers = #tpu.dot_dimension_numbers<[1], [0], [0], [1], [0, 0, 1, 1], [], []>} : vector<1x32xf32>, vector<32x96xf32>, vector<1x96xf32> -> vector<1x96xf32>
    %244 = arith.addf %243, %13 : vector<1x96xf32>
    %245 = vector.extract_strided_slice %242 {offsets = [0, 0], sizes = [1, 32], strides = [1, 1]} : vector<1x96xf32> to vector<1x32xf32>
    %246 = vector.extract_strided_slice %244 {offsets = [0, 0], sizes = [1, 32], strides = [1, 1]} : vector<1x96xf32> to vector<1x32xf32>
    %247 = arith.addf %245, %246 : vector<1x32xf32>
    %248 = arith.negf %247 : vector<1x32xf32>
    %249 = math.exp %248 : vector<1x32xf32>
    %cst_126 = arith.constant 1.000000e+00 : f32
    %250 = vector.broadcast %cst_126 : f32 to vector<1x32xf32>
    %251 = arith.addf %250, %249 : vector<1x32xf32>
    %252 = arith.divf %250, %251 : vector<1x32xf32>
    %253 = vector.extract_strided_slice %242 {offsets = [0, 32], sizes = [1, 32], strides = [1, 1]} : vector<1x96xf32> to vector<1x32xf32>
    %254 = vector.extract_strided_slice %244 {offsets = [0, 32], sizes = [1, 32], strides = [1, 1]} : vector<1x96xf32> to vector<1x32xf32>
    %255 = arith.addf %253, %254 : vector<1x32xf32>
    %256 = arith.negf %255 : vector<1x32xf32>
    %257 = math.exp %256 : vector<1x32xf32>
    %cst_127 = arith.constant 1.000000e+00 : f32
    %258 = vector.broadcast %cst_127 : f32 to vector<1x32xf32>
    %259 = arith.addf %258, %257 : vector<1x32xf32>
    %260 = arith.divf %258, %259 : vector<1x32xf32>
    %261 = vector.extract_strided_slice %242 {offsets = [0, 64], sizes = [1, 32], strides = [1, 1]} : vector<1x96xf32> to vector<1x32xf32>
    %262 = vector.extract_strided_slice %244 {offsets = [0, 64], sizes = [1, 32], strides = [1, 1]} : vector<1x96xf32> to vector<1x32xf32>
    %263 = arith.mulf %252, %262 : vector<1x32xf32>
    %264 = arith.addf %261, %263 : vector<1x32xf32>
    %265 = math.tanh %264 : vector<1x32xf32>
    %cst_128 = arith.constant 1.000000e+00 : f32
    %266 = vector.broadcast %cst_128 : f32 to vector<1x32xf32>
    %267 = arith.subf %266, %260 : vector<1x32xf32>
    %268 = arith.mulf %267, %265 : vector<1x32xf32>
    %269 = arith.mulf %260, %230 : vector<1x32xf32>
    %270 = arith.addf %268, %269 : vector<1x32xf32>
    %c0_129 = arith.constant 0 : index
    %c0_130 = arith.constant 0 : index
    %271 = memref.load %arg9[%c0_129, %c0_130] : memref<2x4xf32, #tpu.memory_space<smem>>
    %272 = vector.broadcast %271 : f32 to vector<1x32xf32>
    %273 = arith.mulf %270, %272 : vector<1x32xf32>
    %cst_131 = arith.constant 1.000000e+00 : f32
    %274 = arith.subf %cst_131, %271 : f32
    %275 = vector.broadcast %274 : f32 to vector<1x32xf32>
    %276 = arith.mulf %230, %275 : vector<1x32xf32>
    %277 = arith.addf %273, %276 : vector<1x32xf32>
    %cst_132 = arith.constant dense<0.000000e+00> : vector<1x96xf32>
    %278 = tpu.matmul %15, %10, %cst_132 {dimension_numbers = #tpu.dot_dimension_numbers<[1], [0], [0], [1], [0, 0, 1, 1], [], []>} : vector<1x32xf32>, vector<32x96xf32>, vector<1x96xf32> -> vector<1x96xf32>
    %279 = arith.addf %278, %12 : vector<1x96xf32>
    %cst_133 = arith.constant dense<0.000000e+00> : vector<1x96xf32>
    %280 = tpu.matmul %277, %11, %cst_133 {dimension_numbers = #tpu.dot_dimension_numbers<[1], [0], [0], [1], [0, 0, 1, 1], [], []>} : vector<1x32xf32>, vector<32x96xf32>, vector<1x96xf32> -> vector<1x96xf32>
    %281 = arith.addf %280, %13 : vector<1x96xf32>
    %282 = vector.extract_strided_slice %279 {offsets = [0, 0], sizes = [1, 32], strides = [1, 1]} : vector<1x96xf32> to vector<1x32xf32>
    %283 = vector.extract_strided_slice %281 {offsets = [0, 0], sizes = [1, 32], strides = [1, 1]} : vector<1x96xf32> to vector<1x32xf32>
    %284 = arith.addf %282, %283 : vector<1x32xf32>
    %285 = arith.negf %284 : vector<1x32xf32>
    %286 = math.exp %285 : vector<1x32xf32>
    %cst_134 = arith.constant 1.000000e+00 : f32
    %287 = vector.broadcast %cst_134 : f32 to vector<1x32xf32>
    %288 = arith.addf %287, %286 : vector<1x32xf32>
    %289 = arith.divf %287, %288 : vector<1x32xf32>
    %290 = vector.extract_strided_slice %279 {offsets = [0, 32], sizes = [1, 32], strides = [1, 1]} : vector<1x96xf32> to vector<1x32xf32>
    %291 = vector.extract_strided_slice %281 {offsets = [0, 32], sizes = [1, 32], strides = [1, 1]} : vector<1x96xf32> to vector<1x32xf32>
    %292 = arith.addf %290, %291 : vector<1x32xf32>
    %293 = arith.negf %292 : vector<1x32xf32>
    %294 = math.exp %293 : vector<1x32xf32>
    %cst_135 = arith.constant 1.000000e+00 : f32
    %295 = vector.broadcast %cst_135 : f32 to vector<1x32xf32>
    %296 = arith.addf %295, %294 : vector<1x32xf32>
    %297 = arith.divf %295, %296 : vector<1x32xf32>
    %298 = vector.extract_strided_slice %279 {offsets = [0, 64], sizes = [1, 32], strides = [1, 1]} : vector<1x96xf32> to vector<1x32xf32>
    %299 = vector.extract_strided_slice %281 {offsets = [0, 64], sizes = [1, 32], strides = [1, 1]} : vector<1x96xf32> to vector<1x32xf32>
    %300 = arith.mulf %289, %299 : vector<1x32xf32>
    %301 = arith.addf %298, %300 : vector<1x32xf32>
    %302 = math.tanh %301 : vector<1x32xf32>
    %cst_136 = arith.constant 1.000000e+00 : f32
    %303 = vector.broadcast %cst_136 : f32 to vector<1x32xf32>
    %304 = arith.subf %303, %297 : vector<1x32xf32>
    %305 = arith.mulf %304, %302 : vector<1x32xf32>
    %306 = arith.mulf %297, %277 : vector<1x32xf32>
    %307 = arith.addf %305, %306 : vector<1x32xf32>
    %cst_137 = arith.constant dense<0.000000e+00> : vector<1xf32>
    %308 = vector.multi_reduction <add>, %307, %cst_137 [1] : vector<1x32xf32> to vector<1xf32>
    %309 = vector.shape_cast %308 : vector<1xf32> to vector<1x1xf32>
    %cst_138 = arith.constant 3.200000e+01 : f32
    %310 = vector.broadcast %cst_138 : f32 to vector<1x1xf32>
    %311 = arith.divf %309, %310 : vector<1x1xf32>
    %312 = vector.broadcast %311 : vector<1x1xf32> to vector<1x32xf32>
    %313 = arith.subf %307, %312 : vector<1x32xf32>
    %314 = arith.mulf %313, %313 : vector<1x32xf32>
    %cst_139 = arith.constant dense<0.000000e+00> : vector<1xf32>
    %315 = vector.multi_reduction <add>, %314, %cst_139 [1] : vector<1x32xf32> to vector<1xf32>
    %316 = vector.shape_cast %315 : vector<1xf32> to vector<1x1xf32>
    %cst_140 = arith.constant 3.200000e+01 : f32
    %317 = vector.broadcast %cst_140 : f32 to vector<1x1xf32>
    %318 = arith.divf %316, %317 : vector<1x1xf32>
    %319 = vector.broadcast %311 : vector<1x1xf32> to vector<1x32xf32>
    %320 = arith.subf %307, %319 : vector<1x32xf32>
    %cst_141 = arith.constant 9.99999974E-6 : f32
    %321 = vector.broadcast %cst_141 : f32 to vector<1x1xf32>
    %322 = arith.addf %318, %321 : vector<1x1xf32>
    %323 = math.rsqrt %322 : vector<1x1xf32>
    %324 = vector.broadcast %323 : vector<1x1xf32> to vector<1x32xf32>
    %325 = arith.mulf %320, %324 : vector<1x32xf32>
    %326 = arith.mulf %325, %16 : vector<1x32xf32>
    %327 = arith.addf %326, %17 : vector<1x32xf32>
    %cst_142 = arith.constant dense<0.000000e+00> : vector<1x32xf32>
    %328 = tpu.matmul %327, %18, %cst_142 {dimension_numbers = #tpu.dot_dimension_numbers<[1], [0], [0], [1], [0, 0, 1, 1], [], []>} : vector<1x32xf32>, vector<32x32xf32>, vector<1x32xf32> -> vector<1x32xf32>
    %329 = arith.addf %328, %19 : vector<1x32xf32>
    %cst_143 = arith.constant 0.000000e+00 : f32
    %330 = vector.broadcast %cst_143 : f32 to vector<1x32xf32>
    %331 = arith.cmpf ogt, %329, %330 : vector<1x32xf32>
    %cst_144 = arith.constant 0.00999999977 : f32
    %332 = vector.broadcast %cst_144 : f32 to vector<1x32xf32>
    %333 = arith.mulf %332, %329 : vector<1x32xf32>
    %334 = arith.select %331, %329, %333 : vector<1x32xi1>, vector<1x32xf32>
    %cst_145 = arith.constant dense<0.000000e+00> : vector<1xf32>
    %335 = vector.multi_reduction <add>, %334, %cst_145 [1] : vector<1x32xf32> to vector<1xf32>
    %336 = vector.shape_cast %335 : vector<1xf32> to vector<1x1xf32>
    %cst_146 = arith.constant 3.200000e+01 : f32
    %337 = vector.broadcast %cst_146 : f32 to vector<1x1xf32>
    %338 = arith.divf %336, %337 : vector<1x1xf32>
    %339 = vector.broadcast %338 : vector<1x1xf32> to vector<1x32xf32>
    %340 = arith.subf %334, %339 : vector<1x32xf32>
    %341 = arith.mulf %340, %340 : vector<1x32xf32>
    %cst_147 = arith.constant dense<0.000000e+00> : vector<1xf32>
    %342 = vector.multi_reduction <add>, %341, %cst_147 [1] : vector<1x32xf32> to vector<1xf32>
    %343 = vector.shape_cast %342 : vector<1xf32> to vector<1x1xf32>
    %cst_148 = arith.constant 3.200000e+01 : f32
    %344 = vector.broadcast %cst_148 : f32 to vector<1x1xf32>
    %345 = arith.divf %343, %344 : vector<1x1xf32>
    %346 = vector.broadcast %338 : vector<1x1xf32> to vector<1x32xf32>
    %347 = arith.subf %334, %346 : vector<1x32xf32>
    %cst_149 = arith.constant 9.99999974E-6 : f32
    %348 = vector.broadcast %cst_149 : f32 to vector<1x1xf32>
    %349 = arith.addf %345, %348 : vector<1x1xf32>
    %350 = math.rsqrt %349 : vector<1x1xf32>
    %351 = vector.broadcast %350 : vector<1x1xf32> to vector<1x32xf32>
    %352 = arith.mulf %347, %351 : vector<1x32xf32>
    %353 = arith.mulf %352, %20 : vector<1x32xf32>
    %354 = arith.addf %353, %21 : vector<1x32xf32>
    %cst_150 = arith.constant dense<0.000000e+00> : vector<1x32xf32>
    %355 = tpu.matmul %354, %22, %cst_150 {dimension_numbers = #tpu.dot_dimension_numbers<[1], [0], [0], [1], [0, 0, 1, 1], [], []>} : vector<1x32xf32>, vector<32x32xf32>, vector<1x32xf32> -> vector<1x32xf32>
    %356 = arith.addf %355, %23 : vector<1x32xf32>
    %357 = vector.extract_strided_slice %356 {offsets = [0, 0], sizes = [1, 16], strides = [1, 1]} : vector<1x32xf32> to vector<1x16xf32>
    %358 = vector.extract_strided_slice %356 {offsets = [0, 16], sizes = [1, 16], strides = [1, 1]} : vector<1x32xf32> to vector<1x16xf32>
    %c0_151 = arith.constant 0 : index
    %c0_152 = arith.constant 0 : index
    %c0_153 = arith.constant 0 : index
    %359 = vector.load %arg8[%c0_151, %c0_152, %c0_153] : memref<2x1x16xf32, #tpu.memory_space<vmem>>, vector<1x1x16xf32>
    %360 = vector.shape_cast %359 : vector<1x1x16xf32> to vector<1x16xf32>
    %cst_154 = arith.constant 5.000000e-01 : f32
    %361 = vector.broadcast %cst_154 : f32 to vector<1x16xf32>
    %362 = arith.mulf %361, %358 : vector<1x16xf32>
    %363 = math.exp %362 : vector<1x16xf32>
    %364 = arith.mulf %360, %363 : vector<1x16xf32>
    %365 = arith.addf %364, %357 : vector<1x16xf32>
    %c0_155 = arith.constant 0 : index
    %c0_156 = arith.constant 0 : index
    %c0_157 = arith.constant 0 : index
    %366 = vector.load %arg34[%c0_155, %c0_156, %c0_157] : memref<2x1x80xf32, #tpu.memory_space<vmem>>, vector<1x1x32xf32>
    %367 = vector.shape_cast %366 : vector<1x1x32xf32> to vector<1x32xf32>
    %368 = vector.shape_cast %307 : vector<1x32xf32> to vector<1x1x32xf32>
    tpu.vector_store %arg34[%c0_155, %c0_156, %c0_157], %368 {strides = array<i32>} : memref<2x1x80xf32, #tpu.memory_space<vmem>>, vector<1x1x32xf32>,
    %c0_158 = arith.constant 0 : index
    %c0_159 = arith.constant 0 : index
    %c32 = arith.constant 32 : index
    %369 = vector.load %arg34[%c0_158, %c0_159, %c32] : memref<2x1x80xf32, #tpu.memory_space<vmem>>, vector<1x1x16xf32>
    %370 = vector.shape_cast %369 : vector<1x1x16xf32> to vector<1x16xf32>
    %371 = vector.shape_cast %357 : vector<1x16xf32> to vector<1x1x16xf32>
    tpu.vector_store %arg34[%c0_158, %c0_159, %c32], %371 {strides = array<i32>} : memref<2x1x80xf32, #tpu.memory_space<vmem>>, vector<1x1x16xf32>,
    %c0_160 = arith.constant 0 : index
    %c0_161 = arith.constant 0 : index
    %c48 = arith.constant 48 : index
    %372 = vector.load %arg34[%c0_160, %c0_161, %c48] : memref<2x1x80xf32, #tpu.memory_space<vmem>>, vector<1x1x16xf32>
    %373 = vector.shape_cast %372 : vector<1x1x16xf32> to vector<1x16xf32>
    %374 = vector.shape_cast %358 : vector<1x16xf32> to vector<1x1x16xf32>
    tpu.vector_store %arg34[%c0_160, %c0_161, %c48], %374 {strides = array<i32>} : memref<2x1x80xf32, #tpu.memory_space<vmem>>, vector<1x1x16xf32>,
    %c0_162 = arith.constant 0 : index
    %c0_163 = arith.constant 0 : index
    %c64 = arith.constant 64 : index
    %375 = vector.load %arg34[%c0_162, %c0_163, %c64] : memref<2x1x80xf32, #tpu.memory_space<vmem>>, vector<1x1x16xf32>
    %376 = vector.shape_cast %375 : vector<1x1x16xf32> to vector<1x16xf32>
    %377 = vector.shape_cast %365 : vector<1x16xf32> to vector<1x1x16xf32>
    tpu.vector_store %arg34[%c0_162, %c0_163, %c64], %377 {strides = array<i32>} : memref<2x1x80xf32, #tpu.memory_space<vmem>>, vector<1x1x16xf32>,
    %378 = vector.extract_strided_slice %32 {offsets = [8, 0], sizes = [8, 32], strides = [1, 1]} : vector<16x32xf32> to vector<8x32xf32>
    %379 = vector.extract_strided_slice %41 {offsets = [64, 0], sizes = [64, 16], strides = [1, 1]} : vector<128x16xf32> to vector<64x16xf32>
    %c1_164 = arith.constant 1 : index
    %c0_165 = arith.constant 0 : index
    %c0_166 = arith.constant 0 : index
    %380 = vector.load %arg2[%c1_164, %c0_165, %c0_166] : memref<2x4x8xf32, #tpu.memory_space<vmem>>, vector<1x4x8xf32>
    %381 = vector.shape_cast %380 : vector<1x4x8xf32> to vector<4x8xf32>
    %cst_167 = arith.constant dense<0.000000e+00> : vector<4x32xf32>
    %382 = tpu.matmul %381, %378, %cst_167 {dimension_numbers = #tpu.dot_dimension_numbers<[1], [0], [0], [1], [0, 0, 1, 1], [], []>} : vector<4x8xf32>, vector<8x32xf32>, vector<4x32xf32> -> vector<4x32xf32>
    %c1_168 = arith.constant 1 : index
    %c0_169 = arith.constant 0 : index
    %c0_170 = arith.constant 0 : index
    %383 = vector.load %arg3[%c1_168, %c0_169, %c0_170] : memref<2x16x64xf32, #tpu.memory_space<vmem>>, vector<1x16x64xf32>
    %384 = vector.shape_cast %383 : vector<1x16x64xf32> to vector<16x64xf32>
    %cst_171 = arith.constant dense<0.000000e+00> : vector<16x16xf32>
    %385 = tpu.matmul %384, %379, %cst_171 {dimension_numbers = #tpu.dot_dimension_numbers<[1], [0], [0], [1], [0, 0, 1, 1], [], []>} : vector<16x64xf32>, vector<64x16xf32>, vector<16x16xf32> -> vector<16x16xf32>
    %cst_172 = arith.constant dense<0.000000e+00> : vector<4x32xf32>
    %386 = tpu.matmul %382, %4, %cst_172 {dimension_numbers = #tpu.dot_dimension_numbers<[1], [0], [0], [1], [0, 0, 1, 1], [], []>} : vector<4x32xf32>, vector<32x32xf32>, vector<4x32xf32> -> vector<4x32xf32>
    %387 = vector.broadcast %5 : vector<1x32xf32> to vector<4x32xf32>
    %388 = arith.addf %386, %387 : vector<4x32xf32>
    %cst_173 = arith.constant 0.000000e+00 : f32
    %389 = vector.broadcast %cst_173 : f32 to vector<4x32xf32>
    %390 = arith.cmpf ogt, %388, %389 : vector<4x32xf32>
    %cst_174 = arith.constant 0.00999999977 : f32
    %391 = vector.broadcast %cst_174 : f32 to vector<4x32xf32>
    %392 = arith.mulf %391, %388 : vector<4x32xf32>
    %393 = arith.select %390, %388, %392 : vector<4x32xi1>, vector<4x32xf32>
    %cst_175 = arith.constant dense<0.000000e+00> : vector<16x16xf32>
    %394 = tpu.matmul %385, %6, %cst_175 {dimension_numbers = #tpu.dot_dimension_numbers<[1], [0], [0], [1], [0, 0, 1, 1], [], []>} : vector<16x16xf32>, vector<16x16xf32>, vector<16x16xf32> -> vector<16x16xf32>
    %395 = vector.broadcast %7 : vector<1x16xf32> to vector<16x16xf32>
    %396 = arith.addf %394, %395 : vector<16x16xf32>
    %cst_176 = arith.constant 0.000000e+00 : f32
    %397 = vector.broadcast %cst_176 : f32 to vector<16x16xf32>
    %398 = arith.cmpf ogt, %396, %397 : vector<16x16xf32>
    %cst_177 = arith.constant 0.00999999977 : f32
    %399 = vector.broadcast %cst_177 : f32 to vector<16x16xf32>
    %400 = arith.mulf %399, %396 : vector<16x16xf32>
    %401 = arith.select %398, %396, %400 : vector<16x16xi1>, vector<16x16xf32>
    %c1_178 = arith.constant 1 : index
    %c0_179 = arith.constant 0 : index
    %c0_180 = arith.constant 0 : index
    %402 = vector.load %arg4[%c1_178, %c0_179, %c0_180] : memref<2x4x4xf32, #tpu.memory_space<vmem>>, vector<1x4x4xf32>
    %403 = vector.shape_cast %402 : vector<1x4x4xf32> to vector<4x4xf32>
    %cst_181 = arith.constant dense<0.000000e+00> : vector<4x32xf32>
    %404 = tpu.matmul %403, %393, %cst_181 {dimension_numbers = #tpu.dot_dimension_numbers<[1], [0], [0], [1], [0, 0, 1, 1], [], []>} : vector<4x4xf32>, vector<4x32xf32>, vector<4x32xf32> -> vector<4x32xf32>
    %c1_182 = arith.constant 1 : index
    %c0_183 = arith.constant 0 : index
    %c0_184 = arith.constant 0 : index
    %405 = vector.load %arg5[%c1_182, %c0_183, %c0_184] : memref<2x16x16xf32, #tpu.memory_space<vmem>>, vector<1x16x16xf32>
    %406 = vector.shape_cast %405 : vector<1x16x16xf32> to vector<16x16xf32>
    %cst_185 = arith.constant dense<0.000000e+00> : vector<16x16xf32>
    %407 = tpu.matmul %406, %401, %cst_185 {dimension_numbers = #tpu.dot_dimension_numbers<[1], [0], [0], [1], [0, 0, 1, 1], [], []>} : vector<16x16xf32>, vector<16x16xf32>, vector<16x16xf32> -> vector<16x16xf32>
    %c1_186 = arith.constant 1 : index
    %c0_187 = arith.constant 0 : index
    %c0_188 = arith.constant 0 : index
    %408 = vector.load %arg6[%c1_186, %c0_187, %c0_188] : memref<2x4x10xf32, #tpu.memory_space<vmem>>, vector<1x4x10xf32>
    %409 = vector.shape_cast %408 : vector<1x4x10xf32> to vector<4x10xf32>
    %cst_189 = arith.constant dense<0.000000e+00> : vector<4x32xf32>
    %410 = tpu.matmul %409, %8, %cst_189 {dimension_numbers = #tpu.dot_dimension_numbers<[1], [0], [0], [1], [0, 0, 1, 1], [], []>} : vector<4x10xf32>, vector<10x32xf32>, vector<4x32xf32> -> vector<4x32xf32>
    %411 = arith.addf %410, %404 : vector<4x32xf32>
    %c1_190 = arith.constant 1 : index
    %c0_191 = arith.constant 0 : index
    %c0_192 = arith.constant 0 : index
    %412 = vector.load %arg7[%c1_190, %c0_191, %c0_192] : memref<2x16x66xf32, #tpu.memory_space<vmem>>, vector<1x16x66xf32>
    %413 = vector.shape_cast %412 : vector<1x16x66xf32> to vector<16x66xf32>
    %cst_193 = arith.constant dense<0.000000e+00> : vector<16x16xf32>
    %414 = tpu.matmul %413, %9, %cst_193 {dimension_numbers = #tpu.dot_dimension_numbers<[1], [0], [0], [1], [0, 0, 1, 1], [], []>} : vector<16x66xf32>, vector<66x16xf32>, vector<16x16xf32> -> vector<16x16xf32>
    %415 = arith.addf %414, %407 : vector<16x16xf32>
    %c1_194 = arith.constant 1 : index
    %c0_195 = arith.constant 0 : index
    %c0_196 = arith.constant 0 : index
    %416 = vector.load %arg35[%c1_194, %c0_195, %c0_196] : memref<2x4x32xf32, #tpu.memory_space<vmem>>, vector<1x4x32xf32>
    %417 = vector.shape_cast %416 : vector<1x4x32xf32> to vector<4x32xf32>
    %418 = vector.shape_cast %404 : vector<4x32xf32> to vector<1x4x32xf32>
    tpu.vector_store %arg35[%c1_194, %c0_195, %c0_196], %418 {strides = array<i32>} : memref<2x4x32xf32, #tpu.memory_space<vmem>>, vector<1x4x32xf32>,
    %c1_197 = arith.constant 1 : index
    %c0_198 = arith.constant 0 : index
    %c0_199 = arith.constant 0 : index
    %419 = vector.load %arg36[%c1_197, %c0_198, %c0_199] : memref<2x16x16xf32, #tpu.memory_space<vmem>>, vector<1x16x16xf32>
    %420 = vector.shape_cast %419 : vector<1x16x16xf32> to vector<16x16xf32>
    %421 = vector.shape_cast %407 : vector<16x16xf32> to vector<1x16x16xf32>
    tpu.vector_store %arg36[%c1_197, %c0_198, %c0_199], %421 {strides = array<i32>} : memref<2x16x16xf32, #tpu.memory_space<vmem>>, vector<1x16x16xf32>,
    %c1_200 = arith.constant 1 : index
    %c0_201 = arith.constant 0 : index
    %c0_202 = arith.constant 0 : index
    %422 = vector.load %arg37[%c1_200, %c0_201, %c0_202] : memref<2x16x16xf32, #tpu.memory_space<vmem>>, vector<1x16x16xf32>
    %423 = vector.shape_cast %422 : vector<1x16x16xf32> to vector<16x16xf32>
    %424 = vector.shape_cast %415 : vector<16x16xf32> to vector<1x16x16xf32>
    tpu.vector_store %arg37[%c1_200, %c0_201, %c0_202], %424 {strides = array<i32>} : memref<2x16x16xf32, #tpu.memory_space<vmem>>, vector<1x16x16xf32>,
    %c3_i32_203 = arith.constant 3 : i32
    %425 = vector.broadcast %c3_i32_203 : i32 to vector<4x1xi32>
    %426 = arith.cmpi sle, %42, %425 : vector<4x1xi32>
    %427 = arith.extui %426 : vector<4x1xi1> to vector<4x1xi32>
    %428 = arith.sitofp %427 : vector<4x1xi32> to vector<4x1xf32>
    %429 = vector.broadcast %428 : vector<4x1xf32> to vector<4x32xf32>
    %430 = arith.mulf %411, %429 : vector<4x32xf32>
    %cst_204 = arith.constant dense<0.000000e+00> : vector<32xf32>
    %431 = vector.multi_reduction <add>, %430, %cst_204 [0] : vector<4x32xf32> to vector<32xf32>
    %432 = vector.shape_cast %431 : vector<32xf32> to vector<1x32xf32>
    %cst_205 = arith.constant 2.500000e-01 : f32
    %433 = vector.broadcast %cst_205 : f32 to vector<1x32xf32>
    %434 = arith.mulf %432, %433 : vector<1x32xf32>
    %cst_206 = arith.constant dense<0.000000e+00> : vector<1x96xf32>
    %435 = tpu.matmul %434, %10, %cst_206 {dimension_numbers = #tpu.dot_dimension_numbers<[1], [0], [0], [1], [0, 0, 1, 1], [], []>} : vector<1x32xf32>, vector<32x96xf32>, vector<1x96xf32> -> vector<1x96xf32>
    %436 = arith.addf %435, %12 : vector<1x96xf32>
    %cst_207 = arith.constant dense<0.000000e+00> : vector<1x96xf32>
    %437 = tpu.matmul %14, %11, %cst_207 {dimension_numbers = #tpu.dot_dimension_numbers<[1], [0], [0], [1], [0, 0, 1, 1], [], []>} : vector<1x32xf32>, vector<32x96xf32>, vector<1x96xf32> -> vector<1x96xf32>
    %438 = arith.addf %437, %13 : vector<1x96xf32>
    %439 = vector.extract_strided_slice %436 {offsets = [0, 0], sizes = [1, 32], strides = [1, 1]} : vector<1x96xf32> to vector<1x32xf32>
    %440 = vector.extract_strided_slice %438 {offsets = [0, 0], sizes = [1, 32], strides = [1, 1]} : vector<1x96xf32> to vector<1x32xf32>
    %441 = arith.addf %439, %440 : vector<1x32xf32>
    %442 = arith.negf %441 : vector<1x32xf32>
    %443 = math.exp %442 : vector<1x32xf32>
    %cst_208 = arith.constant 1.000000e+00 : f32
    %444 = vector.broadcast %cst_208 : f32 to vector<1x32xf32>
    %445 = arith.addf %444, %443 : vector<1x32xf32>
    %446 = arith.divf %444, %445 : vector<1x32xf32>
    %447 = vector.extract_strided_slice %436 {offsets = [0, 32], sizes = [1, 32], strides = [1, 1]} : vector<1x96xf32> to vector<1x32xf32>
    %448 = vector.extract_strided_slice %438 {offsets = [0, 32], sizes = [1, 32], strides = [1, 1]} : vector<1x96xf32> to vector<1x32xf32>
    %449 = arith.addf %447, %448 : vector<1x32xf32>
    %450 = arith.negf %449 : vector<1x32xf32>
    %451 = math.exp %450 : vector<1x32xf32>
    %cst_209 = arith.constant 1.000000e+00 : f32
    %452 = vector.broadcast %cst_209 : f32 to vector<1x32xf32>
    %453 = arith.addf %452, %451 : vector<1x32xf32>
    %454 = arith.divf %452, %453 : vector<1x32xf32>
    %455 = vector.extract_strided_slice %436 {offsets = [0, 64], sizes = [1, 32], strides = [1, 1]} : vector<1x96xf32> to vector<1x32xf32>
    %456 = vector.extract_strided_slice %438 {offsets = [0, 64], sizes = [1, 32], strides = [1, 1]} : vector<1x96xf32> to vector<1x32xf32>
    %457 = arith.mulf %446, %456 : vector<1x32xf32>
    %458 = arith.addf %455, %457 : vector<1x32xf32>
    %459 = math.tanh %458 : vector<1x32xf32>
    %cst_210 = arith.constant 1.000000e+00 : f32
    %460 = vector.broadcast %cst_210 : f32 to vector<1x32xf32>
    %461 = arith.subf %460, %454 : vector<1x32xf32>
    %462 = arith.mulf %461, %459 : vector<1x32xf32>
    %463 = arith.mulf %454, %14 : vector<1x32xf32>
    %464 = arith.addf %462, %463 : vector<1x32xf32>
    %c1_211 = arith.constant 1 : index
    %c3_212 = arith.constant 3 : index
    %465 = memref.load %arg9[%c1_211, %c3_212] : memref<2x4xf32, #tpu.memory_space<smem>>
    %466 = vector.broadcast %465 : f32 to vector<1x32xf32>
    %467 = arith.mulf %464, %466 : vector<1x32xf32>
    %cst_213 = arith.constant 1.000000e+00 : f32
    %468 = arith.subf %cst_213, %465 : f32
    %469 = vector.broadcast %468 : f32 to vector<1x32xf32>
    %470 = arith.mulf %14, %469 : vector<1x32xf32>
    %471 = arith.addf %467, %470 : vector<1x32xf32>
    %c2_i32_214 = arith.constant 2 : i32
    %472 = vector.broadcast %c2_i32_214 : i32 to vector<4x1xi32>
    %473 = arith.cmpi sle, %42, %472 : vector<4x1xi32>
    %474 = arith.extui %473 : vector<4x1xi1> to vector<4x1xi32>
    %475 = arith.sitofp %474 : vector<4x1xi32> to vector<4x1xf32>
    %476 = vector.broadcast %475 : vector<4x1xf32> to vector<4x32xf32>
    %477 = arith.mulf %411, %476 : vector<4x32xf32>
    %cst_215 = arith.constant dense<0.000000e+00> : vector<32xf32>
    %478 = vector.multi_reduction <add>, %477, %cst_215 [0] : vector<4x32xf32> to vector<32xf32>
    %479 = vector.shape_cast %478 : vector<32xf32> to vector<1x32xf32>
    %cst_216 = arith.constant 0.333333343 : f32
    %480 = vector.broadcast %cst_216 : f32 to vector<1x32xf32>
    %481 = arith.mulf %479, %480 : vector<1x32xf32>
    %cst_217 = arith.constant dense<0.000000e+00> : vector<1x96xf32>
    %482 = tpu.matmul %481, %10, %cst_217 {dimension_numbers = #tpu.dot_dimension_numbers<[1], [0], [0], [1], [0, 0, 1, 1], [], []>} : vector<1x32xf32>, vector<32x96xf32>, vector<1x96xf32> -> vector<1x96xf32>
    %483 = arith.addf %482, %12 : vector<1x96xf32>
    %cst_218 = arith.constant dense<0.000000e+00> : vector<1x96xf32>
    %484 = tpu.matmul %471, %11, %cst_218 {dimension_numbers = #tpu.dot_dimension_numbers<[1], [0], [0], [1], [0, 0, 1, 1], [], []>} : vector<1x32xf32>, vector<32x96xf32>, vector<1x96xf32> -> vector<1x96xf32>
    %485 = arith.addf %484, %13 : vector<1x96xf32>
    %486 = vector.extract_strided_slice %483 {offsets = [0, 0], sizes = [1, 32], strides = [1, 1]} : vector<1x96xf32> to vector<1x32xf32>
    %487 = vector.extract_strided_slice %485 {offsets = [0, 0], sizes = [1, 32], strides = [1, 1]} : vector<1x96xf32> to vector<1x32xf32>
    %488 = arith.addf %486, %487 : vector<1x32xf32>
    %489 = arith.negf %488 : vector<1x32xf32>
    %490 = math.exp %489 : vector<1x32xf32>
    %cst_219 = arith.constant 1.000000e+00 : f32
    %491 = vector.broadcast %cst_219 : f32 to vector<1x32xf32>
    %492 = arith.addf %491, %490 : vector<1x32xf32>
    %493 = arith.divf %491, %492 : vector<1x32xf32>
    %494 = vector.extract_strided_slice %483 {offsets = [0, 32], sizes = [1, 32], strides = [1, 1]} : vector<1x96xf32> to vector<1x32xf32>
    %495 = vector.extract_strided_slice %485 {offsets = [0, 32], sizes = [1, 32], strides = [1, 1]} : vector<1x96xf32> to vector<1x32xf32>
    %496 = arith.addf %494, %495 : vector<1x32xf32>
    %497 = arith.negf %496 : vector<1x32xf32>
    %498 = math.exp %497 : vector<1x32xf32>
    %cst_220 = arith.constant 1.000000e+00 : f32
    %499 = vector.broadcast %cst_220 : f32 to vector<1x32xf32>
    %500 = arith.addf %499, %498 : vector<1x32xf32>
    %501 = arith.divf %499, %500 : vector<1x32xf32>
    %502 = vector.extract_strided_slice %483 {offsets = [0, 64], sizes = [1, 32], strides = [1, 1]} : vector<1x96xf32> to vector<1x32xf32>
    %503 = vector.extract_strided_slice %485 {offsets = [0, 64], sizes = [1, 32], strides = [1, 1]} : vector<1x96xf32> to vector<1x32xf32>
    %504 = arith.mulf %493, %503 : vector<1x32xf32>
    %505 = arith.addf %502, %504 : vector<1x32xf32>
    %506 = math.tanh %505 : vector<1x32xf32>
    %cst_221 = arith.constant 1.000000e+00 : f32
    %507 = vector.broadcast %cst_221 : f32 to vector<1x32xf32>
    %508 = arith.subf %507, %501 : vector<1x32xf32>
    %509 = arith.mulf %508, %506 : vector<1x32xf32>
    %510 = arith.mulf %501, %471 : vector<1x32xf32>
    %511 = arith.addf %509, %510 : vector<1x32xf32>
    %c1_222 = arith.constant 1 : index
    %c2_223 = arith.constant 2 : index
    %512 = memref.load %arg9[%c1_222, %c2_223] : memref<2x4xf32, #tpu.memory_space<smem>>
    %513 = vector.broadcast %512 : f32 to vector<1x32xf32>
    %514 = arith.mulf %511, %513 : vector<1x32xf32>
    %cst_224 = arith.constant 1.000000e+00 : f32
    %515 = arith.subf %cst_224, %512 : f32
    %516 = vector.broadcast %515 : f32 to vector<1x32xf32>
    %517 = arith.mulf %471, %516 : vector<1x32xf32>
    %518 = arith.addf %514, %517 : vector<1x32xf32>
    %c1_i32_225 = arith.constant 1 : i32
    %519 = vector.broadcast %c1_i32_225 : i32 to vector<4x1xi32>
    %520 = arith.cmpi sle, %42, %519 : vector<4x1xi32>
    %521 = arith.extui %520 : vector<4x1xi1> to vector<4x1xi32>
    %522 = arith.sitofp %521 : vector<4x1xi32> to vector<4x1xf32>
    %523 = vector.broadcast %522 : vector<4x1xf32> to vector<4x32xf32>
    %524 = arith.mulf %411, %523 : vector<4x32xf32>
    %cst_226 = arith.constant dense<0.000000e+00> : vector<32xf32>
    %525 = vector.multi_reduction <add>, %524, %cst_226 [0] : vector<4x32xf32> to vector<32xf32>
    %526 = vector.shape_cast %525 : vector<32xf32> to vector<1x32xf32>
    %cst_227 = arith.constant 5.000000e-01 : f32
    %527 = vector.broadcast %cst_227 : f32 to vector<1x32xf32>
    %528 = arith.mulf %526, %527 : vector<1x32xf32>
    %cst_228 = arith.constant dense<0.000000e+00> : vector<1x96xf32>
    %529 = tpu.matmul %528, %10, %cst_228 {dimension_numbers = #tpu.dot_dimension_numbers<[1], [0], [0], [1], [0, 0, 1, 1], [], []>} : vector<1x32xf32>, vector<32x96xf32>, vector<1x96xf32> -> vector<1x96xf32>
    %530 = arith.addf %529, %12 : vector<1x96xf32>
    %cst_229 = arith.constant dense<0.000000e+00> : vector<1x96xf32>
    %531 = tpu.matmul %518, %11, %cst_229 {dimension_numbers = #tpu.dot_dimension_numbers<[1], [0], [0], [1], [0, 0, 1, 1], [], []>} : vector<1x32xf32>, vector<32x96xf32>, vector<1x96xf32> -> vector<1x96xf32>
    %532 = arith.addf %531, %13 : vector<1x96xf32>
    %533 = vector.extract_strided_slice %530 {offsets = [0, 0], sizes = [1, 32], strides = [1, 1]} : vector<1x96xf32> to vector<1x32xf32>
    %534 = vector.extract_strided_slice %532 {offsets = [0, 0], sizes = [1, 32], strides = [1, 1]} : vector<1x96xf32> to vector<1x32xf32>
    %535 = arith.addf %533, %534 : vector<1x32xf32>
    %536 = arith.negf %535 : vector<1x32xf32>
    %537 = math.exp %536 : vector<1x32xf32>
    %cst_230 = arith.constant 1.000000e+00 : f32
    %538 = vector.broadcast %cst_230 : f32 to vector<1x32xf32>
    %539 = arith.addf %538, %537 : vector<1x32xf32>
    %540 = arith.divf %538, %539 : vector<1x32xf32>
    %541 = vector.extract_strided_slice %530 {offsets = [0, 32], sizes = [1, 32], strides = [1, 1]} : vector<1x96xf32> to vector<1x32xf32>
    %542 = vector.extract_strided_slice %532 {offsets = [0, 32], sizes = [1, 32], strides = [1, 1]} : vector<1x96xf32> to vector<1x32xf32>
    %543 = arith.addf %541, %542 : vector<1x32xf32>
    %544 = arith.negf %543 : vector<1x32xf32>
    %545 = math.exp %544 : vector<1x32xf32>
    %cst_231 = arith.constant 1.000000e+00 : f32
    %546 = vector.broadcast %cst_231 : f32 to vector<1x32xf32>
    %547 = arith.addf %546, %545 : vector<1x32xf32>
    %548 = arith.divf %546, %547 : vector<1x32xf32>
    %549 = vector.extract_strided_slice %530 {offsets = [0, 64], sizes = [1, 32], strides = [1, 1]} : vector<1x96xf32> to vector<1x32xf32>
    %550 = vector.extract_strided_slice %532 {offsets = [0, 64], sizes = [1, 32], strides = [1, 1]} : vector<1x96xf32> to vector<1x32xf32>
    %551 = arith.mulf %540, %550 : vector<1x32xf32>
    %552 = arith.addf %549, %551 : vector<1x32xf32>
    %553 = math.tanh %552 : vector<1x32xf32>
    %cst_232 = arith.constant 1.000000e+00 : f32
    %554 = vector.broadcast %cst_232 : f32 to vector<1x32xf32>
    %555 = arith.subf %554, %548 : vector<1x32xf32>
    %556 = arith.mulf %555, %553 : vector<1x32xf32>
    %557 = arith.mulf %548, %518 : vector<1x32xf32>
    %558 = arith.addf %556, %557 : vector<1x32xf32>
    %c1_233 = arith.constant 1 : index
    %c1_234 = arith.constant 1 : index
    %559 = memref.load %arg9[%c1_233, %c1_234] : memref<2x4xf32, #tpu.memory_space<smem>>
    %560 = vector.broadcast %559 : f32 to vector<1x32xf32>
    %561 = arith.mulf %558, %560 : vector<1x32xf32>
    %cst_235 = arith.constant 1.000000e+00 : f32
    %562 = arith.subf %cst_235, %559 : f32
    %563 = vector.broadcast %562 : f32 to vector<1x32xf32>
    %564 = arith.mulf %518, %563 : vector<1x32xf32>
    %565 = arith.addf %561, %564 : vector<1x32xf32>
    %c0_i32_236 = arith.constant 0 : i32
    %566 = vector.broadcast %c0_i32_236 : i32 to vector<4x1xi32>
    %567 = arith.cmpi sle, %42, %566 : vector<4x1xi32>
    %568 = arith.extui %567 : vector<4x1xi1> to vector<4x1xi32>
    %569 = arith.sitofp %568 : vector<4x1xi32> to vector<4x1xf32>
    %570 = vector.broadcast %569 : vector<4x1xf32> to vector<4x32xf32>
    %571 = arith.mulf %411, %570 : vector<4x32xf32>
    %cst_237 = arith.constant dense<0.000000e+00> : vector<32xf32>
    %572 = vector.multi_reduction <add>, %571, %cst_237 [0] : vector<4x32xf32> to vector<32xf32>
    %573 = vector.shape_cast %572 : vector<32xf32> to vector<1x32xf32>
    %cst_238 = arith.constant 1.000000e+00 : f32
    %574 = vector.broadcast %cst_238 : f32 to vector<1x32xf32>
    %575 = arith.mulf %573, %574 : vector<1x32xf32>
    %cst_239 = arith.constant dense<0.000000e+00> : vector<1x96xf32>
    %576 = tpu.matmul %575, %10, %cst_239 {dimension_numbers = #tpu.dot_dimension_numbers<[1], [0], [0], [1], [0, 0, 1, 1], [], []>} : vector<1x32xf32>, vector<32x96xf32>, vector<1x96xf32> -> vector<1x96xf32>
    %577 = arith.addf %576, %12 : vector<1x96xf32>
    %cst_240 = arith.constant dense<0.000000e+00> : vector<1x96xf32>
    %578 = tpu.matmul %565, %11, %cst_240 {dimension_numbers = #tpu.dot_dimension_numbers<[1], [0], [0], [1], [0, 0, 1, 1], [], []>} : vector<1x32xf32>, vector<32x96xf32>, vector<1x96xf32> -> vector<1x96xf32>
    %579 = arith.addf %578, %13 : vector<1x96xf32>
    %580 = vector.extract_strided_slice %577 {offsets = [0, 0], sizes = [1, 32], strides = [1, 1]} : vector<1x96xf32> to vector<1x32xf32>
    %581 = vector.extract_strided_slice %579 {offsets = [0, 0], sizes = [1, 32], strides = [1, 1]} : vector<1x96xf32> to vector<1x32xf32>
    %582 = arith.addf %580, %581 : vector<1x32xf32>
    %583 = arith.negf %582 : vector<1x32xf32>
    %584 = math.exp %583 : vector<1x32xf32>
    %cst_241 = arith.constant 1.000000e+00 : f32
    %585 = vector.broadcast %cst_241 : f32 to vector<1x32xf32>
    %586 = arith.addf %585, %584 : vector<1x32xf32>
    %587 = arith.divf %585, %586 : vector<1x32xf32>
    %588 = vector.extract_strided_slice %577 {offsets = [0, 32], sizes = [1, 32], strides = [1, 1]} : vector<1x96xf32> to vector<1x32xf32>
    %589 = vector.extract_strided_slice %579 {offsets = [0, 32], sizes = [1, 32], strides = [1, 1]} : vector<1x96xf32> to vector<1x32xf32>
    %590 = arith.addf %588, %589 : vector<1x32xf32>
    %591 = arith.negf %590 : vector<1x32xf32>
    %592 = math.exp %591 : vector<1x32xf32>
    %cst_242 = arith.constant 1.000000e+00 : f32
    %593 = vector.broadcast %cst_242 : f32 to vector<1x32xf32>
    %594 = arith.addf %593, %592 : vector<1x32xf32>
    %595 = arith.divf %593, %594 : vector<1x32xf32>
    %596 = vector.extract_strided_slice %577 {offsets = [0, 64], sizes = [1, 32], strides = [1, 1]} : vector<1x96xf32> to vector<1x32xf32>
    %597 = vector.extract_strided_slice %579 {offsets = [0, 64], sizes = [1, 32], strides = [1, 1]} : vector<1x96xf32> to vector<1x32xf32>
    %598 = arith.mulf %587, %597 : vector<1x32xf32>
    %599 = arith.addf %596, %598 : vector<1x32xf32>
    %600 = math.tanh %599 : vector<1x32xf32>
    %cst_243 = arith.constant 1.000000e+00 : f32
    %601 = vector.broadcast %cst_243 : f32 to vector<1x32xf32>
    %602 = arith.subf %601, %595 : vector<1x32xf32>
    %603 = arith.mulf %602, %600 : vector<1x32xf32>
    %604 = arith.mulf %595, %565 : vector<1x32xf32>
    %605 = arith.addf %603, %604 : vector<1x32xf32>
    %c1_244 = arith.constant 1 : index
    %c0_245 = arith.constant 0 : index
    %606 = memref.load %arg9[%c1_244, %c0_245] : memref<2x4xf32, #tpu.memory_space<smem>>
    %607 = vector.broadcast %606 : f32 to vector<1x32xf32>
    %608 = arith.mulf %605, %607 : vector<1x32xf32>
    %cst_246 = arith.constant 1.000000e+00 : f32
    %609 = arith.subf %cst_246, %606 : f32
    %610 = vector.broadcast %609 : f32 to vector<1x32xf32>
    %611 = arith.mulf %565, %610 : vector<1x32xf32>
    %612 = arith.addf %608, %611 : vector<1x32xf32>
    %cst_247 = arith.constant dense<0.000000e+00> : vector<1x96xf32>
    %613 = tpu.matmul %15, %10, %cst_247 {dimension_numbers = #tpu.dot_dimension_numbers<[1], [0], [0], [1], [0, 0, 1, 1], [], []>} : vector<1x32xf32>, vector<32x96xf32>, vector<1x96xf32> -> vector<1x96xf32>
    %614 = arith.addf %613, %12 : vector<1x96xf32>
    %cst_248 = arith.constant dense<0.000000e+00> : vector<1x96xf32>
    %615 = tpu.matmul %612, %11, %cst_248 {dimension_numbers = #tpu.dot_dimension_numbers<[1], [0], [0], [1], [0, 0, 1, 1], [], []>} : vector<1x32xf32>, vector<32x96xf32>, vector<1x96xf32> -> vector<1x96xf32>
    %616 = arith.addf %615, %13 : vector<1x96xf32>
    %617 = vector.extract_strided_slice %614 {offsets = [0, 0], sizes = [1, 32], strides = [1, 1]} : vector<1x96xf32> to vector<1x32xf32>
    %618 = vector.extract_strided_slice %616 {offsets = [0, 0], sizes = [1, 32], strides = [1, 1]} : vector<1x96xf32> to vector<1x32xf32>
    %619 = arith.addf %617, %618 : vector<1x32xf32>
    %620 = arith.negf %619 : vector<1x32xf32>
    %621 = math.exp %620 : vector<1x32xf32>
    %cst_249 = arith.constant 1.000000e+00 : f32
    %622 = vector.broadcast %cst_249 : f32 to vector<1x32xf32>
    %623 = arith.addf %622, %621 : vector<1x32xf32>
    %624 = arith.divf %622, %623 : vector<1x32xf32>
    %625 = vector.extract_strided_slice %614 {offsets = [0, 32], sizes = [1, 32], strides = [1, 1]} : vector<1x96xf32> to vector<1x32xf32>
    %626 = vector.extract_strided_slice %616 {offsets = [0, 32], sizes = [1, 32], strides = [1, 1]} : vector<1x96xf32> to vector<1x32xf32>
    %627 = arith.addf %625, %626 : vector<1x32xf32>
    %628 = arith.negf %627 : vector<1x32xf32>
    %629 = math.exp %628 : vector<1x32xf32>
    %cst_250 = arith.constant 1.000000e+00 : f32
    %630 = vector.broadcast %cst_250 : f32 to vector<1x32xf32>
    %631 = arith.addf %630, %629 : vector<1x32xf32>
    %632 = arith.divf %630, %631 : vector<1x32xf32>
    %633 = vector.extract_strided_slice %614 {offsets = [0, 64], sizes = [1, 32], strides = [1, 1]} : vector<1x96xf32> to vector<1x32xf32>
    %634 = vector.extract_strided_slice %616 {offsets = [0, 64], sizes = [1, 32], strides = [1, 1]} : vector<1x96xf32> to vector<1x32xf32>
    %635 = arith.mulf %624, %634 : vector<1x32xf32>
    %636 = arith.addf %633, %635 : vector<1x32xf32>
    %637 = math.tanh %636 : vector<1x32xf32>
    %cst_251 = arith.constant 1.000000e+00 : f32
    %638 = vector.broadcast %cst_251 : f32 to vector<1x32xf32>
    %639 = arith.subf %638, %632 : vector<1x32xf32>
    %640 = arith.mulf %639, %637 : vector<1x32xf32>
    %641 = arith.mulf %632, %612 : vector<1x32xf32>
    %642 = arith.addf %640, %641 : vector<1x32xf32>
    %cst_252 = arith.constant dense<0.000000e+00> : vector<1xf32>
    %643 = vector.multi_reduction <add>, %642, %cst_252 [1] : vector<1x32xf32> to vector<1xf32>
    %644 = vector.shape_cast %643 : vector<1xf32> to vector<1x1xf32>
    %cst_253 = arith.constant 3.200000e+01 : f32
    %645 = vector.broadcast %cst_253 : f32 to vector<1x1xf32>
    %646 = arith.divf %644, %645 : vector<1x1xf32>
    %647 = vector.broadcast %646 : vector<1x1xf32> to vector<1x32xf32>
    %648 = arith.subf %642, %647 : vector<1x32xf32>
    %649 = arith.mulf %648, %648 : vector<1x32xf32>
    %cst_254 = arith.constant dense<0.000000e+00> : vector<1xf32>
    %650 = vector.multi_reduction <add>, %649, %cst_254 [1] : vector<1x32xf32> to vector<1xf32>
    %651 = vector.shape_cast %650 : vector<1xf32> to vector<1x1xf32>
    %cst_255 = arith.constant 3.200000e+01 : f32
    %652 = vector.broadcast %cst_255 : f32 to vector<1x1xf32>
    %653 = arith.divf %651, %652 : vector<1x1xf32>
    %654 = vector.broadcast %646 : vector<1x1xf32> to vector<1x32xf32>
    %655 = arith.subf %642, %654 : vector<1x32xf32>
    %cst_256 = arith.constant 9.99999974E-6 : f32
    %656 = vector.broadcast %cst_256 : f32 to vector<1x1xf32>
    %657 = arith.addf %653, %656 : vector<1x1xf32>
    %658 = math.rsqrt %657 : vector<1x1xf32>
    %659 = vector.broadcast %658 : vector<1x1xf32> to vector<1x32xf32>
    %660 = arith.mulf %655, %659 : vector<1x32xf32>
    %661 = arith.mulf %660, %16 : vector<1x32xf32>
    %662 = arith.addf %661, %17 : vector<1x32xf32>
    %cst_257 = arith.constant dense<0.000000e+00> : vector<1x32xf32>
    %663 = tpu.matmul %662, %18, %cst_257 {dimension_numbers = #tpu.dot_dimension_numbers<[1], [0], [0], [1], [0, 0, 1, 1], [], []>} : vector<1x32xf32>, vector<32x32xf32>, vector<1x32xf32> -> vector<1x32xf32>
    %664 = arith.addf %663, %19 : vector<1x32xf32>
    %cst_258 = arith.constant 0.000000e+00 : f32
    %665 = vector.broadcast %cst_258 : f32 to vector<1x32xf32>
    %666 = arith.cmpf ogt, %664, %665 : vector<1x32xf32>
    %cst_259 = arith.constant 0.00999999977 : f32
    %667 = vector.broadcast %cst_259 : f32 to vector<1x32xf32>
    %668 = arith.mulf %667, %664 : vector<1x32xf32>
    %669 = arith.select %666, %664, %668 : vector<1x32xi1>, vector<1x32xf32>
    %cst_260 = arith.constant dense<0.000000e+00> : vector<1xf32>
    %670 = vector.multi_reduction <add>, %669, %cst_260 [1] : vector<1x32xf32> to vector<1xf32>
    %671 = vector.shape_cast %670 : vector<1xf32> to vector<1x1xf32>
    %cst_261 = arith.constant 3.200000e+01 : f32
    %672 = vector.broadcast %cst_261 : f32 to vector<1x1xf32>
    %673 = arith.divf %671, %672 : vector<1x1xf32>
    %674 = vector.broadcast %673 : vector<1x1xf32> to vector<1x32xf32>
    %675 = arith.subf %669, %674 : vector<1x32xf32>
    %676 = arith.mulf %675, %675 : vector<1x32xf32>
    %cst_262 = arith.constant dense<0.000000e+00> : vector<1xf32>
    %677 = vector.multi_reduction <add>, %676, %cst_262 [1] : vector<1x32xf32> to vector<1xf32>
    %678 = vector.shape_cast %677 : vector<1xf32> to vector<1x1xf32>
    %cst_263 = arith.constant 3.200000e+01 : f32
    %679 = vector.broadcast %cst_263 : f32 to vector<1x1xf32>
    %680 = arith.divf %678, %679 : vector<1x1xf32>
    %681 = vector.broadcast %673 : vector<1x1xf32> to vector<1x32xf32>
    %682 = arith.subf %669, %681 : vector<1x32xf32>
    %cst_264 = arith.constant 9.99999974E-6 : f32
    %683 = vector.broadcast %cst_264 : f32 to vector<1x1xf32>
    %684 = arith.addf %680, %683 : vector<1x1xf32>
    %685 = math.rsqrt %684 : vector<1x1xf32>
    %686 = vector.broadcast %685 : vector<1x1xf32> to vector<1x32xf32>
    %687 = arith.mulf %682, %686 : vector<1x32xf32>
    %688 = arith.mulf %687, %20 : vector<1x32xf32>
    %689 = arith.addf %688, %21 : vector<1x32xf32>
    %cst_265 = arith.constant dense<0.000000e+00> : vector<1x32xf32>
    %690 = tpu.matmul %689, %22, %cst_265 {dimension_numbers = #tpu.dot_dimension_numbers<[1], [0], [0], [1], [0, 0, 1, 1], [], []>} : vector<1x32xf32>, vector<32x32xf32>, vector<1x32xf32> -> vector<1x32xf32>
    %691 = arith.addf %690, %23 : vector<1x32xf32>
    %692 = vector.extract_strided_slice %691 {offsets = [0, 0], sizes = [1, 16], strides = [1, 1]} : vector<1x32xf32> to vector<1x16xf32>
    %693 = vector.extract_strided_slice %691 {offsets = [0, 16], sizes = [1, 16], strides = [1, 1]} : vector<1x32xf32> to vector<1x16xf32>
    %c1_266 = arith.constant 1 : index
    %c0_267 = arith.constant 0 : index
    %c0_268 = arith.constant 0 : index
    %694 = vector.load %arg8[%c1_266, %c0_267, %c0_268] : memref<2x1x16xf32, #tpu.memory_space<vmem>>, vector<1x1x16xf32>
    %695 = vector.shape_cast %694 : vector<1x1x16xf32> to vector<1x16xf32>
    %cst_269 = arith.constant 5.000000e-01 : f32
    %696 = vector.broadcast %cst_269 : f32 to vector<1x16xf32>
    %697 = arith.mulf %696, %693 : vector<1x16xf32>
    %698 = math.exp %697 : vector<1x16xf32>
    %699 = arith.mulf %695, %698 : vector<1x16xf32>
    %700 = arith.addf %699, %692 : vector<1x16xf32>
    %c1_270 = arith.constant 1 : index
    %c0_271 = arith.constant 0 : index
    %c0_272 = arith.constant 0 : index
    %701 = vector.load %arg34[%c1_270, %c0_271, %c0_272] : memref<2x1x80xf32, #tpu.memory_space<vmem>>, vector<1x1x32xf32>
    %702 = vector.shape_cast %701 : vector<1x1x32xf32> to vector<1x32xf32>
    %703 = vector.shape_cast %642 : vector<1x32xf32> to vector<1x1x32xf32>
    tpu.vector_store %arg34[%c1_270, %c0_271, %c0_272], %703 {strides = array<i32>} : memref<2x1x80xf32, #tpu.memory_space<vmem>>, vector<1x1x32xf32>,
    %c1_273 = arith.constant 1 : index
    %c0_274 = arith.constant 0 : index
    %c32_275 = arith.constant 32 : index
    %704 = vector.load %arg34[%c1_273, %c0_274, %c32_275] : memref<2x1x80xf32, #tpu.memory_space<vmem>>, vector<1x1x16xf32>
    %705 = vector.shape_cast %704 : vector<1x1x16xf32> to vector<1x16xf32>
    %706 = vector.shape_cast %692 : vector<1x16xf32> to vector<1x1x16xf32>
    tpu.vector_store %arg34[%c1_273, %c0_274, %c32_275], %706 {strides = array<i32>} : memref<2x1x80xf32, #tpu.memory_space<vmem>>, vector<1x1x16xf32>,
    %c1_276 = arith.constant 1 : index
    %c0_277 = arith.constant 0 : index
    %c48_278 = arith.constant 48 : index
    %707 = vector.load %arg34[%c1_276, %c0_277, %c48_278] : memref<2x1x80xf32, #tpu.memory_space<vmem>>, vector<1x1x16xf32>
    %708 = vector.shape_cast %707 : vector<1x1x16xf32> to vector<1x16xf32>
    %709 = vector.shape_cast %693 : vector<1x16xf32> to vector<1x1x16xf32>
    tpu.vector_store %arg34[%c1_276, %c0_277, %c48_278], %709 {strides = array<i32>} : memref<2x1x80xf32, #tpu.memory_space<vmem>>, vector<1x1x16xf32>,
    %c1_279 = arith.constant 1 : index
    %c0_280 = arith.constant 0 : index
    %c64_281 = arith.constant 64 : index
    %710 = vector.load %arg34[%c1_279, %c0_280, %c64_281] : memref<2x1x80xf32, #tpu.memory_space<vmem>>, vector<1x1x16xf32>
    %711 = vector.shape_cast %710 : vector<1x1x16xf32> to vector<1x16xf32>
    %712 = vector.shape_cast %700 : vector<1x16xf32> to vector<1x1x16xf32>
    tpu.vector_store %arg34[%c1_279, %c0_280, %c64_281], %712 {strides = array<i32>} : memref<2x1x80xf32, #tpu.memory_space<vmem>>, vector<1x1x16xf32>,
    return
  }
}

</mosaic_0001>

<llo_original>
// kernel: eq.43
$region0: #{eq.43}
  %s0 = inlined_call_operand.vmem [shape: s32[2,4,4], index: 0, kind: input, shape index: {}]
  %s1 = inlined_call_operand.vmem [shape: s32[2,16], index: 1, kind: output, shape index: {}]
  $region1: #{eq.43} parent=0
    #allocation0 [shape = 'u8[4096]{0}', space=vmem, size = 0x1000, scoped, tag = 'scoped mem for output reshape']
    #allocation1 [shape = 'u8[8192]{0}', space=vmem, size = 0x2000, scoped, tag = 'scoped mem for input reshape']
    %s3 = sshll.u32 1, 4
    %s4 = ssub.s32 %s3, 1
    %s5 = scalar_lea.vmem %s0, 4
    %v6 = vld [vmem:[%s5] sm:%s4]
    %s7 = scalar_lea.vmem [#allocation1], 8
    %8 = vst [vmem:[%s7] sm:%s4] %v6
    %v9 = vld [vmem:[%s0] sm:%s4]
    %10 = vst [vmem:[#allocation1] sm:%s4] %v9
    %s11 = smov 3
    %v12 = vld [vmem:[#allocation1] ss:$8 sm:%s11]
    %vm13 = vcmask 31744
    %14 = vst.msk [vmem:[#allocation0] sm:$0x3] %vm13, %v12
    %s15 = scalar_lea.vmem [#allocation1], 3
    %s16 = smov 3
    %v17 = vld [vmem:[%s15] ss:$8 sm:%s16]
    %18 = vrot.lane.b32.xlu0 %v17, 12
    %v19 = vpop.permute.xlu0 %18
    %vm20 = vcmask 130144
    %21 = vst.msk [vmem:[#allocation0] sm:$0x3] %vm20, %v19
    %s22 = scalar_lea.vmem [#allocation1], 2
    %s23 = smov 3
    %v24 = vld [vmem:[%s22] ss:$8 sm:%s23]
    %25 = vrot.lane.b32.xlu0 %v24, 8
    %v26 = vpop.permute.xlu0 %25
    %vm27 = vcmask 97344
    %28 = vst.msk [vmem:[#allocation0] sm:$0x3] %vm27, %v26
    %s29 = scalar_lea.vmem [#allocation1], 1
    %s30 = smov 3
    %v31 = vld [vmem:[%s29] ss:$8 sm:%s30]
    %32 = vrot.lane.b32.xlu0 %v31, 4
    %v33 = vpop.permute.xlu0 %32
    %vm34 = vcmask 64544
    %35 = vst.msk [vmem:[#allocation0] sm:$0x3] %vm34, %v33
    %s37 = sshll.u32 1, 2
    %s38 = ssub.s32 %s37, 1
    %v40 = vld [vmem:[#allocation0] sm:%s38]
    %s41 = sshll.u32 1, 2
    %s42 = ssub.s32 %s41, 1
    %43 = vst [vmem:[%s1] sm:%s42] %v40

// kernel: scaf_encoder_forward.1
$region0: #{scaf_encoder_forward.1}
  #allocation0 [shape = 'u32[]', space=smem, size = 0x4, offset = 0x4, fixed_abs, tag = 'smem constant byte address 0x4 - core index']
  #allocation1 [shape = 'u32[144,128]{1,0:T(1,128)}', space=vmem, size = 0x12000, scoped, tag = 'internal scratch']
  %s0 = inlined_call_operand.smem [shape: u32[38], index: -1, kind: input, shape index: {}]
  %s1 = sld [smem:[%s0]]
  %s2 = scalar_lea.smem %s0, 1
  %s3 = sld [smem:[%s2]]
  %s4 = scalar_lea.smem %s0, 2
  %s5 = sld [smem:[%s4]]
  %s6 = scalar_lea.smem %s0, 3
  %s7 = sld [smem:[%s6]]
  %s8 = scalar_lea.smem %s0, 4
  %s9 = sld [smem:[%s8]]
  %s10 = scalar_lea.smem %s0, 5
  %s11 = sld [smem:[%s10]]
  %s12 = scalar_lea.smem %s0, 6
  %s13 = sld [smem:[%s12]]
  %s14 = scalar_lea.smem %s0, 7
  %s15 = sld [smem:[%s14]]
  %s16 = scalar_lea.smem %s0, 8
  %s17 = sld [smem:[%s16]]
  %s18 = scalar_lea.smem %s0, 9
  %s19 = sld [smem:[%s18]]
  %s20 = scalar_lea.smem %s0, 10
  %s21 = sld [smem:[%s20]]
  %s22 = scalar_lea.smem %s0, 11
  %s23 = sld [smem:[%s22]]
  %s24 = scalar_lea.smem %s0, 12
  %s25 = sld [smem:[%s24]]
  %s26 = scalar_lea.smem %s0, 13
  %s27 = sld [smem:[%s26]]
  %s28 = scalar_lea.smem %s0, 14
  %s29 = sld [smem:[%s28]]
  %s30 = scalar_lea.smem %s0, 15
  %s31 = sld [smem:[%s30]]
  %s32 = scalar_lea.smem %s0, 16
  %s33 = sld [smem:[%s32]]
  %s34 = scalar_lea.smem %s0, 17
  %s35 = sld [smem:[%s34]]
  %s36 = scalar_lea.smem %s0, 18
  %s37 = sld [smem:[%s36]]
  %s38 = scalar_lea.smem %s0, 19
  %s39 = sld [smem:[%s38]]
  %s40 = scalar_lea.smem %s0, 20
  %s41 = sld [smem:[%s40]]
  %s42 = scalar_lea.smem %s0, 21
  %s43 = sld [smem:[%s42]]
  %s44 = scalar_lea.smem %s0, 22
  %s45 = sld [smem:[%s44]]
  %s46 = scalar_lea.smem %s0, 23
  %s47 = sld [smem:[%s46]]
  %s48 = scalar_lea.smem %s0, 24
  %s49 = sld [smem:[%s48]]
  %s50 = scalar_lea.smem %s0, 25
  %s51 = sld [smem:[%s50]]
  %s52 = scalar_lea.smem %s0, 26
  %s53 = sld [smem:[%s52]]
  %s54 = scalar_lea.smem %s0, 27
  %s55 = sld [smem:[%s54]]
  %s56 = scalar_lea.smem %s0, 28
  %s57 = sld [smem:[%s56]]
  %s58 = scalar_lea.smem %s0, 29
  %s59 = sld [smem:[%s58]]
  %s60 = scalar_lea.smem %s0, 30
  %s61 = sld [smem:[%s60]]
  %s62 = scalar_lea.smem %s0, 31
  %s63 = sld [smem:[%s62]]
  %s64 = scalar_lea.smem %s0, 32
  %s65 = sld [smem:[%s64]]
  %s66 = scalar_lea.smem %s0, 33
  %s67 = sld [smem:[%s66]]
  %s68 = scalar_lea.smem %s0, 34
  %s69 = sld [smem:[%s68]]
  %s70 = scalar_lea.smem %s0, 35
  %s71 = sld [smem:[%s70]]
  %s72 = scalar_lea.smem %s0, 36
  %s73 = sld [smem:[%s72]]
  %s74 = scalar_lea.smem %s0, 37
  %s75 = sld [smem:[%s74]]
  %76 = xla_tuple %s69, %s71, %s73, %s75
  %s77 = sld [smem:[#allocation0]]
  $region174: #{scaf_encoder_forward.1} parent=0
    _
  %s79 = ssub.s32 1, %s77
  %s80 = scalar_select 0, %s79, %s77
  $region1: #{scaf_encoder_forward.1} parent=0
    #allocation2 [shape = 'u8[1024]{0}', space=smem, size = 0x400, scoped, tag = 'input window, operand 9, single buffered']
    #allocation3 [shape = 's32[1]{0}', space=sflag, size = 0x4, scoped, tag = 'scoped memory for scaf_encoder_forward.1']
    #allocation4 [shape = 's32[1]{0}', space=sflag, size = 0x4, scoped, tag = 'scoped memory for scaf_encoder_forward.1']
    #allocation5 [shape = 'u8[4096]{0}', space=vmem, size = 0x1000, scoped, tag = 'output window, operand 1, single buffered']
    #allocation6 [shape = 'u8[16384]{0}', space=vmem, size = 0x4000, scoped, tag = 'output window, operand 2, single buffered']
    #allocation7 [shape = 's32[1]{0}', space=sflag, size = 0x4, scoped, tag = 'scoped memory for scaf_encoder_forward.1']
    #allocation8 [shape = 'u8[16384]{0}', space=vmem, size = 0x4000, scoped, tag = 'output window, operand 3, single buffered']
    %81 = vsyncpa [#allocation4], 0
    %82 = vsyncpa [#allocation3], 0
    %83 = vsyncpa [#allocation7], 0
    // Predicated region
    $region2: #{scaf_encoder_forward.1} parent=1 // pred_check
      _
    $region3: #{scaf_encoder_forward.1} parent=1 // pred_check_branch
      %85 = sbr.rel (0) target = $region5
    $region4: #{scaf_encoder_forward.1} parent=1 // pred_region
      _
    $region5: #{scaf_encoder_forward.1} parent=1 // pred_fallthru
      _
    // Predicated region
    $region6: #{scaf_encoder_forward.1} parent=1 // pred_check
      _
    $region7: #{scaf_encoder_forward.1} parent=1 // pred_check_branch
      %87 = sbr.rel (0) target = $region9
    $region8: #{scaf_encoder_forward.1} parent=1 // pred_region
      _
    $region9: #{scaf_encoder_forward.1} parent=1 // pred_fallthru
      _
    // Predicated region
    $region10: #{scaf_encoder_forward.1} parent=1 // pred_check
      _
    $region11: #{scaf_encoder_forward.1} parent=1 // pred_check_branch
      %89 = sbr.rel (0) target = $region13
    $region12: #{scaf_encoder_forward.1} parent=1 // pred_region
      _
    $region13: #{scaf_encoder_forward.1} parent=1 // pred_fallthru
      _
    // Predicated region
    $region14: #{scaf_encoder_forward.1} parent=1 // pred_check
      _
    $region15: #{scaf_encoder_forward.1} parent=1 // pred_check_branch
      %91 = sbr.rel (0) target = $region17
    $region16: #{scaf_encoder_forward.1} parent=1 // pred_region
      _
    $region17: #{scaf_encoder_forward.1} parent=1 // pred_fallthru
      _
    // Predicated region
    $region18: #{scaf_encoder_forward.1} parent=1 // pred_check
      _
    $region19: #{scaf_encoder_forward.1} parent=1 // pred_check_branch
      %93 = sbr.rel (0) target = $region21
    $region20: #{scaf_encoder_forward.1} parent=1 // pred_region
      _
    $region21: #{scaf_encoder_forward.1} parent=1 // pred_fallthru
      _
    // Predicated region
    $region22: #{scaf_encoder_forward.1} parent=1 // pred_check
      _
    $region23: #{scaf_encoder_forward.1} parent=1 // pred_check_branch
      %95 = sbr.rel (0) target = $region25
    $region24: #{scaf_encoder_forward.1} parent=1 // pred_region
      _
    $region25: #{scaf_encoder_forward.1} parent=1 // pred_fallthru
      _
    // Predicated region
    $region26: #{scaf_encoder_forward.1} parent=1 // pred_check
      _
    $region27: #{scaf_encoder_forward.1} parent=1 // pred_check_branch
      %97 = sbr.rel (0) target = $region29
    $region28: #{scaf_encoder_forward.1} parent=1 // pred_region
      _
    $region29: #{scaf_encoder_forward.1} parent=1 // pred_fallthru
      _
    // Predicated region
    $region30: #{scaf_encoder_forward.1} parent=1 // pred_check
      _
    $region31: #{scaf_encoder_forward.1} parent=1 // pred_check_branch
      %99 = sbr.rel (0) target = $region33
    $region32: #{scaf_encoder_forward.1} parent=1 // pred_region
      _
    $region33: #{scaf_encoder_forward.1} parent=1 // pred_fallthru
      _
    // Predicated region
    $region34: #{scaf_encoder_forward.1} parent=1 // pred_check
      _
    $region35: #{scaf_encoder_forward.1} parent=1 // pred_check_branch
      %101 = sbr.rel (0) target = $region37
    $region36: #{scaf_encoder_forward.1} parent=1 // pred_region
      _
    $region37: #{scaf_encoder_forward.1} parent=1 // pred_fallthru
      _
    // Predicated region
    $region38: #{scaf_encoder_forward.1} parent=1 // pred_check
      _
    $region39: #{scaf_encoder_forward.1} parent=1 // pred_check_branch
      %103 = sbr.rel (0) target = $region41
    $region40: #{scaf_encoder_forward.1} parent=1 // pred_region
      %s105 = ssub.s32 32, 32
      %106 = vsyncadd [#allocation4], %s105
      %s108 = sshll.u32 %s19, 4
      %s109 = int_to_ptr.vmem [resolvable:$true] %s108
      %111 = dma.vmem_to_smem %s109, 32, [#allocation2], [#allocation4]
    $region41: #{scaf_encoder_forward.1} parent=1 // pred_fallthru
      _
    // Predicated region
    $region42: #{scaf_encoder_forward.1} parent=1 // pred_check
      _
    $region43: #{scaf_encoder_forward.1} parent=1 // pred_check_branch
      %113 = sbr.rel (0) target = $region45
    $region44: #{scaf_encoder_forward.1} parent=1 // pred_region
      _
    $region45: #{scaf_encoder_forward.1} parent=1 // pred_fallthru
      _
    // Predicated region
    $region46: #{scaf_encoder_forward.1} parent=1 // pred_check
      _
    $region47: #{scaf_encoder_forward.1} parent=1 // pred_check_branch
      %115 = sbr.rel (0) target = $region49
    $region48: #{scaf_encoder_forward.1} parent=1 // pred_region
      _
    $region49: #{scaf_encoder_forward.1} parent=1 // pred_fallthru
      _
    // Predicated region
    $region50: #{scaf_encoder_forward.1} parent=1 // pred_check
      _
    $region51: #{scaf_encoder_forward.1} parent=1 // pred_check_branch
      %117 = sbr.rel (0) target = $region53
    $region52: #{scaf_encoder_forward.1} parent=1 // pred_region
      _
    $region53: #{scaf_encoder_forward.1} parent=1 // pred_fallthru
      _
    // Predicated region
    $region54: #{scaf_encoder_forward.1} parent=1 // pred_check
      _
    $region55: #{scaf_encoder_forward.1} parent=1 // pred_check_branch
      %119 = sbr.rel (0) target = $region57
    $region56: #{scaf_encoder_forward.1} parent=1 // pred_region
      _
    $region57: #{scaf_encoder_forward.1} parent=1 // pred_fallthru
      _
    // Predicated region
    $region58: #{scaf_encoder_forward.1} parent=1 // pred_check
      _
    $region59: #{scaf_encoder_forward.1} parent=1 // pred_check_branch
      %121 = sbr.rel (0) target = $region61
    $region60: #{scaf_encoder_forward.1} parent=1 // pred_region
      _
    $region61: #{scaf_encoder_forward.1} parent=1 // pred_fallthru
      _
    // Predicated region
    $region62: #{scaf_encoder_forward.1} parent=1 // pred_check
      _
    $region63: #{scaf_encoder_forward.1} parent=1 // pred_check_branch
      %123 = sbr.rel (0) target = $region65
    $region64: #{scaf_encoder_forward.1} parent=1 // pred_region
      _
    $region65: #{scaf_encoder_forward.1} parent=1 // pred_fallthru
      _
    // Predicated region
    $region66: #{scaf_encoder_forward.1} parent=1 // pred_check
      _
    $region67: #{scaf_encoder_forward.1} parent=1 // pred_check_branch
      %125 = sbr.rel (0) target = $region69
    $region68: #{scaf_encoder_forward.1} parent=1 // pred_region
      _
    $region69: #{scaf_encoder_forward.1} parent=1 // pred_fallthru
      _
    // Predicated region
    $region70: #{scaf_encoder_forward.1} parent=1 // pred_check
      _
    $region71: #{scaf_encoder_forward.1} parent=1 // pred_check_branch
      %127 = sbr.rel (0) target = $region73
    $region72: #{scaf_encoder_forward.1} parent=1 // pred_region
      _
    $region73: #{scaf_encoder_forward.1} parent=1 // pred_fallthru
      _
    // Predicated region
    $region74: #{scaf_encoder_forward.1} parent=1 // pred_check
      _
    $region75: #{scaf_encoder_forward.1} parent=1 // pred_check_branch
      %129 = sbr.rel (0) target = $region77
    $region76: #{scaf_encoder_forward.1} parent=1 // pred_region
      _
    $region77: #{scaf_encoder_forward.1} parent=1 // pred_fallthru
      _
    // Predicated region
    $region78: #{scaf_encoder_forward.1} parent=1 // pred_check
      _
    $region79: #{scaf_encoder_forward.1} parent=1 // pred_check_branch
      %131 = sbr.rel (0) target = $region81
    $region80: #{scaf_encoder_forward.1} parent=1 // pred_region
      _
    $region81: #{scaf_encoder_forward.1} parent=1 // pred_fallthru
      _
    // Predicated region
    $region82: #{scaf_encoder_forward.1} parent=1 // pred_check
      _
    $region83: #{scaf_encoder_forward.1} parent=1 // pred_check_branch
      %133 = sbr.rel (0) target = $region85
    $region84: #{scaf_encoder_forward.1} parent=1 // pred_region
      _
    $region85: #{scaf_encoder_forward.1} parent=1 // pred_fallthru
      _
    // Predicated region
    $region86: #{scaf_encoder_forward.1} parent=1 // pred_check
      _
    $region87: #{scaf_encoder_forward.1} parent=1 // pred_check_branch
      %135 = sbr.rel (0) target = $region89
    $region88: #{scaf_encoder_forward.1} parent=1 // pred_region
      _
    $region89: #{scaf_encoder_forward.1} parent=1 // pred_fallthru
      _
    // Predicated region
    $region90: #{scaf_encoder_forward.1} parent=1 // pred_check
      _
    $region91: #{scaf_encoder_forward.1} parent=1 // pred_check_branch
      %137 = sbr.rel (0) target = $region93
    $region92: #{scaf_encoder_forward.1} parent=1 // pred_region
      _
    $region93: #{scaf_encoder_forward.1} parent=1 // pred_fallthru
      _
    // Predicated region
    $region94: #{scaf_encoder_forward.1} parent=1 // pred_check
      _
    $region95: #{scaf_encoder_forward.1} parent=1 // pred_check_branch
      %139 = sbr.rel (0) target = $region97
    $region96: #{scaf_encoder_forward.1} parent=1 // pred_region
      _
    $region97: #{scaf_encoder_forward.1} parent=1 // pred_fallthru
      _
    // Predicated region
    $region98: #{scaf_encoder_forward.1} parent=1 // pred_check
      _
    $region99: #{scaf_encoder_forward.1} parent=1 // pred_check_branch
      %141 = sbr.rel (0) target = $region101
    $region100: #{scaf_encoder_forward.1} parent=1 // pred_region
      _
    $region101: #{scaf_encoder_forward.1} parent=1 // pred_fallthru
      _
    // Predicated region
    $region102: #{scaf_encoder_forward.1} parent=1 // pred_check
      _
    $region103: #{scaf_encoder_forward.1} parent=1 // pred_check_branch
      %143 = sbr.rel (0) target = $region105
    $region104: #{scaf_encoder_forward.1} parent=1 // pred_region
      _
    $region105: #{scaf_encoder_forward.1} parent=1 // pred_fallthru
      _
    // Predicated region
    $region106: #{scaf_encoder_forward.1} parent=1 // pred_check
      _
    $region107: #{scaf_encoder_forward.1} parent=1 // pred_check_branch
      %145 = sbr.rel (0) target = $region109
    $region108: #{scaf_encoder_forward.1} parent=1 // pred_region
      _
    $region109: #{scaf_encoder_forward.1} parent=1 // pred_fallthru
      _
    // Predicated region
    $region110: #{scaf_encoder_forward.1} parent=1 // pred_check
      _
    $region111: #{scaf_encoder_forward.1} parent=1 // pred_check_branch
      %147 = sbr.rel (0) target = $region113
    $region112: #{scaf_encoder_forward.1} parent=1 // pred_region
      _
    $region113: #{scaf_encoder_forward.1} parent=1 // pred_fallthru
      _
    // Predicated region
    $region114: #{scaf_encoder_forward.1} parent=1 // pred_check
      _
    $region115: #{scaf_encoder_forward.1} parent=1 // pred_check_branch
      %149 = sbr.rel (0) target = $region117
    $region116: #{scaf_encoder_forward.1} parent=1 // pred_region
      _
    $region117: #{scaf_encoder_forward.1} parent=1 // pred_fallthru
      _
    // Predicated region
    $region118: #{scaf_encoder_forward.1} parent=1 // pred_check
      _
    $region119: #{scaf_encoder_forward.1} parent=1 // pred_check_branch
      %151 = sbr.rel (0) target = $region121
    $region120: #{scaf_encoder_forward.1} parent=1 // pred_region
      _
    $region121: #{scaf_encoder_forward.1} parent=1 // pred_fallthru
      _
    // Predicated region
    $region122: #{scaf_encoder_forward.1} parent=1 // pred_check
      _
    $region123: #{scaf_encoder_forward.1} parent=1 // pred_check_branch
      %153 = sbr.rel (0) target = $region125
    $region124: #{scaf_encoder_forward.1} parent=1 // pred_region
      _
    $region125: #{scaf_encoder_forward.1} parent=1 // pred_fallthru
      _
    // Predicated region
    $region126: #{scaf_encoder_forward.1} parent=1 // pred_check
      _
    $region127: #{scaf_encoder_forward.1} parent=1 // pred_check_branch
      %155 = sbr.rel (0) target = $region129
    $region128: #{scaf_encoder_forward.1} parent=1 // pred_region
      _
    $region129: #{scaf_encoder_forward.1} parent=1 // pred_fallthru
      _
    // Predicated region
    $region130: #{scaf_encoder_forward.1} parent=1 // pred_check
      _
    $region131: #{scaf_encoder_forward.1} parent=1 // pred_check_branch
      %157 = sbr.rel (0) target = $region133
    $region132: #{scaf_encoder_forward.1} parent=1 // pred_region
      _
    $region133: #{scaf_encoder_forward.1} parent=1 // pred_fallthru
      _
    // Predicated region
    $region134: #{scaf_encoder_forward.1} parent=1 // pred_check
      _
    $region135: #{scaf_encoder_forward.1} parent=1 // pred_check_branch
      %159 = sbr.rel (0) target = $region137
    $region136: #{scaf_encoder_forward.1} parent=1 // pred_region
      _
    $region137: #{scaf_encoder_forward.1} parent=1 // pred_fallthru
      _
    // Predicated region
    $region138: #{scaf_encoder_forward.1} parent=1 // pred_check
      _
    $region139: #{scaf_encoder_forward.1} parent=1 // pred_check_branch
      %161 = sbr.rel (0) target = $region141
    $region140: #{scaf_encoder_forward.1} parent=1 // pred_region
      %162 = dma.done [#allocation4], 32
    $region141: #{scaf_encoder_forward.1} parent=1 // pred_fallthru
      _
    %163 = sfence
    %v164 = vld [vmem:[%s21] sm:$0xff]
    %v165 = vld [vmem:[%s23] sm:$0x1]
    %v166 = vld [vmem:[%s25] sm:$0xff]
    %v167 = vld [vmem:[%s27] sm:$0x1]
    %v168 = vld [vmem:[%s29] sm:$0xff]
    %v169 = vld [vmem:[%s29 + $0x8] sm:$0xff]
    %v170 = vld [vmem:[%s29 + $0x10] sm:$0xff]
    %v171 = vld [vmem:[%s29 + $0x18] sm:$0xff]
    %v172 = vld [vmem:[%s31] sm:$0x1]
    %v173 = vld [vmem:[%s33] sm:$0xff]
    %v174 = vld [vmem:[%s33 + $0x8] sm:$0xff]
    %v175 = vld [vmem:[%s35] sm:$0x1]
    %v176 = vld [vmem:[%s37] sm:$0xff]
    %v177 = vld [vmem:[%s37 + $0x8] sm:$0x3]
    %v178 = vld [vmem:[%s39] sm:$0xff]
    %v179 = vld [vmem:[%s39 + $0x8] sm:$0xff]
    %v180 = vld [vmem:[%s39 + $0x10] sm:$0xff]
    %v181 = vld [vmem:[%s39 + $0x18] sm:$0xff]
    %v182 = vld [vmem:[%s39 + $0x20] sm:$0xff]
    %v183 = vld [vmem:[%s39 + $0x28] sm:$0xff]
    %v184 = vld [vmem:[%s39 + $0x30] sm:$0xff]
    %v185 = vld [vmem:[%s39 + $0x38] sm:$0xff]
    %v186 = vld [vmem:[%s39 + $0x40] sm:$0x3]
    %v187 = vld [vmem:[%s41] sm:$0xff]
    %v188 = vld [vmem:[%s41 + $0x8] sm:$0xff]
    %v189 = vld [vmem:[%s41 + $0x10] sm:$0xff]
    %v190 = vld [vmem:[%s41 + $0x18] sm:$0xff]
    %v191 = vld [vmem:[%s43] sm:$0xff]
    %v192 = vld [vmem:[%s43 + $0x8] sm:$0xff]
    %v193 = vld [vmem:[%s43 + $0x10] sm:$0xff]
    %v194 = vld [vmem:[%s43 + $0x18] sm:$0xff]
    %v195 = vld [vmem:[%s45] sm:$0x1]
    %v196 = vld [vmem:[%s47] sm:$0x1]
    %v197 = vld [vmem:[%s49] sm:$0x1]
    %v198 = vld [vmem:[%s51] sm:$0x1]
    %v199 = vld [vmem:[%s53] sm:$0x1]
    %v200 = vld [vmem:[%s55] sm:$0x1]
    %v201 = vld [vmem:[%s57] sm:$0xff]
    %v202 = vld [vmem:[%s57 + $0x8] sm:$0xff]
    %v203 = vld [vmem:[%s57 + $0x10] sm:$0xff]
    %v204 = vld [vmem:[%s57 + $0x18] sm:$0xff]
    %v205 = vld [vmem:[%s59] sm:$0x1]
    %v206 = vld [vmem:[%s61] sm:$0x1]
    %v207 = vld [vmem:[%s63] sm:$0x1]
    %v208 = vld [vmem:[%s65] sm:$0xff]
    %v209 = vld [vmem:[%s65 + $0x8] sm:$0xff]
    %v210 = vld [vmem:[%s65 + $0x10] sm:$0xff]
    %v211 = vld [vmem:[%s65 + $0x18] sm:$0xff]
    %v212 = vld [vmem:[%s67] sm:$0x1]
    %v213 = vld [vmem:[%s1] sm:$0xff]
    %v214 = vld [vmem:[%s1 + $0x8] sm:$0xff]
    %v216 = vlaneseq
    %v217 = vshrl.u32 %v216, 7
    %v218 = vsub.s32 0, %v217
    %v219 = vrot.slane %v165, %v218
    %vm221 = vcmask 64512
    %v223 = vsel %vm221, %v213, 0
    %v226 = vsel %vm221, %v214, 0
    %228 = vmatprep.subr.mxu0 0.0
    %229 = vmatpush1.msra.mxu0 0.0
    %230 = vmatprep.subr.mxu0 0.0
    %231 = vmatpush1.msra.mxu0 0.0
    %232 = vmatprep.subr.mxu0 0.0
    %233 = vmatpush1.msra.mxu0 0.0
    %234 = vmatprep.subr.mxu0 0.0
    %235 = vmatpush1.msra.mxu0 0.0
    %236 = vmatprep.subr.mxu0 0.0
    %237 = vmatpush1.msra.mxu0 0.0
    %238 = vmatprep.subr.mxu0 0.0
    %239 = vmatpush1.msra.mxu0 0.0
    %240 = vmatprep.subr.mxu0 0.0
    %241 = vmatpush1.msra.mxu0 0.0
    %242 = vmatprep.subr.mxu0 0.0
    %243 = vmatpush1.msra.mxu0 0.0
    %244 = vmatprep.subr.mxu0 0.0
    %245 = vmatpush1.msra.mxu0 0.0
    %246 = vmatprep.subr.mxu0 0.0
    %247 = vmatpush1.msra.mxu0 0.0
    %248 = vmatprep.subr.mxu0 0.0
    %249 = vmatpush1.msra.mxu0 0.0
    %250 = vmatprep.subr.mxu0 0.0
    %251 = vmatpush1.msra.mxu0 0.0
    %252 = vmatprep.subr.mxu0 0.0
    %253 = vmatpush1.msra.mxu0 0.0
    %254 = vmatprep.subr.mxu0 0.0
    %255 = vmatpush1.msra.mxu0 0.0
    %256 = vmatprep.subr.mxu0 0.0
    %257 = vmatpush1.msra.mxu0 0.0
    %258 = vmatprep.subr.mxu0 0.0
    %259 = vmatpush1.msra.mxu0 %v164
    %260 = vmatprep.subr.mxu0 0.0
    %261 = vmatpush2.msra.mxu0 0.0
    %262 = vmatprep.subr.mxu0 0.0
    %263 = vmatpush2.msra.mxu0 0.0
    %264 = vmatprep.subr.mxu0 0.0
    %265 = vmatpush2.msra.mxu0 0.0
    %266 = vmatprep.subr.mxu0 0.0
    %267 = vmatpush2.msra.mxu0 0.0
    %268 = vmatprep.subr.mxu0 0.0
    %269 = vmatpush2.msra.mxu0 0.0
    %270 = vmatprep.subr.mxu0 0.0
    %271 = vmatpush2.msra.mxu0 0.0
    %272 = vmatprep.subr.mxu0 0.0
    %273 = vmatpush2.msra.mxu0 0.0
    %274 = vmatprep.subr.mxu0 0.0
    %275 = vmatpush2.msra.mxu0 0.0
    %276 = vmatprep.subr.mxu0 0.0
    %277 = vmatpush2.msra.mxu0 0.0
    %278 = vmatprep.subr.mxu0 0.0
    %279 = vmatpush2.msra.mxu0 0.0
    %280 = vmatprep.subr.mxu0 0.0
    %281 = vmatpush2.msra.mxu0 0.0
    %282 = vmatprep.subr.mxu0 0.0
    %283 = vmatpush2.msra.mxu0 0.0
    %284 = vmatprep.subr.mxu0 0.0
    %285 = vmatpush2.msra.mxu0 0.0
    %286 = vmatprep.subr.mxu0 0.0
    %287 = vmatpush2.msra.mxu0 0.0
    %288 = vmatprep.subr.mxu0 0.0
    %289 = vmatpush2.msra.mxu0 0.0
    %290 = vmatprep.subr.mxu0 0.0
    %291 = vmatpush2.msra.mxu0 0.0
    %292 = vmatprep.mubr.f32.mxu0 0.0
    %293 = vmatmul.mubr.f32.gmra.mxu0 %v223
    %v294 = vpop.f32.mrf.mxu0
    %v295 = vadd.f32 %v219, %v294
    %v296 = vpop.f32.mrf.mxu0
    %297 = vmatprep.mubr.f32.mxu0 0.0
    %298 = vmatmul.mubr.f32.gmra.mxu0 %v226
    %v299 = vpop.f32.mrf.mxu0
    %v300 = vadd.f32 %v219, %v299
    %v301 = vpop.f32.mrf.mxu0
    %302 = vdwg.mxu0
    %vm303 = vcmp.gt.f32.partialorder %v295, 0.0
    %vm304 = vcmp.gt.f32.partialorder %v300, 0.0
    %v305 = vmul.f32 %v295, 0.01
    %v306 = vmul.f32 %v300, 0.01
    %v307 = vsel %vm303, %v295, %v305
    %v308 = vsel %vm304, %v300, %v306
    %v309 = vld [vmem:[%s3] sm:$0xff]
    %v310 = vld [vmem:[%s3 + $0x8] sm:$0xff]
    %v311 = vld [vmem:[%s3 + $0x10] sm:$0xff]
    %v312 = vld [vmem:[%s3 + $0x18] sm:$0xff]
    %v313 = vld [vmem:[%s3 + $0x20] sm:$0xff]
    %v314 = vld [vmem:[%s3 + $0x28] sm:$0xff]
    %v315 = vld [vmem:[%s3 + $0x30] sm:$0xff]
    %v316 = vld [vmem:[%s3 + $0x38] sm:$0xff]
    %v317 = vld [vmem:[%s3 + $0x40] sm:$0xff]
    %v318 = vld [vmem:[%s3 + $0x48] sm:$0xff]
    %v319 = vld [vmem:[%s3 + $0x50] sm:$0xff]
    %v320 = vld [vmem:[%s3 + $0x58] sm:$0xff]
    %v321 = vld [vmem:[%s3 + $0x60] sm:$0xff]
    %v322 = vld [vmem:[%s3 + $0x68] sm:$0xff]
    %v323 = vld [vmem:[%s3 + $0x70] sm:$0xff]
    %v324 = vld [vmem:[%s3 + $0x78] sm:$0xff]
    %v326 = vlaneseq
    %v327 = vshrl.u32 %v326, 7
    %v328 = vsub.s32 0, %v327
    %v329 = vrot.slane %v167, %v328
    %v332 = vsel %vm221, %v309, 0
    %v335 = vsel %vm221, %v310, 0
    %v338 = vsel %vm221, %v311, 0
    %v341 = vsel %vm221, %v312, 0
    %v344 = vsel %vm221, %v313, 0
    %v347 = vsel %vm221, %v314, 0
    %v350 = vsel %vm221, %v315, 0
    %v353 = vsel %vm221, %v316, 0
    %v356 = vsel %vm221, %v317, 0
    %v359 = vsel %vm221, %v318, 0
    %v362 = vsel %vm221, %v319, 0
    %v365 = vsel %vm221, %v320, 0
    %v368 = vsel %vm221, %v321, 0
    %v371 = vsel %vm221, %v322, 0
    %v374 = vsel %vm221, %v323, 0
    %v377 = vsel %vm221, %v324, 0
    %379 = vmatprep.subr.mxu0 0.0
    %380 = vmatpush1.msra.mxu0 0.0
    %381 = vmatprep.subr.mxu0 0.0
    %382 = vmatpush1.msra.mxu0 0.0
    %383 = vmatprep.subr.mxu0 0.0
    %384 = vmatpush1.msra.mxu0 0.0
    %385 = vmatprep.subr.mxu0 0.0
    %386 = vmatpush1.msra.mxu0 0.0
    %387 = vmatprep.subr.mxu0 0.0
    %388 = vmatpush1.msra.mxu0 0.0
    %389 = vmatprep.subr.mxu0 0.0
    %390 = vmatpush1.msra.mxu0 0.0
    %391 = vmatprep.subr.mxu0 0.0
    %392 = vmatpush1.msra.mxu0 0.0
    %393 = vmatprep.subr.mxu0 0.0
    %394 = vmatpush1.msra.mxu0 0.0
    %395 = vmatprep.subr.mxu0 0.0
    %396 = vmatpush1.msra.mxu0 0.0
    %397 = vmatprep.subr.mxu0 0.0
    %398 = vmatpush1.msra.mxu0 0.0
    %399 = vmatprep.subr.mxu0 0.0
    %400 = vmatpush1.msra.mxu0 0.0
    %401 = vmatprep.subr.mxu0 0.0
    %402 = vmatpush1.msra.mxu0 0.0
    %403 = vmatprep.subr.mxu0 0.0
    %404 = vmatpush1.msra.mxu0 0.0
    %405 = vmatprep.subr.mxu0 0.0
    %406 = vmatpush1.msra.mxu0 0.0
    %407 = vmatprep.subr.mxu0 0.0
    %408 = vmatpush1.msra.mxu0 0.0
    %409 = vmatprep.subr.mxu0 0.0
    %410 = vmatpush1.msra.mxu0 %v166
    %411 = vmatprep.subr.mxu0 0.0
    %412 = vmatpush2.msra.mxu0 0.0
    %413 = vmatprep.subr.mxu0 0.0
    %414 = vmatpush2.msra.mxu0 0.0
    %415 = vmatprep.subr.mxu0 0.0
    %416 = vmatpush2.msra.mxu0 0.0
    %417 = vmatprep.subr.mxu0 0.0
    %418 = vmatpush2.msra.mxu0 0.0
    %419 = vmatprep.subr.mxu0 0.0
    %420 = vmatpush2.msra.mxu0 0.0
    %421 = vmatprep.subr.mxu0 0.0
    %422 = vmatpush2.msra.mxu0 0.0
    %423 = vmatprep.subr.mxu0 0.0
    %424 = vmatpush2.msra.mxu0 0.0
    %425 = vmatprep.subr.mxu0 0.0
    %426 = vmatpush2.msra.mxu0 0.0
    %427 = vmatprep.subr.mxu0 0.0
    %428 = vmatpush2.msra.mxu0 0.0
    %429 = vmatprep.subr.mxu0 0.0
    %430 = vmatpush2.msra.mxu0 0.0
    %431 = vmatprep.subr.mxu0 0.0
    %432 = vmatpush2.msra.mxu0 0.0
    %433 = vmatprep.subr.mxu0 0.0
    %434 = vmatpush2.msra.mxu0 0.0
    %435 = vmatprep.subr.mxu0 0.0
    %436 = vmatpush2.msra.mxu0 0.0
    %437 = vmatprep.subr.mxu0 0.0
    %438 = vmatpush2.msra.mxu0 0.0
    %439 = vmatprep.subr.mxu0 0.0
    %440 = vmatpush2.msra.mxu0 0.0
    %441 = vmatprep.subr.mxu0 0.0
    %442 = vmatpush2.msra.mxu0 0.0
    %443 = vmatprep.mubr.f32.mxu0 0.0
    %444 = vmatmul.mubr.f32.gmra.mxu0 %v332
    %v445 = vpop.f32.mrf.mxu0
    %v446 = vadd.f32 %v329, %v445
    %v447 = vpop.f32.mrf.mxu0
    %448 = vmatprep.mubr.f32.mxu0 0.0
    %449 = vmatmul.mubr.f32.gmra.mxu0 %v335
    %v450 = vpop.f32.mrf.mxu0
    %v451 = vadd.f32 %v329, %v450
    %v452 = vpop.f32.mrf.mxu0
    %453 = vmatprep.mubr.f32.mxu0 0.0
    %454 = vmatmul.mubr.f32.gmra.mxu0 %v338
    %v455 = vpop.f32.mrf.mxu0
    %v456 = vadd.f32 %v329, %v455
    %v457 = vpop.f32.mrf.mxu0
    %458 = vmatprep.mubr.f32.mxu0 0.0
    %459 = vmatmul.mubr.f32.gmra.mxu0 %v341
    %v460 = vpop.f32.mrf.mxu0
    %v461 = vadd.f32 %v329, %v460
    %v462 = vpop.f32.mrf.mxu0
    %463 = vmatprep.mubr.f32.mxu0 0.0
    %464 = vmatmul.mubr.f32.gmra.mxu0 %v344
    %v465 = vpop.f32.mrf.mxu0
    %v466 = vadd.f32 %v329, %v465
    %v467 = vpop.f32.mrf.mxu0
    %468 = vmatprep.mubr.f32.mxu0 0.0
    %469 = vmatmul.mubr.f32.gmra.mxu0 %v347
    %v470 = vpop.f32.mrf.mxu0
    %v471 = vadd.f32 %v329, %v470
    %v472 = vpop.f32.mrf.mxu0
    %473 = vmatprep.mubr.f32.mxu0 0.0
    %474 = vmatmul.mubr.f32.gmra.mxu0 %v350
    %v475 = vpop.f32.mrf.mxu0
    %v476 = vadd.f32 %v329, %v475
    %v477 = vpop.f32.mrf.mxu0
    %478 = vmatprep.mubr.f32.mxu0 0.0
    %479 = vmatmul.mubr.f32.gmra.mxu0 %v353
    %v480 = vpop.f32.mrf.mxu0
    %v481 = vadd.f32 %v329, %v480
    %v482 = vpop.f32.mrf.mxu0
    %483 = vmatprep.mubr.f32.mxu0 0.0
    %484 = vmatmul.mubr.f32.gmra.mxu0 %v356
    %v485 = vpop.f32.mrf.mxu0
    %v486 = vadd.f32 %v329, %v485
    %v487 = vpop.f32.mrf.mxu0
    %488 = vmatprep.mubr.f32.mxu0 0.0
    %489 = vmatmul.mubr.f32.gmra.mxu0 %v359
    %v490 = vpop.f32.mrf.mxu0
    %v491 = vadd.f32 %v329, %v490
    %v492 = vpop.f32.mrf.mxu0
    %493 = vmatprep.mubr.f32.mxu0 0.0
    %494 = vmatmul.mubr.f32.gmra.mxu0 %v362
    %v495 = vpop.f32.mrf.mxu0
    %v496 = vadd.f32 %v329, %v495
    %v497 = vpop.f32.mrf.mxu0
    %498 = vmatprep.mubr.f32.mxu0 0.0
    %499 = vmatmul.mubr.f32.gmra.mxu0 %v365
    %v500 = vpop.f32.mrf.mxu0
    %v501 = vadd.f32 %v329, %v500
    %v502 = vpop.f32.mrf.mxu0
    %503 = vmatprep.mubr.f32.mxu0 0.0
    %504 = vmatmul.mubr.f32.gmra.mxu0 %v368
    %v505 = vpop.f32.mrf.mxu0
    %v506 = vadd.f32 %v329, %v505
    %v507 = vpop.f32.mrf.mxu0
    %508 = vmatprep.mubr.f32.mxu0 0.0
    %509 = vmatmul.mubr.f32.gmra.mxu0 %v371
    %v510 = vpop.f32.mrf.mxu0
    %v511 = vadd.f32 %v329, %v510
    %v512 = vpop.f32.mrf.mxu0
    %513 = vmatprep.mubr.f32.mxu0 0.0
    %514 = vmatmul.mubr.f32.gmra.mxu0 %v374
    %v515 = vpop.f32.mrf.mxu0
    %v516 = vadd.f32 %v329, %v515
    %v517 = vpop.f32.mrf.mxu0
    %518 = vmatprep.mubr.f32.mxu0 0.0
    %519 = vmatmul.mubr.f32.gmra.mxu0 %v377
    %v520 = vpop.f32.mrf.mxu0
    %v521 = vadd.f32 %v329, %v520
    %v522 = vpop.f32.mrf.mxu0
    %523 = vdwg.mxu0
    %vm524 = vcmp.gt.f32.partialorder %v446, 0.0
    %vm525 = vcmp.gt.f32.partialorder %v451, 0.0
    %vm526 = vcmp.gt.f32.partialorder %v456, 0.0
    %vm527 = vcmp.gt.f32.partialorder %v461, 0.0
    %vm528 = vcmp.gt.f32.partialorder %v466, 0.0
    %vm529 = vcmp.gt.f32.partialorder %v471, 0.0
    %vm530 = vcmp.gt.f32.partialorder %v476, 0.0
    %vm531 = vcmp.gt.f32.partialorder %v481, 0.0
    %vm532 = vcmp.gt.f32.partialorder %v486, 0.0
    %vm533 = vcmp.gt.f32.partialorder %v491, 0.0
    %vm534 = vcmp.gt.f32.partialorder %v496, 0.0
    %vm535 = vcmp.gt.f32.partialorder %v501, 0.0
    %vm536 = vcmp.gt.f32.partialorder %v506, 0.0
    %vm537 = vcmp.gt.f32.partialorder %v511, 0.0
    %vm538 = vcmp.gt.f32.partialorder %v516, 0.0
    %vm539 = vcmp.gt.f32.partialorder %v521, 0.0
    %v540 = vmul.f32 %v446, 0.01
    %v541 = vmul.f32 %v451, 0.01
    %v542 = vmul.f32 %v456, 0.01
    %v543 = vmul.f32 %v461, 0.01
    %v544 = vmul.f32 %v466, 0.01
    %v545 = vmul.f32 %v471, 0.01
    %v546 = vmul.f32 %v476, 0.01
    %v547 = vmul.f32 %v481, 0.01
    %v548 = vmul.f32 %v486, 0.01
    %v549 = vmul.f32 %v491, 0.01
    %v550 = vmul.f32 %v496, 0.01
    %v551 = vmul.f32 %v501, 0.01
    %v552 = vmul.f32 %v506, 0.01
    %v553 = vmul.f32 %v511, 0.01
    %v554 = vmul.f32 %v516, 0.01
    %v555 = vmul.f32 %v521, 0.01
    %v556 = vsel %vm524, %v446, %v540
    %v557 = vsel %vm525, %v451, %v541
    %v558 = vsel %vm526, %v456, %v542
    %v559 = vsel %vm527, %v461, %v543
    %v560 = vsel %vm528, %v466, %v544
    %v561 = vsel %vm529, %v471, %v545
    %v562 = vsel %vm530, %v476, %v546
    %v563 = vsel %vm531, %v481, %v547
    %v564 = vsel %vm532, %v486, %v548
    %v565 = vsel %vm533, %v491, %v549
    %v566 = vsel %vm534, %v496, %v550
    %v567 = vsel %vm535, %v501, %v551
    %v568 = vsel %vm536, %v506, %v552
    %v569 = vsel %vm537, %v511, %v553
    %v570 = vsel %vm538, %v516, %v554
    %v571 = vsel %vm539, %v521, %v555
    %v572 = vlaneseq
    %v573 = vshrl.u32 %v572, 7
    %v574 = vld [vmem:[%s5] sm:$0xf]
    %v576 = vsel %vm221, %v574, 0
    %578 = vmatprep.subr.mxu0 0.0
    %579 = vmatpush1.msra.mxu0 0.0
    %580 = vmatprep.subr.mxu0 0.0
    %581 = vmatpush1.msra.mxu0 0.0
    %582 = vmatprep.subr.mxu0 0.0
    %583 = vmatpush1.msra.mxu0 0.0
    %584 = vmatprep.subr.mxu0 0.0
    %585 = vmatpush1.msra.mxu0 0.0
    %586 = vmatprep.subr.mxu0 0.0
    %587 = vmatpush1.msra.mxu0 0.0
    %588 = vmatprep.subr.mxu0 0.0
    %589 = vmatpush1.msra.mxu0 0.0
    %590 = vmatprep.subr.mxu0 0.0
    %591 = vmatpush1.msra.mxu0 0.0
    %592 = vmatprep.subr.mxu0 0.0
    %593 = vmatpush1.msra.mxu0 0.0
    %594 = vmatprep.subr.mxu0 0.0
    %595 = vmatpush1.msra.mxu0 0.0
    %596 = vmatprep.subr.mxu0 0.0
    %597 = vmatpush1.msra.mxu0 0.0
    %598 = vmatprep.subr.mxu0 0.0
    %599 = vmatpush1.msra.mxu0 0.0
    %600 = vmatprep.subr.mxu0 0.0
    %601 = vmatpush1.msra.mxu0 0.0
    %602 = vmatprep.subr.mxu0 0.0
    %603 = vmatpush1.msra.mxu0 0.0
    %604 = vmatprep.subr.mxu0 0.0
    %605 = vmatpush1.msra.mxu0 0.0
    %606 = vmatprep.subr.mxu0 0.0
    %607 = vmatpush1.msra.mxu0 0.0
    %608 = vmatprep.subr.mxu0 0.0
    %609 = vmatpush1.msra.mxu0 %v307
    %610 = vmatprep.subr.mxu0 0.0
    %611 = vmatpush2.msra.mxu0 0.0
    %612 = vmatprep.subr.mxu0 0.0
    %613 = vmatpush2.msra.mxu0 0.0
    %614 = vmatprep.subr.mxu0 0.0
    %615 = vmatpush2.msra.mxu0 0.0
    %616 = vmatprep.subr.mxu0 0.0
    %617 = vmatpush2.msra.mxu0 0.0
    %618 = vmatprep.subr.mxu0 0.0
    %619 = vmatpush2.msra.mxu0 0.0
    %620 = vmatprep.subr.mxu0 0.0
    %621 = vmatpush2.msra.mxu0 0.0
    %622 = vmatprep.subr.mxu0 0.0
    %623 = vmatpush2.msra.mxu0 0.0
    %624 = vmatprep.subr.mxu0 0.0
    %625 = vmatpush2.msra.mxu0 0.0
    %626 = vmatprep.subr.mxu0 0.0
    %627 = vmatpush2.msra.mxu0 0.0
    %628 = vmatprep.subr.mxu0 0.0
    %629 = vmatpush2.msra.mxu0 0.0
    %630 = vmatprep.subr.mxu0 0.0
    %631 = vmatpush2.msra.mxu0 0.0
    %632 = vmatprep.subr.mxu0 0.0
    %633 = vmatpush2.msra.mxu0 0.0
    %634 = vmatprep.subr.mxu0 0.0
    %635 = vmatpush2.msra.mxu0 0.0
    %636 = vmatprep.subr.mxu0 0.0
    %637 = vmatpush2.msra.mxu0 0.0
    %638 = vmatprep.subr.mxu0 0.0
    %639 = vmatpush2.msra.mxu0 0.0
    %640 = vmatprep.subr.mxu0 0.0
    %641 = vmatpush2.msra.mxu0 0.0
    %642 = vmatprep.mubr.f32.mxu0 0.0
    %643 = vmatmul.mubr.f32.gmra.mxu0 %v576
    %v644 = vpop.f32.mrf.mxu0
    %v645 = vadd.f32 0.0, %v644
    %v646 = vpop.f32.mrf.mxu0
    %647 = vdwg.mxu0
    %v648 = vld [vmem:[%s7] sm:$0xff]
    %v649 = vld [vmem:[%s7 + $0x8] sm:$0xff]
    %vm650 = vcmask 523264
    %v652 = vsel %vm650, %v648, 0
    %v655 = vsel %vm650, %v649, 0
    %657 = vmatprep.subr.mxu0 0.0
    %658 = vmatpush1.msra.mxu0 0.0
    %659 = vmatprep.subr.mxu0 0.0
    %660 = vmatpush1.msra.mxu0 0.0
    %661 = vmatprep.subr.mxu0 0.0
    %662 = vmatpush1.msra.mxu0 0.0
    %663 = vmatprep.subr.mxu0 0.0
    %664 = vmatpush1.msra.mxu0 0.0
    %665 = vmatprep.subr.mxu0 0.0
    %666 = vmatpush1.msra.mxu0 0.0
    %667 = vmatprep.subr.mxu0 0.0
    %668 = vmatpush1.msra.mxu0 0.0
    %669 = vmatprep.subr.mxu0 0.0
    %670 = vmatpush1.msra.mxu0 0.0
    %671 = vmatprep.subr.mxu0 0.0
    %672 = vmatpush1.msra.mxu0 0.0
    %673 = vmatprep.subr.mxu0 0.0
    %674 = vmatpush1.msra.mxu0 %v563
    %675 = vmatprep.subr.mxu0 0.0
    %676 = vmatpush1.msra.mxu0 %v562
    %677 = vmatprep.subr.mxu0 0.0
    %678 = vmatpush1.msra.mxu0 %v561
    %679 = vmatprep.subr.mxu0 0.0
    %680 = vmatpush1.msra.mxu0 %v560
    %681 = vmatprep.subr.mxu0 0.0
    %682 = vmatpush1.msra.mxu0 %v559
    %683 = vmatprep.subr.mxu0 0.0
    %684 = vmatpush1.msra.mxu0 %v558
    %685 = vmatprep.subr.mxu0 0.0
    %686 = vmatpush1.msra.mxu0 %v557
    %687 = vmatprep.subr.mxu0 0.0
    %688 = vmatpush1.msra.mxu0 %v556
    %689 = vmatprep.subr.mxu0 0.0
    %690 = vmatpush2.msra.mxu0 0.0
    %691 = vmatprep.subr.mxu0 0.0
    %692 = vmatpush2.msra.mxu0 0.0
    %693 = vmatprep.subr.mxu0 0.0
    %694 = vmatpush2.msra.mxu0 0.0
    %695 = vmatprep.subr.mxu0 0.0
    %696 = vmatpush2.msra.mxu0 0.0
    %697 = vmatprep.subr.mxu0 0.0
    %698 = vmatpush2.msra.mxu0 0.0
    %699 = vmatprep.subr.mxu0 0.0
    %700 = vmatpush2.msra.mxu0 0.0
    %701 = vmatprep.subr.mxu0 0.0
    %702 = vmatpush2.msra.mxu0 0.0
    %703 = vmatprep.subr.mxu0 0.0
    %704 = vmatpush2.msra.mxu0 0.0
    %705 = vmatprep.subr.mxu0 0.0
    %706 = vmatpush2.msra.mxu0 0.0
    %707 = vmatprep.subr.mxu0 0.0
    %708 = vmatpush2.msra.mxu0 0.0
    %709 = vmatprep.subr.mxu0 0.0
    %710 = vmatpush2.msra.mxu0 0.0
    %711 = vmatprep.subr.mxu0 0.0
    %712 = vmatpush2.msra.mxu0 0.0
    %713 = vmatprep.subr.mxu0 0.0
    %714 = vmatpush2.msra.mxu0 0.0
    %715 = vmatprep.subr.mxu0 0.0
    %716 = vmatpush2.msra.mxu0 0.0
    %717 = vmatprep.subr.mxu0 0.0
    %718 = vmatpush2.msra.mxu0 0.0
    %719 = vmatprep.subr.mxu0 0.0
    %720 = vmatpush2.msra.mxu0 0.0
    %721 = vmatprep.mubr.f32.mxu0 0.0
    %722 = vmatmul.mubr.f32.gmra.mxu0 %v652
    %v723 = vpop.f32.mrf.mxu0
    %v724 = vadd.f32 0.0, %v723
    %v725 = vpop.f32.mrf.mxu0
    %726 = vmatprep.mubr.f32.mxu0 0.0
    %727 = vmatmul.mubr.f32.gmra.mxu0 %v655
    %v728 = vpop.f32.mrf.mxu0
    %v729 = vadd.f32 0.0, %v728
    %v730 = vpop.f32.mrf.mxu0
    %731 = vdwg.mxu0
    %v733 = vlaneseq
    %v734 = vshrl.u32 %v733, 7
    %v735 = vsub.s32 0, %v734
    %v736 = vrot.slane %v172, %v735
    %vm738 = vcmask 261120
    %v740 = vsel %vm738, %v645, 0
    %742 = vmatprep.subr.mxu0 0.0
    %743 = vmatpush1.msra.mxu0 0.0
    %744 = vmatprep.subr.mxu0 0.0
    %745 = vmatpush1.msra.mxu0 0.0
    %746 = vmatprep.subr.mxu0 0.0
    %747 = vmatpush1.msra.mxu0 0.0
    %748 = vmatprep.subr.mxu0 0.0
    %749 = vmatpush1.msra.mxu0 0.0
    %750 = vmatprep.subr.mxu0 0.0
    %751 = vmatpush1.msra.mxu0 0.0
    %752 = vmatprep.subr.mxu0 0.0
    %753 = vmatpush1.msra.mxu0 0.0
    %754 = vmatprep.subr.mxu0 0.0
    %755 = vmatpush1.msra.mxu0 0.0
    %756 = vmatprep.subr.mxu0 0.0
    %757 = vmatpush1.msra.mxu0 0.0
    %758 = vmatprep.subr.mxu0 0.0
    %759 = vmatpush1.msra.mxu0 0.0
    %760 = vmatprep.subr.mxu0 0.0
    %761 = vmatpush1.msra.mxu0 0.0
    %762 = vmatprep.subr.mxu0 0.0
    %763 = vmatpush1.msra.mxu0 0.0
    %764 = vmatprep.subr.mxu0 0.0
    %765 = vmatpush1.msra.mxu0 0.0
    %766 = vmatprep.subr.mxu0 0.0
    %767 = vmatpush1.msra.mxu0 %v171
    %768 = vmatprep.subr.mxu0 0.0
    %769 = vmatpush1.msra.mxu0 %v170
    %770 = vmatprep.subr.mxu0 0.0
    %771 = vmatpush1.msra.mxu0 %v169
    %772 = vmatprep.subr.mxu0 0.0
    %773 = vmatpush1.msra.mxu0 %v168
    %774 = vmatprep.subr.mxu0 0.0
    %775 = vmatpush2.msra.mxu0 0.0
    %776 = vmatprep.subr.mxu0 0.0
    %777 = vmatpush2.msra.mxu0 0.0
    %778 = vmatprep.subr.mxu0 0.0
    %779 = vmatpush2.msra.mxu0 0.0
    %780 = vmatprep.subr.mxu0 0.0
    %781 = vmatpush2.msra.mxu0 0.0
    %782 = vmatprep.subr.mxu0 0.0
    %783 = vmatpush2.msra.mxu0 0.0
    %784 = vmatprep.subr.mxu0 0.0
    %785 = vmatpush2.msra.mxu0 0.0
    %786 = vmatprep.subr.mxu0 0.0
    %787 = vmatpush2.msra.mxu0 0.0
    %788 = vmatprep.subr.mxu0 0.0
    %789 = vmatpush2.msra.mxu0 0.0
    %790 = vmatprep.subr.mxu0 0.0
    %791 = vmatpush2.msra.mxu0 0.0
    %792 = vmatprep.subr.mxu0 0.0
    %793 = vmatpush2.msra.mxu0 0.0
    %794 = vmatprep.subr.mxu0 0.0
    %795 = vmatpush2.msra.mxu0 0.0
    %796 = vmatprep.subr.mxu0 0.0
    %797 = vmatpush2.msra.mxu0 0.0
    %798 = vmatprep.subr.mxu0 0.0
    %799 = vmatpush2.msra.mxu0 0.0
    %800 = vmatprep.subr.mxu0 0.0
    %801 = vmatpush2.msra.mxu0 0.0
    %802 = vmatprep.subr.mxu0 0.0
    %803 = vmatpush2.msra.mxu0 0.0
    %804 = vmatprep.subr.mxu0 0.0
    %805 = vmatpush2.msra.mxu0 0.0
    %806 = vmatprep.mubr.f32.mxu0 0.0
    %807 = vmatmul.mubr.f32.gmra.mxu0 %v740
    %v808 = vpop.f32.mrf.mxu0
    %v809 = vadd.f32 %v736, %v808
    %v810 = vpop.f32.mrf.mxu0
    %811 = vdwg.mxu0
    %vm812 = vcmp.gt.f32.partialorder %v809, 0.0
    %v813 = vmul.f32 %v809, 0.01
    %v814 = vsel %vm812, %v809, %v813
    %v816 = vlaneseq
    %v817 = vshrl.u32 %v816, 7
    %v818 = vsub.s32 0, %v817
    %v819 = vrot.slane %v175, %v818
    %vm821 = vcmask 130048
    %v823 = vsel %vm821, %v724, 0
    %v826 = vsel %vm821, %v729, 0
    %828 = vmatprep.subr.mxu0 0.0
    %829 = vmatpush1.msra.mxu0 0.0
    %830 = vmatprep.subr.mxu0 0.0
    %831 = vmatpush1.msra.mxu0 0.0
    %832 = vmatprep.subr.mxu0 0.0
    %833 = vmatpush1.msra.mxu0 0.0
    %834 = vmatprep.subr.mxu0 0.0
    %835 = vmatpush1.msra.mxu0 0.0
    %836 = vmatprep.subr.mxu0 0.0
    %837 = vmatpush1.msra.mxu0 0.0
    %838 = vmatprep.subr.mxu0 0.0
    %839 = vmatpush1.msra.mxu0 0.0
    %840 = vmatprep.subr.mxu0 0.0
    %841 = vmatpush1.msra.mxu0 0.0
    %842 = vmatprep.subr.mxu0 0.0
    %843 = vmatpush1.msra.mxu0 0.0
    %844 = vmatprep.subr.mxu0 0.0
    %845 = vmatpush1.msra.mxu0 0.0
    %846 = vmatprep.subr.mxu0 0.0
    %847 = vmatpush1.msra.mxu0 0.0
    %848 = vmatprep.subr.mxu0 0.0
    %849 = vmatpush1.msra.mxu0 0.0
    %850 = vmatprep.subr.mxu0 0.0
    %851 = vmatpush1.msra.mxu0 0.0
    %852 = vmatprep.subr.mxu0 0.0
    %853 = vmatpush1.msra.mxu0 0.0
    %854 = vmatprep.subr.mxu0 0.0
    %855 = vmatpush1.msra.mxu0 0.0
    %856 = vmatprep.subr.mxu0 0.0
    %857 = vmatpush1.msra.mxu0 %v174
    %858 = vmatprep.subr.mxu0 0.0
    %859 = vmatpush1.msra.mxu0 %v173
    %860 = vmatprep.subr.mxu0 0.0
    %861 = vmatpush2.msra.mxu0 0.0
    %862 = vmatprep.subr.mxu0 0.0
    %863 = vmatpush2.msra.mxu0 0.0
    %864 = vmatprep.subr.mxu0 0.0
    %865 = vmatpush2.msra.mxu0 0.0
    %866 = vmatprep.subr.mxu0 0.0
    %867 = vmatpush2.msra.mxu0 0.0
    %868 = vmatprep.subr.mxu0 0.0
    %869 = vmatpush2.msra.mxu0 0.0
    %870 = vmatprep.subr.mxu0 0.0
    %871 = vmatpush2.msra.mxu0 0.0
    %872 = vmatprep.subr.mxu0 0.0
    %873 = vmatpush2.msra.mxu0 0.0
    %874 = vmatprep.subr.mxu0 0.0
    %875 = vmatpush2.msra.mxu0 0.0
    %876 = vmatprep.subr.mxu0 0.0
    %877 = vmatpush2.msra.mxu0 0.0
    %878 = vmatprep.subr.mxu0 0.0
    %879 = vmatpush2.msra.mxu0 0.0
    %880 = vmatprep.subr.mxu0 0.0
    %881 = vmatpush2.msra.mxu0 0.0
    %882 = vmatprep.subr.mxu0 0.0
    %883 = vmatpush2.msra.mxu0 0.0
    %884 = vmatprep.subr.mxu0 0.0
    %885 = vmatpush2.msra.mxu0 0.0
    %886 = vmatprep.subr.mxu0 0.0
    %887 = vmatpush2.msra.mxu0 0.0
    %888 = vmatprep.subr.mxu0 0.0
    %889 = vmatpush2.msra.mxu0 0.0
    %890 = vmatprep.subr.mxu0 0.0
    %891 = vmatpush2.msra.mxu0 0.0
    %892 = vmatprep.mubr.f32.mxu0 0.0
    %893 = vmatmul.mubr.f32.gmra.mxu0 %v823
    %v894 = vpop.f32.mrf.mxu0
    %v895 = vadd.f32 %v819, %v894
    %v896 = vpop.f32.mrf.mxu0
    %897 = vmatprep.mubr.f32.mxu0 0.0
    %898 = vmatmul.mubr.f32.gmra.mxu0 %v826
    %v899 = vpop.f32.mrf.mxu0
    %v900 = vadd.f32 %v819, %v899
    %v901 = vpop.f32.mrf.mxu0
    %902 = vdwg.mxu0
    %vm903 = vcmp.gt.f32.partialorder %v895, 0.0
    %vm904 = vcmp.gt.f32.partialorder %v900, 0.0
    %v905 = vmul.f32 %v895, 0.01
    %v906 = vmul.f32 %v900, 0.01
    %v907 = vsel %vm903, %v895, %v905
    %v908 = vsel %vm904, %v900, %v906
    %v909 = vld [vmem:[%s9] sm:$0xf]
    %vm910 = vcmask 31744
    %v912 = vsel %vm910, %v909, 0
    %vm914 = vcmask 1043456
    %v916 = vsel %vm914, %v814, 0
    %918 = vmatprep.subr.mxu0 0.0
    %919 = vmatpush1.msra.mxu0 0.0
    %920 = vmatprep.subr.mxu0 0.0
    %921 = vmatpush1.msra.mxu0 0.0
    %922 = vmatprep.subr.mxu0 0.0
    %923 = vmatpush1.msra.mxu0 0.0
    %924 = vmatprep.subr.mxu0 0.0
    %925 = vmatpush1.msra.mxu0 0.0
    %926 = vmatprep.subr.mxu0 0.0
    %927 = vmatpush1.msra.mxu0 0.0
    %928 = vmatprep.subr.mxu0 0.0
    %929 = vmatpush1.msra.mxu0 0.0
    %930 = vmatprep.subr.mxu0 0.0
    %931 = vmatpush1.msra.mxu0 0.0
    %932 = vmatprep.subr.mxu0 0.0
    %933 = vmatpush1.msra.mxu0 0.0
    %934 = vmatprep.subr.mxu0 0.0
    %935 = vmatpush1.msra.mxu0 0.0
    %936 = vmatprep.subr.mxu0 0.0
    %937 = vmatpush1.msra.mxu0 0.0
    %938 = vmatprep.subr.mxu0 0.0
    %939 = vmatpush1.msra.mxu0 0.0
    %940 = vmatprep.subr.mxu0 0.0
    %941 = vmatpush1.msra.mxu0 0.0
    %942 = vmatprep.subr.mxu0 0.0
    %943 = vmatpush1.msra.mxu0 0.0
    %944 = vmatprep.subr.mxu0 0.0
    %945 = vmatpush1.msra.mxu0 0.0
    %946 = vmatprep.subr.mxu0 0.0
    %947 = vmatpush1.msra.mxu0 0.0
    %948 = vmatprep.subr.mxu0 0.0
    %949 = vmatpush1.msra.mxu0 %v916
    %950 = vmatprep.subr.mxu0 0.0
    %951 = vmatpush2.msra.mxu0 0.0
    %952 = vmatprep.subr.mxu0 0.0
    %953 = vmatpush2.msra.mxu0 0.0
    %954 = vmatprep.subr.mxu0 0.0
    %955 = vmatpush2.msra.mxu0 0.0
    %956 = vmatprep.subr.mxu0 0.0
    %957 = vmatpush2.msra.mxu0 0.0
    %958 = vmatprep.subr.mxu0 0.0
    %959 = vmatpush2.msra.mxu0 0.0
    %960 = vmatprep.subr.mxu0 0.0
    %961 = vmatpush2.msra.mxu0 0.0
    %962 = vmatprep.subr.mxu0 0.0
    %963 = vmatpush2.msra.mxu0 0.0
    %964 = vmatprep.subr.mxu0 0.0
    %965 = vmatpush2.msra.mxu0 0.0
    %966 = vmatprep.subr.mxu0 0.0
    %967 = vmatpush2.msra.mxu0 0.0
    %968 = vmatprep.subr.mxu0 0.0
    %969 = vmatpush2.msra.mxu0 0.0
    %970 = vmatprep.subr.mxu0 0.0
    %971 = vmatpush2.msra.mxu0 0.0
    %972 = vmatprep.subr.mxu0 0.0
    %973 = vmatpush2.msra.mxu0 0.0
    %974 = vmatprep.subr.mxu0 0.0
    %975 = vmatpush2.msra.mxu0 0.0
    %976 = vmatprep.subr.mxu0 0.0
    %977 = vmatpush2.msra.mxu0 0.0
    %978 = vmatprep.subr.mxu0 0.0
    %979 = vmatpush2.msra.mxu0 0.0
    %980 = vmatprep.subr.mxu0 0.0
    %981 = vmatpush2.msra.mxu0 0.0
    %982 = vmatprep.mubr.f32.mxu0 0.0
    %983 = vmatmul.mubr.f32.gmra.mxu0 %v912
    %v984 = vpop.f32.mrf.mxu0
    %v985 = vadd.f32 0.0, %v984
    %v986 = vpop.f32.mrf.mxu0
    %987 = vdwg.mxu0
    %v988 = vld [vmem:[%s11] sm:$0xff]
    %v989 = vld [vmem:[%s11 + $0x8] sm:$0xff]
    %v991 = vsel %vm821, %v988, 0
    %v994 = vsel %vm821, %v989, 0
    %996 = vmatprep.subr.mxu0 0.0
    %997 = vmatpush1.msra.mxu0 0.0
    %998 = vmatprep.subr.mxu0 0.0
    %999 = vmatpush1.msra.mxu0 0.0
    %1000 = vmatprep.subr.mxu0 0.0
    %1001 = vmatpush1.msra.mxu0 0.0
    %1002 = vmatprep.subr.mxu0 0.0
    %1003 = vmatpush1.msra.mxu0 0.0
    %1004 = vmatprep.subr.mxu0 0.0
    %1005 = vmatpush1.msra.mxu0 0.0
    %1006 = vmatprep.subr.mxu0 0.0
    %1007 = vmatpush1.msra.mxu0 0.0
    %1008 = vmatprep.subr.mxu0 0.0
    %1009 = vmatpush1.msra.mxu0 0.0
    %1010 = vmatprep.subr.mxu0 0.0
    %1011 = vmatpush1.msra.mxu0 0.0
    %1012 = vmatprep.subr.mxu0 0.0
    %1013 = vmatpush1.msra.mxu0 0.0
    %1014 = vmatprep.subr.mxu0 0.0
    %1015 = vmatpush1.msra.mxu0 0.0
    %1016 = vmatprep.subr.mxu0 0.0
    %1017 = vmatpush1.msra.mxu0 0.0
    %1018 = vmatprep.subr.mxu0 0.0
    %1019 = vmatpush1.msra.mxu0 0.0
    %1020 = vmatprep.subr.mxu0 0.0
    %1021 = vmatpush1.msra.mxu0 0.0
    %1022 = vmatprep.subr.mxu0 0.0
    %1023 = vmatpush1.msra.mxu0 0.0
    %1024 = vmatprep.subr.mxu0 0.0
    %1025 = vmatpush1.msra.mxu0 %v908
    %1026 = vmatprep.subr.mxu0 0.0
    %1027 = vmatpush1.msra.mxu0 %v907
    %1028 = vmatprep.subr.mxu0 0.0
    %1029 = vmatpush2.msra.mxu0 0.0
    %1030 = vmatprep.subr.mxu0 0.0
    %1031 = vmatpush2.msra.mxu0 0.0
    %1032 = vmatprep.subr.mxu0 0.0
    %1033 = vmatpush2.msra.mxu0 0.0
    %1034 = vmatprep.subr.mxu0 0.0
    %1035 = vmatpush2.msra.mxu0 0.0
    %1036 = vmatprep.subr.mxu0 0.0
    %1037 = vmatpush2.msra.mxu0 0.0
    %1038 = vmatprep.subr.mxu0 0.0
    %1039 = vmatpush2.msra.mxu0 0.0
    %1040 = vmatprep.subr.mxu0 0.0
    %1041 = vmatpush2.msra.mxu0 0.0
    %1042 = vmatprep.subr.mxu0 0.0
    %1043 = vmatpush2.msra.mxu0 0.0
    %1044 = vmatprep.subr.mxu0 0.0
    %1045 = vmatpush2.msra.mxu0 0.0
    %1046 = vmatprep.subr.mxu0 0.0
    %1047 = vmatpush2.msra.mxu0 0.0
    %1048 = vmatprep.subr.mxu0 0.0
    %1049 = vmatpush2.msra.mxu0 0.0
    %1050 = vmatprep.subr.mxu0 0.0
    %1051 = vmatpush2.msra.mxu0 0.0
    %1052 = vmatprep.subr.mxu0 0.0
    %1053 = vmatpush2.msra.mxu0 0.0
    %1054 = vmatprep.subr.mxu0 0.0
    %1055 = vmatpush2.msra.mxu0 0.0
    %1056 = vmatprep.subr.mxu0 0.0
    %1057 = vmatpush2.msra.mxu0 0.0
    %1058 = vmatprep.subr.mxu0 0.0
    %1059 = vmatpush2.msra.mxu0 0.0
    %1060 = vmatprep.mubr.f32.mxu0 0.0
    %1061 = vmatmul.mubr.f32.gmra.mxu0 %v991
    %v1062 = vpop.f32.mrf.mxu0
    %v1063 = vadd.f32 0.0, %v1062
    %v1064 = vpop.f32.mrf.mxu0
    %1065 = vmatprep.mubr.f32.mxu0 0.0
    %1066 = vmatmul.mubr.f32.gmra.mxu0 %v994
    %v1067 = vpop.f32.mrf.mxu0
    %v1068 = vadd.f32 0.0, %v1067
    %v1069 = vpop.f32.mrf.mxu0
    %1070 = vdwg.mxu0
    %v1071 = vld [vmem:[%s13] sm:$0xf]
    %vm1072 = vcmask 80896
    %v1074 = vsel %vm1072, %v1071, 0
    %vm1076 = vcmask 1041408
    %v1078 = vsel %vm1076, %v177, 0
    %1080 = vmatprep.subr.mxu0 0.0
    %1081 = vmatpush1.msra.mxu0 0.0
    %1082 = vmatprep.subr.mxu0 0.0
    %1083 = vmatpush1.msra.mxu0 0.0
    %1084 = vmatprep.subr.mxu0 0.0
    %1085 = vmatpush1.msra.mxu0 0.0
    %1086 = vmatprep.subr.mxu0 0.0
    %1087 = vmatpush1.msra.mxu0 0.0
    %1088 = vmatprep.subr.mxu0 0.0
    %1089 = vmatpush1.msra.mxu0 0.0
    %1090 = vmatprep.subr.mxu0 0.0
    %1091 = vmatpush1.msra.mxu0 0.0
    %1092 = vmatprep.subr.mxu0 0.0
    %1093 = vmatpush1.msra.mxu0 0.0
    %1094 = vmatprep.subr.mxu0 0.0
    %1095 = vmatpush1.msra.mxu0 0.0
    %1096 = vmatprep.subr.mxu0 0.0
    %1097 = vmatpush1.msra.mxu0 0.0
    %1098 = vmatprep.subr.mxu0 0.0
    %1099 = vmatpush1.msra.mxu0 0.0
    %1100 = vmatprep.subr.mxu0 0.0
    %1101 = vmatpush1.msra.mxu0 0.0
    %1102 = vmatprep.subr.mxu0 0.0
    %1103 = vmatpush1.msra.mxu0 0.0
    %1104 = vmatprep.subr.mxu0 0.0
    %1105 = vmatpush1.msra.mxu0 0.0
    %1106 = vmatprep.subr.mxu0 0.0
    %1107 = vmatpush1.msra.mxu0 0.0
    %1108 = vmatprep.subr.mxu0 0.0
    %1109 = vmatpush1.msra.mxu0 %v1078
    %1110 = vmatprep.subr.mxu0 0.0
    %1111 = vmatpush1.msra.mxu0 %v176
    %1112 = vmatprep.subr.mxu0 0.0
    %1113 = vmatpush2.msra.mxu0 0.0
    %1114 = vmatprep.subr.mxu0 0.0
    %1115 = vmatpush2.msra.mxu0 0.0
    %1116 = vmatprep.subr.mxu0 0.0
    %1117 = vmatpush2.msra.mxu0 0.0
    %1118 = vmatprep.subr.mxu0 0.0
    %1119 = vmatpush2.msra.mxu0 0.0
    %1120 = vmatprep.subr.mxu0 0.0
    %1121 = vmatpush2.msra.mxu0 0.0
    %1122 = vmatprep.subr.mxu0 0.0
    %1123 = vmatpush2.msra.mxu0 0.0
    %1124 = vmatprep.subr.mxu0 0.0
    %1125 = vmatpush2.msra.mxu0 0.0
    %1126 = vmatprep.subr.mxu0 0.0
    %1127 = vmatpush2.msra.mxu0 0.0
    %1128 = vmatprep.subr.mxu0 0.0
    %1129 = vmatpush2.msra.mxu0 0.0
    %1130 = vmatprep.subr.mxu0 0.0
    %1131 = vmatpush2.msra.mxu0 0.0
    %1132 = vmatprep.subr.mxu0 0.0
    %1133 = vmatpush2.msra.mxu0 0.0
    %1134 = vmatprep.subr.mxu0 0.0
    %1135 = vmatpush2.msra.mxu0 0.0
    %1136 = vmatprep.subr.mxu0 0.0
    %1137 = vmatpush2.msra.mxu0 0.0
    %1138 = vmatprep.subr.mxu0 0.0
    %1139 = vmatpush2.msra.mxu0 0.0
    %1140 = vmatprep.subr.mxu0 0.0
    %1141 = vmatpush2.msra.mxu0 0.0
    %1142 = vmatprep.subr.mxu0 0.0
    %1143 = vmatpush2.msra.mxu0 0.0
    %1144 = vmatprep.mubr.f32.mxu0 0.0
    %1145 = vmatmul.mubr.f32.gmra.mxu0 %v1074
    %v1146 = vpop.f32.mrf.mxu0
    %v1147 = vadd.f32 %v985, %v1146
    %v1148 = vpop.f32.mrf.mxu0
    %1149 = vdwg.mxu0
    %v1150 = vld [vmem:[%s15] sm:$0xff]
    %v1151 = vld [vmem:[%s15 + $0x8] sm:$0xff]
    %vm1152 = vcmask 539648
    %v1154 = vsel %vm1152, %v1150, 0
    %v1157 = vsel %vm1152, %v1151, 0
    %v1160 = vsel %vm1076, %v186, 0
    %1162 = vmatprep.subr.mxu0 0.0
    %1163 = vmatpush1.msra.mxu0 0.0
    %1164 = vmatprep.subr.mxu0 0.0
    %1165 = vmatpush1.msra.mxu0 0.0
    %1166 = vmatprep.subr.mxu0 0.0
    %1167 = vmatpush1.msra.mxu0 0.0
    %1168 = vmatprep.subr.mxu0 0.0
    %1169 = vmatpush1.msra.mxu0 0.0
    %1170 = vmatprep.subr.mxu0 0.0
    %1171 = vmatpush1.msra.mxu0 0.0
    %1172 = vmatprep.subr.mxu0 0.0
    %1173 = vmatpush1.msra.mxu0 0.0
    %1174 = vmatprep.subr.mxu0 0.0
    %1175 = vmatpush1.msra.mxu0 0.0
    %1176 = vmatprep.subr.mxu0 0.0
    %1177 = vmatpush1.msra.mxu0 %v1160
    %1178 = vmatprep.subr.mxu0 0.0
    %1179 = vmatpush1.msra.mxu0 %v185
    %1180 = vmatprep.subr.mxu0 0.0
    %1181 = vmatpush1.msra.mxu0 %v184
    %1182 = vmatprep.subr.mxu0 0.0
    %1183 = vmatpush1.msra.mxu0 %v183
    %1184 = vmatprep.subr.mxu0 0.0
    %1185 = vmatpush1.msra.mxu0 %v182
    %1186 = vmatprep.subr.mxu0 0.0
    %1187 = vmatpush1.msra.mxu0 %v181
    %1188 = vmatprep.subr.mxu0 0.0
    %1189 = vmatpush1.msra.mxu0 %v180
    %1190 = vmatprep.subr.mxu0 0.0
    %1191 = vmatpush1.msra.mxu0 %v179
    %1192 = vmatprep.subr.mxu0 0.0
    %1193 = vmatpush1.msra.mxu0 %v178
    %1194 = vmatprep.subr.mxu0 0.0
    %1195 = vmatpush2.msra.mxu0 0.0
    %1196 = vmatprep.subr.mxu0 0.0
    %1197 = vmatpush2.msra.mxu0 0.0
    %1198 = vmatprep.subr.mxu0 0.0
    %1199 = vmatpush2.msra.mxu0 0.0
    %1200 = vmatprep.subr.mxu0 0.0
    %1201 = vmatpush2.msra.mxu0 0.0
    %1202 = vmatprep.subr.mxu0 0.0
    %1203 = vmatpush2.msra.mxu0 0.0
    %1204 = vmatprep.subr.mxu0 0.0
    %1205 = vmatpush2.msra.mxu0 0.0
    %1206 = vmatprep.subr.mxu0 0.0
    %1207 = vmatpush2.msra.mxu0 0.0
    %1208 = vmatprep.subr.mxu0 0.0
    %1209 = vmatpush2.msra.mxu0 0.0
    %1210 = vmatprep.subr.mxu0 0.0
    %1211 = vmatpush2.msra.mxu0 0.0
    %1212 = vmatprep.subr.mxu0 0.0
    %1213 = vmatpush2.msra.mxu0 0.0
    %1214 = vmatprep.subr.mxu0 0.0
    %1215 = vmatpush2.msra.mxu0 0.0
    %1216 = vmatprep.subr.mxu0 0.0
    %1217 = vmatpush2.msra.mxu0 0.0
    %1218 = vmatprep.subr.mxu0 0.0
    %1219 = vmatpush2.msra.mxu0 0.0
    %1220 = vmatprep.subr.mxu0 0.0
    %1221 = vmatpush2.msra.mxu0 0.0
    %1222 = vmatprep.subr.mxu0 0.0
    %1223 = vmatpush2.msra.mxu0 0.0
    %1224 = vmatprep.subr.mxu0 0.0
    %1225 = vmatpush2.msra.mxu0 0.0
    %1226 = vmatprep.mubr.f32.mxu0 0.0
    %1227 = vmatmul.mubr.f32.gmra.mxu0 %v1154
    %v1228 = vpop.f32.mrf.mxu0
    %v1229 = vadd.f32 %v1063, %v1228
    %v1230 = vpop.f32.mrf.mxu0
    %1231 = vmatprep.mubr.f32.mxu0 0.0
    %1232 = vmatmul.mubr.f32.gmra.mxu0 %v1157
    %v1233 = vpop.f32.mrf.mxu0
    %v1234 = vadd.f32 %v1068, %v1233
    %v1235 = vpop.f32.mrf.mxu0
    %1236 = vdwg.mxu0
    %vm1237 = vcmask 257024
    %1238 = vst.msk [vmem:[#allocation5] sm:$0xf] %vm1237, %v985
    %1239 = vst.msk [vmem:[#allocation6] sm:$0xff] %vm821, %v1063
    %1240 = vst.msk [vmem:[#allocation6 + $0x8] sm:$0xff] %vm821, %v1068
    %1241 = vst.msk [vmem:[#allocation8] sm:$0xff] %vm821, %v1229
    %1242 = vst.msk [vmem:[#allocation8 + $0x8] sm:$0xff] %vm821, %v1234
    %vm1243 = vcmp.le.s32.totalorder %v573, 3
    %v1244 = vsel %vm1243, 1, 0
    %v1245 = vcvt.s32.f32 %v1244
    %v1246 = vmul.f32 %v1147, %v1245
    %v1247 = vsel %vm1237, %v1246, 0.0
    %v1248 = vrot.slane %v1247, 4
    %v1249 = vadd.f32 %v1247, %v1248
    %v1250 = vrot.slane %v1249, 2
    %v1251 = vadd.f32 %v1249, %v1250
    %v1252 = vrot.slane %v1251, 1
    %v1253 = vadd.f32 %v1251, %v1252
    %v1254 = vmul.f32 %v1253, 0.25
    %v1256 = vsel %vm738, %v1254, 0
    %1258 = vmatprep.subr.mxu0 0.0
    %1259 = vmatpush1.msra.mxu0 0.0
    %1260 = vmatprep.subr.mxu0 0.0
    %1261 = vmatpush1.msra.mxu0 0.0
    %1262 = vmatprep.subr.mxu0 0.0
    %1263 = vmatpush1.msra.mxu0 0.0
    %1264 = vmatprep.subr.mxu0 0.0
    %1265 = vmatpush1.msra.mxu0 0.0
    %1266 = vmatprep.subr.mxu0 0.0
    %1267 = vmatpush1.msra.mxu0 0.0
    %1268 = vmatprep.subr.mxu0 0.0
    %1269 = vmatpush1.msra.mxu0 0.0
    %1270 = vmatprep.subr.mxu0 0.0
    %1271 = vmatpush1.msra.mxu0 0.0
    %1272 = vmatprep.subr.mxu0 0.0
    %1273 = vmatpush1.msra.mxu0 0.0
    %1274 = vmatprep.subr.mxu0 0.0
    %1275 = vmatpush1.msra.mxu0 0.0
    %1276 = vmatprep.subr.mxu0 0.0
    %1277 = vmatpush1.msra.mxu0 0.0
    %1278 = vmatprep.subr.mxu0 0.0
    %1279 = vmatpush1.msra.mxu0 0.0
    %1280 = vmatprep.subr.mxu0 0.0
    %1281 = vmatpush1.msra.mxu0 0.0
    %1282 = vmatprep.subr.mxu0 0.0
    %1283 = vmatpush1.msra.mxu0 %v190
    %1284 = vmatprep.subr.mxu0 0.0
    %1285 = vmatpush1.msra.mxu0 %v189
    %1286 = vmatprep.subr.mxu0 0.0
    %1287 = vmatpush1.msra.mxu0 %v188
    %1288 = vmatprep.subr.mxu0 0.0
    %1289 = vmatpush1.msra.mxu0 %v187
    %1290 = vmatprep.subr.mxu0 0.0
    %1291 = vmatpush2.msra.mxu0 0.0
    %1292 = vmatprep.subr.mxu0 0.0
    %1293 = vmatpush2.msra.mxu0 0.0
    %1294 = vmatprep.subr.mxu0 0.0
    %1295 = vmatpush2.msra.mxu0 0.0
    %1296 = vmatprep.subr.mxu0 0.0
    %1297 = vmatpush2.msra.mxu0 0.0
    %1298 = vmatprep.subr.mxu0 0.0
    %1299 = vmatpush2.msra.mxu0 0.0
    %1300 = vmatprep.subr.mxu0 0.0
    %1301 = vmatpush2.msra.mxu0 0.0
    %1302 = vmatprep.subr.mxu0 0.0
    %1303 = vmatpush2.msra.mxu0 0.0
    %1304 = vmatprep.subr.mxu0 0.0
    %1305 = vmatpush2.msra.mxu0 0.0
    %1306 = vmatprep.subr.mxu0 0.0
    %1307 = vmatpush2.msra.mxu0 0.0
    %1308 = vmatprep.subr.mxu0 0.0
    %1309 = vmatpush2.msra.mxu0 0.0
    %1310 = vmatprep.subr.mxu0 0.0
    %1311 = vmatpush2.msra.mxu0 0.0
    %1312 = vmatprep.subr.mxu0 0.0
    %1313 = vmatpush2.msra.mxu0 0.0
    %1314 = vmatprep.subr.mxu0 0.0
    %1315 = vmatpush2.msra.mxu0 0.0
    %1316 = vmatprep.subr.mxu0 0.0
    %1317 = vmatpush2.msra.mxu0 0.0
    %1318 = vmatprep.subr.mxu0 0.0
    %1319 = vmatpush2.msra.mxu0 0.0
    %1320 = vmatprep.subr.mxu0 0.0
    %1321 = vmatpush2.msra.mxu0 0.0
    %1322 = vmatprep.mubr.f32.mxu0 0.0
    %1323 = vmatmul.mubr.f32.gmra.mxu0 %v1256
    %v1324 = vpop.f32.mrf.mxu0
    %v1325 = vadd.f32 %v195, %v1324
    %v1326 = vpop.f32.mrf.mxu0
    %1327 = vdwg.mxu0
    %v1329 = vsel %vm738, %v197, 0
    %1331 = vmatprep.subr.mxu0 0.0
    %1332 = vmatpush1.msra.mxu0 0.0
    %1333 = vmatprep.subr.mxu0 0.0
    %1334 = vmatpush1.msra.mxu0 0.0
    %1335 = vmatprep.subr.mxu0 0.0
    %1336 = vmatpush1.msra.mxu0 0.0
    %1337 = vmatprep.subr.mxu0 0.0
    %1338 = vmatpush1.msra.mxu0 0.0
    %1339 = vmatprep.subr.mxu0 0.0
    %1340 = vmatpush1.msra.mxu0 0.0
    %1341 = vmatprep.subr.mxu0 0.0
    %1342 = vmatpush1.msra.mxu0 0.0
    %1343 = vmatprep.subr.mxu0 0.0
    %1344 = vmatpush1.msra.mxu0 0.0
    %1345 = vmatprep.subr.mxu0 0.0
    %1346 = vmatpush1.msra.mxu0 0.0
    %1347 = vmatprep.subr.mxu0 0.0
    %1348 = vmatpush1.msra.mxu0 0.0
    %1349 = vmatprep.subr.mxu0 0.0
    %1350 = vmatpush1.msra.mxu0 0.0
    %1351 = vmatprep.subr.mxu0 0.0
    %1352 = vmatpush1.msra.mxu0 0.0
    %1353 = vmatprep.subr.mxu0 0.0
    %1354 = vmatpush1.msra.mxu0 0.0
    %1355 = vmatprep.subr.mxu0 0.0
    %1356 = vmatpush1.msra.mxu0 %v194
    %1357 = vmatprep.subr.mxu0 0.0
    %1358 = vmatpush1.msra.mxu0 %v193
    %1359 = vmatprep.subr.mxu0 0.0
    %1360 = vmatpush1.msra.mxu0 %v192
    %1361 = vmatprep.subr.mxu0 0.0
    %1362 = vmatpush1.msra.mxu0 %v191
    %1363 = vmatprep.subr.mxu0 0.0
    %1364 = vmatpush2.msra.mxu0 0.0
    %1365 = vmatprep.subr.mxu0 0.0
    %1366 = vmatpush2.msra.mxu0 0.0
    %1367 = vmatprep.subr.mxu0 0.0
    %1368 = vmatpush2.msra.mxu0 0.0
    %1369 = vmatprep.subr.mxu0 0.0
    %1370 = vmatpush2.msra.mxu0 0.0
    %1371 = vmatprep.subr.mxu0 0.0
    %1372 = vmatpush2.msra.mxu0 0.0
    %1373 = vmatprep.subr.mxu0 0.0
    %1374 = vmatpush2.msra.mxu0 0.0
    %1375 = vmatprep.subr.mxu0 0.0
    %1376 = vmatpush2.msra.mxu0 0.0
    %1377 = vmatprep.subr.mxu0 0.0
    %1378 = vmatpush2.msra.mxu0 0.0
    %1379 = vmatprep.subr.mxu0 0.0
    %1380 = vmatpush2.msra.mxu0 0.0
    %1381 = vmatprep.subr.mxu0 0.0
    %1382 = vmatpush2.msra.mxu0 0.0
    %1383 = vmatprep.subr.mxu0 0.0
    %1384 = vmatpush2.msra.mxu0 0.0
    %1385 = vmatprep.subr.mxu0 0.0
    %1386 = vmatpush2.msra.mxu0 0.0
    %1387 = vmatprep.subr.mxu0 0.0
    %1388 = vmatpush2.msra.mxu0 0.0
    %1389 = vmatprep.subr.mxu0 0.0
    %1390 = vmatpush2.msra.mxu0 0.0
    %1391 = vmatprep.subr.mxu0 0.0
    %1392 = vmatpush2.msra.mxu0 0.0
    %1393 = vmatprep.subr.mxu0 0.0
    %1394 = vmatpush2.msra.mxu0 0.0
    %1395 = vmatprep.mubr.f32.mxu0 0.0
    %1396 = vmatmul.mubr.f32.gmra.mxu0 %v1329
    %v1397 = vpop.f32.mrf.mxu0
    %v1398 = vadd.f32 %v196, %v1397
    %v1399 = vpop.f32.mrf.mxu0
    %1400 = vdwg.mxu0
    %v1401 = vadd.f32 %v1325, %v1398
    %v1402 = vxor.u32 %v1401, 2147483648
    %v1403 = vmul.f32 %v1402, 1.442695
    %v1404 = vpow.pop %v1403
    %v1405 = vadd.f32 %v1404, 1.0
    %v1406 = vrcp.pop %v1405
    %v1407 = vmul.f32 1.0, %v1406
    %1409 = vrot.lane.b32.xlu0 %v1398, 64
    %v1410 = vpop.permute.xlu0 %1409
    %v1412 = vmul.f32 %v1407, %v1410
    %1414 = vrot.lane.b32.xlu0 %v1412, 64
    %v1415 = vpop.permute.xlu0 %1414
    %v1417 = vadd.f32 %v1325, %v1415
    %v1418 = vtanh.pop %v1417
    %v1419 = vsub.f32 1.0, %v1407
    %1421 = vrot.lane.b32.xlu0 %v1418, 96
    %v1422 = vpop.permute.xlu0 %1421
    %v1424 = vmul.f32 %v1419, %v1422
    %v1425 = vlaneseq
    %v1426 = vshrl.u32 %v1425, 7
    %v1427 = vsub.s32 0, %v1426
    %v1428 = vrot.slane %v197, %v1427
    %1429 = vrot.lane.b32.xlu0 %v1428, 32
    %v1430 = vpop.permute.xlu0 %1429
    %v1432 = vmul.f32 %v1407, %v1430
    %v1433 = vadd.f32 %v1424, %v1432
    %s1434 = sld [smem:[#allocation2 + $0x3]]
    %v1435 = vstv %s1434
    %v1436 = vmul.f32 %v1433, %v1435
    %s1437 = ssub.f32 1.0, %s1434
    %v1438 = vstv %s1437
    %v1439 = vmul.f32 %v197, %v1438
    %v1441 = vlaneseq
    %v1442 = vshrl.u32 %v1441, 7
    %v1443 = vsub.s32 0, %v1442
    %v1444 = vrot.slane %v1439, %v1443
    %1445 = vrot.lane.b32.xlu0 %v1444, 32
    %v1446 = vpop.permute.xlu0 %1445
    %v1448 = vadd.f32 %v1436, %v1446
    %vm1449 = vcmp.le.s32.totalorder %v573, 2
    %v1450 = vsel %vm1449, 1, 0
    %v1451 = vcvt.s32.f32 %v1450
    %v1452 = vmul.f32 %v1147, %v1451
    %v1453 = vsel %vm1237, %v1452, 0.0
    %v1454 = vrot.slane %v1453, 4
    %v1455 = vadd.f32 %v1453, %v1454
    %v1456 = vrot.slane %v1455, 2
    %v1457 = vadd.f32 %v1455, %v1456
    %v1458 = vrot.slane %v1457, 1
    %v1459 = vadd.f32 %v1457, %v1458
    %v1460 = vmul.f32 %v1459, 0.33333334
    %v1462 = vsel %vm738, %v1460, 0
    %1464 = vmatprep.subr.mxu0 0.0
    %1465 = vmatpush1.msra.mxu0 0.0
    %1466 = vmatprep.subr.mxu0 0.0
    %1467 = vmatpush1.msra.mxu0 0.0
    %1468 = vmatprep.subr.mxu0 0.0
    %1469 = vmatpush1.msra.mxu0 0.0
    %1470 = vmatprep.subr.mxu0 0.0
    %1471 = vmatpush1.msra.mxu0 0.0
    %1472 = vmatprep.subr.mxu0 0.0
    %1473 = vmatpush1.msra.mxu0 0.0
    %1474 = vmatprep.subr.mxu0 0.0
    %1475 = vmatpush1.msra.mxu0 0.0
    %1476 = vmatprep.subr.mxu0 0.0
    %1477 = vmatpush1.msra.mxu0 0.0
    %1478 = vmatprep.subr.mxu0 0.0
    %1479 = vmatpush1.msra.mxu0 0.0
    %1480 = vmatprep.subr.mxu0 0.0
    %1481 = vmatpush1.msra.mxu0 0.0
    %1482 = vmatprep.subr.mxu0 0.0
    %1483 = vmatpush1.msra.mxu0 0.0
    %1484 = vmatprep.subr.mxu0 0.0
    %1485 = vmatpush1.msra.mxu0 0.0
    %1486 = vmatprep.subr.mxu0 0.0
    %1487 = vmatpush1.msra.mxu0 0.0
    %1488 = vmatprep.subr.mxu0 0.0
    %1489 = vmatpush1.msra.mxu0 %v190
    %1490 = vmatprep.subr.mxu0 0.0
    %1491 = vmatpush1.msra.mxu0 %v189
    %1492 = vmatprep.subr.mxu0 0.0
    %1493 = vmatpush1.msra.mxu0 %v188
    %1494 = vmatprep.subr.mxu0 0.0
    %1495 = vmatpush1.msra.mxu0 %v187
    %1496 = vmatprep.subr.mxu0 0.0
    %1497 = vmatpush2.msra.mxu0 0.0
    %1498 = vmatprep.subr.mxu0 0.0
    %1499 = vmatpush2.msra.mxu0 0.0
    %1500 = vmatprep.subr.mxu0 0.0
    %1501 = vmatpush2.msra.mxu0 0.0
    %1502 = vmatprep.subr.mxu0 0.0
    %1503 = vmatpush2.msra.mxu0 0.0
    %1504 = vmatprep.subr.mxu0 0.0
    %1505 = vmatpush2.msra.mxu0 0.0
    %1506 = vmatprep.subr.mxu0 0.0
    %1507 = vmatpush2.msra.mxu0 0.0
    %1508 = vmatprep.subr.mxu0 0.0
    %1509 = vmatpush2.msra.mxu0 0.0
    %1510 = vmatprep.subr.mxu0 0.0
    %1511 = vmatpush2.msra.mxu0 0.0
    %1512 = vmatprep.subr.mxu0 0.0
    %1513 = vmatpush2.msra.mxu0 0.0
    %1514 = vmatprep.subr.mxu0 0.0
    %1515 = vmatpush2.msra.mxu0 0.0
    %1516 = vmatprep.subr.mxu0 0.0
    %1517 = vmatpush2.msra.mxu0 0.0
    %1518 = vmatprep.subr.mxu0 0.0
    %1519 = vmatpush2.msra.mxu0 0.0
    %1520 = vmatprep.subr.mxu0 0.0
    %1521 = vmatpush2.msra.mxu0 0.0
    %1522 = vmatprep.subr.mxu0 0.0
    %1523 = vmatpush2.msra.mxu0 0.0
    %1524 = vmatprep.subr.mxu0 0.0
    %1525 = vmatpush2.msra.mxu0 0.0
    %1526 = vmatprep.subr.mxu0 0.0
    %1527 = vmatpush2.msra.mxu0 0.0
    %1528 = vmatprep.mubr.f32.mxu0 0.0
    %1529 = vmatmul.mubr.f32.gmra.mxu0 %v1462
    %v1530 = vpop.f32.mrf.mxu0
    %v1531 = vadd.f32 %v195, %v1530
    %v1532 = vpop.f32.mrf.mxu0
    %1533 = vdwg.mxu0
    %1535 = vrot.lane.b32.xlu0 %v1448, 96
    %v1536 = vpop.permute.xlu0 %1535
    %v1537 = vsel %vm738, %v1536, 0
    %1539 = vmatprep.subr.mxu0 0.0
    %1540 = vmatpush1.msra.mxu0 0.0
    %1541 = vmatprep.subr.mxu0 0.0
    %1542 = vmatpush1.msra.mxu0 0.0
    %1543 = vmatprep.subr.mxu0 0.0
    %1544 = vmatpush1.msra.mxu0 0.0
    %1545 = vmatprep.subr.mxu0 0.0
    %1546 = vmatpush1.msra.mxu0 0.0
    %1547 = vmatprep.subr.mxu0 0.0
    %1548 = vmatpush1.msra.mxu0 0.0
    %1549 = vmatprep.subr.mxu0 0.0
    %1550 = vmatpush1.msra.mxu0 0.0
    %1551 = vmatprep.subr.mxu0 0.0
    %1552 = vmatpush1.msra.mxu0 0.0
    %1553 = vmatprep.subr.mxu0 0.0
    %1554 = vmatpush1.msra.mxu0 0.0
    %1555 = vmatprep.subr.mxu0 0.0
    %1556 = vmatpush1.msra.mxu0 0.0
    %1557 = vmatprep.subr.mxu0 0.0
    %1558 = vmatpush1.msra.mxu0 0.0
    %1559 = vmatprep.subr.mxu0 0.0
    %1560 = vmatpush1.msra.mxu0 0.0
    %1561 = vmatprep.subr.mxu0 0.0
    %1562 = vmatpush1.msra.mxu0 0.0
    %1563 = vmatprep.subr.mxu0 0.0
    %1564 = vmatpush1.msra.mxu0 %v194
    %1565 = vmatprep.subr.mxu0 0.0
    %1566 = vmatpush1.msra.mxu0 %v193
    %1567 = vmatprep.subr.mxu0 0.0
    %1568 = vmatpush1.msra.mxu0 %v192
    %1569 = vmatprep.subr.mxu0 0.0
    %1570 = vmatpush1.msra.mxu0 %v191
    %1571 = vmatprep.subr.mxu0 0.0
    %1572 = vmatpush2.msra.mxu0 0.0
    %1573 = vmatprep.subr.mxu0 0.0
    %1574 = vmatpush2.msra.mxu0 0.0
    %1575 = vmatprep.subr.mxu0 0.0
    %1576 = vmatpush2.msra.mxu0 0.0
    %1577 = vmatprep.subr.mxu0 0.0
    %1578 = vmatpush2.msra.mxu0 0.0
    %1579 = vmatprep.subr.mxu0 0.0
    %1580 = vmatpush2.msra.mxu0 0.0
    %1581 = vmatprep.subr.mxu0 0.0
    %1582 = vmatpush2.msra.mxu0 0.0
    %1583 = vmatprep.subr.mxu0 0.0
    %1584 = vmatpush2.msra.mxu0 0.0
    %1585 = vmatprep.subr.mxu0 0.0
    %1586 = vmatpush2.msra.mxu0 0.0
    %1587 = vmatprep.subr.mxu0 0.0
    %1588 = vmatpush2.msra.mxu0 0.0
    %1589 = vmatprep.subr.mxu0 0.0
    %1590 = vmatpush2.msra.mxu0 0.0
    %1591 = vmatprep.subr.mxu0 0.0
    %1592 = vmatpush2.msra.mxu0 0.0
    %1593 = vmatprep.subr.mxu0 0.0
    %1594 = vmatpush2.msra.mxu0 0.0
    %1595 = vmatprep.subr.mxu0 0.0
    %1596 = vmatpush2.msra.mxu0 0.0
    %1597 = vmatprep.subr.mxu0 0.0
    %1598 = vmatpush2.msra.mxu0 0.0
    %1599 = vmatprep.subr.mxu0 0.0
    %1600 = vmatpush2.msra.mxu0 0.0
    %1601 = vmatprep.subr.mxu0 0.0
    %1602 = vmatpush2.msra.mxu0 0.0
    %1603 = vmatprep.mubr.f32.mxu0 0.0
    %1604 = vmatmul.mubr.f32.gmra.mxu0 %v1537
    %v1605 = vpop.f32.mrf.mxu0
    %v1606 = vadd.f32 %v196, %v1605
    %v1607 = vpop.f32.mrf.mxu0
    %1608 = vdwg.mxu0
    %v1609 = vadd.f32 %v1531, %v1606
    %v1610 = vxor.u32 %v1609, 2147483648
    %v1611 = vmul.f32 %v1610, 1.442695
    %v1612 = vpow.pop %v1611
    %v1613 = vadd.f32 %v1612, 1.0
    %v1614 = vrcp.pop %v1613
    %v1615 = vmul.f32 1.0, %v1614
    %1617 = vrot.lane.b32.xlu0 %v1606, 64
    %v1618 = vpop.permute.xlu0 %1617
    %v1620 = vmul.f32 %v1615, %v1618
    %1622 = vrot.lane.b32.xlu0 %v1620, 64
    %v1623 = vpop.permute.xlu0 %1622
    %v1625 = vadd.f32 %v1531, %v1623
    %v1626 = vtanh.pop %v1625
    %v1627 = vsub.f32 1.0, %v1615
    %1629 = vrot.lane.b32.xlu0 %v1626, 96
    %v1630 = vpop.permute.xlu0 %1629
    %v1632 = vmul.f32 %v1627, %v1630
    %v1633 = vmul.f32 %v1615, %v1448
    %v1634 = vadd.f32 %v1632, %v1633
    %s1635 = sld [smem:[#allocation2 + $0x2]]
    %v1636 = vstv %s1635
    %v1637 = vmul.f32 %v1634, %v1636
    %s1638 = ssub.f32 1.0, %s1635
    %v1639 = vstv %s1638
    %v1640 = vmul.f32 %v1448, %v1639
    %v1641 = vadd.f32 %v1637, %v1640
    %vm1642 = vcmp.le.s32.totalorder %v573, 1
    %v1643 = vsel %vm1642, 1, 0
    %v1644 = vcvt.s32.f32 %v1643
    %v1645 = vmul.f32 %v1147, %v1644
    %v1646 = vsel %vm1237, %v1645, 0.0
    %v1647 = vrot.slane %v1646, 4
    %v1648 = vadd.f32 %v1646, %v1647
    %v1649 = vrot.slane %v1648, 2
    %v1650 = vadd.f32 %v1648, %v1649
    %v1651 = vrot.slane %v1650, 1
    %v1652 = vadd.f32 %v1650, %v1651
    %v1653 = vmul.f32 %v1652, 0.5
    %v1655 = vsel %vm738, %v1653, 0
    %1657 = vmatprep.subr.mxu0 0.0
    %1658 = vmatpush1.msra.mxu0 0.0
    %1659 = vmatprep.subr.mxu0 0.0
    %1660 = vmatpush1.msra.mxu0 0.0
    %1661 = vmatprep.subr.mxu0 0.0
    %1662 = vmatpush1.msra.mxu0 0.0
    %1663 = vmatprep.subr.mxu0 0.0
    %1664 = vmatpush1.msra.mxu0 0.0
    %1665 = vmatprep.subr.mxu0 0.0
    %1666 = vmatpush1.msra.mxu0 0.0
    %1667 = vmatprep.subr.mxu0 0.0
    %1668 = vmatpush1.msra.mxu0 0.0
    %1669 = vmatprep.subr.mxu0 0.0
    %1670 = vmatpush1.msra.mxu0 0.0
    %1671 = vmatprep.subr.mxu0 0.0
    %1672 = vmatpush1.msra.mxu0 0.0
    %1673 = vmatprep.subr.mxu0 0.0
    %1674 = vmatpush1.msra.mxu0 0.0
    %1675 = vmatprep.subr.mxu0 0.0
    %1676 = vmatpush1.msra.mxu0 0.0
    %1677 = vmatprep.subr.mxu0 0.0
    %1678 = vmatpush1.msra.mxu0 0.0
    %1679 = vmatprep.subr.mxu0 0.0
    %1680 = vmatpush1.msra.mxu0 0.0
    %1681 = vmatprep.subr.mxu0 0.0
    %1682 = vmatpush1.msra.mxu0 %v190
    %1683 = vmatprep.subr.mxu0 0.0
    %1684 = vmatpush1.msra.mxu0 %v189
    %1685 = vmatprep.subr.mxu0 0.0
    %1686 = vmatpush1.msra.mxu0 %v188
    %1687 = vmatprep.subr.mxu0 0.0
    %1688 = vmatpush1.msra.mxu0 %v187
    %1689 = vmatprep.subr.mxu0 0.0
    %1690 = vmatpush2.msra.mxu0 0.0
    %1691 = vmatprep.subr.mxu0 0.0
    %1692 = vmatpush2.msra.mxu0 0.0
    %1693 = vmatprep.subr.mxu0 0.0
    %1694 = vmatpush2.msra.mxu0 0.0
    %1695 = vmatprep.subr.mxu0 0.0
    %1696 = vmatpush2.msra.mxu0 0.0
    %1697 = vmatprep.subr.mxu0 0.0
    %1698 = vmatpush2.msra.mxu0 0.0
    %1699 = vmatprep.subr.mxu0 0.0
    %1700 = vmatpush2.msra.mxu0 0.0
    %1701 = vmatprep.subr.mxu0 0.0
    %1702 = vmatpush2.msra.mxu0 0.0
    %1703 = vmatprep.subr.mxu0 0.0
    %1704 = vmatpush2.msra.mxu0 0.0
    %1705 = vmatprep.subr.mxu0 0.0
    %1706 = vmatpush2.msra.mxu0 0.0
    %1707 = vmatprep.subr.mxu0 0.0
    %1708 = vmatpush2.msra.mxu0 0.0
    %1709 = vmatprep.subr.mxu0 0.0
    %1710 = vmatpush2.msra.mxu0 0.0
    %1711 = vmatprep.subr.mxu0 0.0
    %1712 = vmatpush2.msra.mxu0 0.0
    %1713 = vmatprep.subr.mxu0 0.0
    %1714 = vmatpush2.msra.mxu0 0.0
    %1715 = vmatprep.subr.mxu0 0.0
    %1716 = vmatpush2.msra.mxu0 0.0
    %1717 = vmatprep.subr.mxu0 0.0
    %1718 = vmatpush2.msra.mxu0 0.0
    %1719 = vmatprep.subr.mxu0 0.0
    %1720 = vmatpush2.msra.mxu0 0.0
    %1721 = vmatprep.mubr.f32.mxu0 0.0
    %1722 = vmatmul.mubr.f32.gmra.mxu0 %v1655
    %v1723 = vpop.f32.mrf.mxu0
    %v1724 = vadd.f32 %v195, %v1723
    %v1725 = vpop.f32.mrf.mxu0
    %1726 = vdwg.mxu0
    %1728 = vrot.lane.b32.xlu0 %v1641, 96
    %v1729 = vpop.permute.xlu0 %1728
    %v1730 = vsel %vm738, %v1729, 0
    %1732 = vmatprep.subr.mxu0 0.0
    %1733 = vmatpush1.msra.mxu0 0.0
    %1734 = vmatprep.subr.mxu0 0.0
    %1735 = vmatpush1.msra.mxu0 0.0
    %1736 = vmatprep.subr.mxu0 0.0
    %1737 = vmatpush1.msra.mxu0 0.0
    %1738 = vmatprep.subr.mxu0 0.0
    %1739 = vmatpush1.msra.mxu0 0.0
    %1740 = vmatprep.subr.mxu0 0.0
    %1741 = vmatpush1.msra.mxu0 0.0
    %1742 = vmatprep.subr.mxu0 0.0
    %1743 = vmatpush1.msra.mxu0 0.0
    %1744 = vmatprep.subr.mxu0 0.0
    %1745 = vmatpush1.msra.mxu0 0.0
    %1746 = vmatprep.subr.mxu0 0.0
    %1747 = vmatpush1.msra.mxu0 0.0
    %1748 = vmatprep.subr.mxu0 0.0
    %1749 = vmatpush1.msra.mxu0 0.0
    %1750 = vmatprep.subr.mxu0 0.0
    %1751 = vmatpush1.msra.mxu0 0.0
    %1752 = vmatprep.subr.mxu0 0.0
    %1753 = vmatpush1.msra.mxu0 0.0
    %1754 = vmatprep.subr.mxu0 0.0
    %1755 = vmatpush1.msra.mxu0 0.0
    %1756 = vmatprep.subr.mxu0 0.0
    %1757 = vmatpush1.msra.mxu0 %v194
    %1758 = vmatprep.subr.mxu0 0.0
    %1759 = vmatpush1.msra.mxu0 %v193
    %1760 = vmatprep.subr.mxu0 0.0
    %1761 = vmatpush1.msra.mxu0 %v192
    %1762 = vmatprep.subr.mxu0 0.0
    %1763 = vmatpush1.msra.mxu0 %v191
    %1764 = vmatprep.subr.mxu0 0.0
    %1765 = vmatpush2.msra.mxu0 0.0
    %1766 = vmatprep.subr.mxu0 0.0
    %1767 = vmatpush2.msra.mxu0 0.0
    %1768 = vmatprep.subr.mxu0 0.0
    %1769 = vmatpush2.msra.mxu0 0.0
    %1770 = vmatprep.subr.mxu0 0.0
    %1771 = vmatpush2.msra.mxu0 0.0
    %1772 = vmatprep.subr.mxu0 0.0
    %1773 = vmatpush2.msra.mxu0 0.0
    %1774 = vmatprep.subr.mxu0 0.0
    %1775 = vmatpush2.msra.mxu0 0.0
    %1776 = vmatprep.subr.mxu0 0.0
    %1777 = vmatpush2.msra.mxu0 0.0
    %1778 = vmatprep.subr.mxu0 0.0
    %1779 = vmatpush2.msra.mxu0 0.0
    %1780 = vmatprep.subr.mxu0 0.0
    %1781 = vmatpush2.msra.mxu0 0.0
    %1782 = vmatprep.subr.mxu0 0.0
    %1783 = vmatpush2.msra.mxu0 0.0
    %1784 = vmatprep.subr.mxu0 0.0
    %1785 = vmatpush2.msra.mxu0 0.0
    %1786 = vmatprep.subr.mxu0 0.0
    %1787 = vmatpush2.msra.mxu0 0.0
    %1788 = vmatprep.subr.mxu0 0.0
    %1789 = vmatpush2.msra.mxu0 0.0
    %1790 = vmatprep.subr.mxu0 0.0
    %1791 = vmatpush2.msra.mxu0 0.0
    %1792 = vmatprep.subr.mxu0 0.0
    %1793 = vmatpush2.msra.mxu0 0.0
    %1794 = vmatprep.subr.mxu0 0.0
    %1795 = vmatpush2.msra.mxu0 0.0
    %1796 = vmatprep.mubr.f32.mxu0 0.0
    %1797 = vmatmul.mubr.f32.gmra.mxu0 %v1730
    %v1798 = vpop.f32.mrf.mxu0
    %v1799 = vadd.f32 %v196, %v1798
    %v1800 = vpop.f32.mrf.mxu0
    %1801 = vdwg.mxu0
    %v1802 = vadd.f32 %v1724, %v1799
    %v1803 = vxor.u32 %v1802, 2147483648
    %v1804 = vmul.f32 %v1803, 1.442695
    %v1805 = vpow.pop %v1804
    %v1806 = vadd.f32 %v1805, 1.0
    %v1807 = vrcp.pop %v1806
    %v1808 = vmul.f32 1.0, %v1807
    %1810 = vrot.lane.b32.xlu0 %v1799, 64
    %v1811 = vpop.permute.xlu0 %1810
    %v1813 = vmul.f32 %v1808, %v1811
    %1815 = vrot.lane.b32.xlu0 %v1813, 64
    %v1816 = vpop.permute.xlu0 %1815
    %v1818 = vadd.f32 %v1724, %v1816
    %v1819 = vtanh.pop %v1818
    %v1820 = vsub.f32 1.0, %v1808
    %1822 = vrot.lane.b32.xlu0 %v1819, 96
    %v1823 = vpop.permute.xlu0 %1822
    %v1825 = vmul.f32 %v1820, %v1823
    %v1826 = vmul.f32 %v1808, %v1641
    %v1827 = vadd.f32 %v1825, %v1826
    %s1828 = sld [smem:[#allocation2 + $0x1]]
    %v1829 = vstv %s1828
    %v1830 = vmul.f32 %v1827, %v1829
    %s1831 = ssub.f32 1.0, %s1828
    %v1832 = vstv %s1831
    %v1833 = vmul.f32 %v1641, %v1832
    %v1834 = vadd.f32 %v1830, %v1833
    %vm1835 = vcmp.le.s32.totalorder %v573, 0
    %v1836 = vsel %vm1835, 1, 0
    %v1837 = vcvt.s32.f32 %v1836
    %v1838 = vmul.f32 %v1147, %v1837
    %v1839 = vsel %vm1237, %v1838, 0.0
    %v1840 = vrot.slane %v1839, 4
    %v1841 = vadd.f32 %v1839, %v1840
    %v1842 = vrot.slane %v1841, 2
    %v1843 = vadd.f32 %v1841, %v1842
    %v1844 = vrot.slane %v1843, 1
    %v1845 = vadd.f32 %v1843, %v1844
    %v1847 = vsel %vm738, %v1845, 0
    %1849 = vmatprep.subr.mxu0 0.0
    %1850 = vmatpush1.msra.mxu0 0.0
    %1851 = vmatprep.subr.mxu0 0.0
    %1852 = vmatpush1.msra.mxu0 0.0
    %1853 = vmatprep.subr.mxu0 0.0
    %1854 = vmatpush1.msra.mxu0 0.0
    %1855 = vmatprep.subr.mxu0 0.0
    %1856 = vmatpush1.msra.mxu0 0.0
    %1857 = vmatprep.subr.mxu0 0.0
    %1858 = vmatpush1.msra.mxu0 0.0
    %1859 = vmatprep.subr.mxu0 0.0
    %1860 = vmatpush1.msra.mxu0 0.0
    %1861 = vmatprep.subr.mxu0 0.0
    %1862 = vmatpush1.msra.mxu0 0.0
    %1863 = vmatprep.subr.mxu0 0.0
    %1864 = vmatpush1.msra.mxu0 0.0
    %1865 = vmatprep.subr.mxu0 0.0
    %1866 = vmatpush1.msra.mxu0 0.0
    %1867 = vmatprep.subr.mxu0 0.0
    %1868 = vmatpush1.msra.mxu0 0.0
    %1869 = vmatprep.subr.mxu0 0.0
    %1870 = vmatpush1.msra.mxu0 0.0
    %1871 = vmatprep.subr.mxu0 0.0
    %1872 = vmatpush1.msra.mxu0 0.0
    %1873 = vmatprep.subr.mxu0 0.0
    %1874 = vmatpush1.msra.mxu0 %v190
    %1875 = vmatprep.subr.mxu0 0.0
    %1876 = vmatpush1.msra.mxu0 %v189
    %1877 = vmatprep.subr.mxu0 0.0
    %1878 = vmatpush1.msra.mxu0 %v188
    %1879 = vmatprep.subr.mxu0 0.0
    %1880 = vmatpush1.msra.mxu0 %v187
    %1881 = vmatprep.subr.mxu0 0.0
    %1882 = vmatpush2.msra.mxu0 0.0
    %1883 = vmatprep.subr.mxu0 0.0
    %1884 = vmatpush2.msra.mxu0 0.0
    %1885 = vmatprep.subr.mxu0 0.0
    %1886 = vmatpush2.msra.mxu0 0.0
    %1887 = vmatprep.subr.mxu0 0.0
    %1888 = vmatpush2.msra.mxu0 0.0
    %1889 = vmatprep.subr.mxu0 0.0
    %1890 = vmatpush2.msra.mxu0 0.0
    %1891 = vmatprep.subr.mxu0 0.0
    %1892 = vmatpush2.msra.mxu0 0.0
    %1893 = vmatprep.subr.mxu0 0.0
    %1894 = vmatpush2.msra.mxu0 0.0
    %1895 = vmatprep.subr.mxu0 0.0
    %1896 = vmatpush2.msra.mxu0 0.0
    %1897 = vmatprep.subr.mxu0 0.0
    %1898 = vmatpush2.msra.mxu0 0.0
    %1899 = vmatprep.subr.mxu0 0.0
    %1900 = vmatpush2.msra.mxu0 0.0
    %1901 = vmatprep.subr.mxu0 0.0
    %1902 = vmatpush2.msra.mxu0 0.0
    %1903 = vmatprep.subr.mxu0 0.0
    %1904 = vmatpush2.msra.mxu0 0.0
    %1905 = vmatprep.subr.mxu0 0.0
    %1906 = vmatpush2.msra.mxu0 0.0
    %1907 = vmatprep.subr.mxu0 0.0
    %1908 = vmatpush2.msra.mxu0 0.0
    %1909 = vmatprep.subr.mxu0 0.0
    %1910 = vmatpush2.msra.mxu0 0.0
    %1911 = vmatprep.subr.mxu0 0.0
    %1912 = vmatpush2.msra.mxu0 0.0
    %1913 = vmatprep.mubr.f32.mxu0 0.0
    %1914 = vmatmul.mubr.f32.gmra.mxu0 %v1847
    %v1915 = vpop.f32.mrf.mxu0
    %v1916 = vadd.f32 %v195, %v1915
    %v1917 = vpop.f32.mrf.mxu0
    %1918 = vdwg.mxu0
    %1920 = vrot.lane.b32.xlu0 %v1834, 96
    %v1921 = vpop.permute.xlu0 %1920
    %v1922 = vsel %vm738, %v1921, 0
    %1924 = vmatprep.subr.mxu0 0.0
    %1925 = vmatpush1.msra.mxu0 0.0
    %1926 = vmatprep.subr.mxu0 0.0
    %1927 = vmatpush1.msra.mxu0 0.0
    %1928 = vmatprep.subr.mxu0 0.0
    %1929 = vmatpush1.msra.mxu0 0.0
    %1930 = vmatprep.subr.mxu0 0.0
    %1931 = vmatpush1.msra.mxu0 0.0
    %1932 = vmatprep.subr.mxu0 0.0
    %1933 = vmatpush1.msra.mxu0 0.0
    %1934 = vmatprep.subr.mxu0 0.0
    %1935 = vmatpush1.msra.mxu0 0.0
    %1936 = vmatprep.subr.mxu0 0.0
    %1937 = vmatpush1.msra.mxu0 0.0
    %1938 = vmatprep.subr.mxu0 0.0
    %1939 = vmatpush1.msra.mxu0 0.0
    %1940 = vmatprep.subr.mxu0 0.0
    %1941 = vmatpush1.msra.mxu0 0.0
    %1942 = vmatprep.subr.mxu0 0.0
    %1943 = vmatpush1.msra.mxu0 0.0
    %1944 = vmatprep.subr.mxu0 0.0
    %1945 = vmatpush1.msra.mxu0 0.0
    %1946 = vmatprep.subr.mxu0 0.0
    %1947 = vmatpush1.msra.mxu0 0.0
    %1948 = vmatprep.subr.mxu0 0.0
    %1949 = vmatpush1.msra.mxu0 %v194
    %1950 = vmatprep.subr.mxu0 0.0
    %1951 = vmatpush1.msra.mxu0 %v193
    %1952 = vmatprep.subr.mxu0 0.0
    %1953 = vmatpush1.msra.mxu0 %v192
    %1954 = vmatprep.subr.mxu0 0.0
    %1955 = vmatpush1.msra.mxu0 %v191
    %1956 = vmatprep.subr.mxu0 0.0
    %1957 = vmatpush2.msra.mxu0 0.0
    %1958 = vmatprep.subr.mxu0 0.0
    %1959 = vmatpush2.msra.mxu0 0.0
    %1960 = vmatprep.subr.mxu0 0.0
    %1961 = vmatpush2.msra.mxu0 0.0
    %1962 = vmatprep.subr.mxu0 0.0
    %1963 = vmatpush2.msra.mxu0 0.0
    %1964 = vmatprep.subr.mxu0 0.0
    %1965 = vmatpush2.msra.mxu0 0.0
    %1966 = vmatprep.subr.mxu0 0.0
    %1967 = vmatpush2.msra.mxu0 0.0
    %1968 = vmatprep.subr.mxu0 0.0
    %1969 = vmatpush2.msra.mxu0 0.0
    %1970 = vmatprep.subr.mxu0 0.0
    %1971 = vmatpush2.msra.mxu0 0.0
    %1972 = vmatprep.subr.mxu0 0.0
    %1973 = vmatpush2.msra.mxu0 0.0
    %1974 = vmatprep.subr.mxu0 0.0
    %1975 = vmatpush2.msra.mxu0 0.0
    %1976 = vmatprep.subr.mxu0 0.0
    %1977 = vmatpush2.msra.mxu0 0.0
    %1978 = vmatprep.subr.mxu0 0.0
    %1979 = vmatpush2.msra.mxu0 0.0
    %1980 = vmatprep.subr.mxu0 0.0
    %1981 = vmatpush2.msra.mxu0 0.0
    %1982 = vmatprep.subr.mxu0 0.0
    %1983 = vmatpush2.msra.mxu0 0.0
    %1984 = vmatprep.subr.mxu0 0.0
    %1985 = vmatpush2.msra.mxu0 0.0
    %1986 = vmatprep.subr.mxu0 0.0
    %1987 = vmatpush2.msra.mxu0 0.0
    %1988 = vmatprep.mubr.f32.mxu0 0.0
    %1989 = vmatmul.mubr.f32.gmra.mxu0 %v1922
    %v1990 = vpop.f32.mrf.mxu0
    %v1991 = vadd.f32 %v196, %v1990
    %v1992 = vpop.f32.mrf.mxu0
    %1993 = vdwg.mxu0
    %v1994 = vadd.f32 %v1916, %v1991
    %v1995 = vxor.u32 %v1994, 2147483648
    %v1996 = vmul.f32 %v1995, 1.442695
    %v1997 = vpow.pop %v1996
    %v1998 = vadd.f32 %v1997, 1.0
    %v1999 = vrcp.pop %v1998
    %v2000 = vmul.f32 1.0, %v1999
    %2002 = vrot.lane.b32.xlu0 %v1991, 64
    %v2003 = vpop.permute.xlu0 %2002
    %v2005 = vmul.f32 %v2000, %v2003
    %2007 = vrot.lane.b32.xlu0 %v2005, 64
    %v2008 = vpop.permute.xlu0 %2007
    %v2010 = vadd.f32 %v1916, %v2008
    %v2011 = vtanh.pop %v2010
    %v2012 = vsub.f32 1.0, %v2000
    %2014 = vrot.lane.b32.xlu0 %v2011, 96
    %v2015 = vpop.permute.xlu0 %2014
    %v2017 = vmul.f32 %v2012, %v2015
    %v2018 = vmul.f32 %v2000, %v1834
    %v2019 = vadd.f32 %v2017, %v2018
    %s2020 = sld [smem:[#allocation2]]
    %v2021 = vstv %s2020
    %v2022 = vmul.f32 %v2019, %v2021
    %s2023 = ssub.f32 1.0, %s2020
    %v2024 = vstv %s2023
    %v2025 = vmul.f32 %v1834, %v2024
    %v2026 = vadd.f32 %v2022, %v2025
    %v2028 = vsel %vm738, %v198, 0
    %2030 = vmatprep.subr.mxu0 0.0
    %2031 = vmatpush1.msra.mxu0 0.0
    %2032 = vmatprep.subr.mxu0 0.0
    %2033 = vmatpush1.msra.mxu0 0.0
    %2034 = vmatprep.subr.mxu0 0.0
    %2035 = vmatpush1.msra.mxu0 0.0
    %2036 = vmatprep.subr.mxu0 0.0
    %2037 = vmatpush1.msra.mxu0 0.0
    %2038 = vmatprep.subr.mxu0 0.0
    %2039 = vmatpush1.msra.mxu0 0.0
    %2040 = vmatprep.subr.mxu0 0.0
    %2041 = vmatpush1.msra.mxu0 0.0
    %2042 = vmatprep.subr.mxu0 0.0
    %2043 = vmatpush1.msra.mxu0 0.0
    %2044 = vmatprep.subr.mxu0 0.0
    %2045 = vmatpush1.msra.mxu0 0.0
    %2046 = vmatprep.subr.mxu0 0.0
    %2047 = vmatpush1.msra.mxu0 0.0
    %2048 = vmatprep.subr.mxu0 0.0
    %2049 = vmatpush1.msra.mxu0 0.0
    %2050 = vmatprep.subr.mxu0 0.0
    %2051 = vmatpush1.msra.mxu0 0.0
    %2052 = vmatprep.subr.mxu0 0.0
    %2053 = vmatpush1.msra.mxu0 0.0
    %2054 = vmatprep.subr.mxu0 0.0
    %2055 = vmatpush1.msra.mxu0 %v190
    %2056 = vmatprep.subr.mxu0 0.0
    %2057 = vmatpush1.msra.mxu0 %v189
    %2058 = vmatprep.subr.mxu0 0.0
    %2059 = vmatpush1.msra.mxu0 %v188
    %2060 = vmatprep.subr.mxu0 0.0
    %2061 = vmatpush1.msra.mxu0 %v187
    %2062 = vmatprep.subr.mxu0 0.0
    %2063 = vmatpush2.msra.mxu0 0.0
    %2064 = vmatprep.subr.mxu0 0.0
    %2065 = vmatpush2.msra.mxu0 0.0
    %2066 = vmatprep.subr.mxu0 0.0
    %2067 = vmatpush2.msra.mxu0 0.0
    %2068 = vmatprep.subr.mxu0 0.0
    %2069 = vmatpush2.msra.mxu0 0.0
    %2070 = vmatprep.subr.mxu0 0.0
    %2071 = vmatpush2.msra.mxu0 0.0
    %2072 = vmatprep.subr.mxu0 0.0
    %2073 = vmatpush2.msra.mxu0 0.0
    %2074 = vmatprep.subr.mxu0 0.0
    %2075 = vmatpush2.msra.mxu0 0.0
    %2076 = vmatprep.subr.mxu0 0.0
    %2077 = vmatpush2.msra.mxu0 0.0
    %2078 = vmatprep.subr.mxu0 0.0
    %2079 = vmatpush2.msra.mxu0 0.0
    %2080 = vmatprep.subr.mxu0 0.0
    %2081 = vmatpush2.msra.mxu0 0.0
    %2082 = vmatprep.subr.mxu0 0.0
    %2083 = vmatpush2.msra.mxu0 0.0
    %2084 = vmatprep.subr.mxu0 0.0
    %2085 = vmatpush2.msra.mxu0 0.0
    %2086 = vmatprep.subr.mxu0 0.0
    %2087 = vmatpush2.msra.mxu0 0.0
    %2088 = vmatprep.subr.mxu0 0.0
    %2089 = vmatpush2.msra.mxu0 0.0
    %2090 = vmatprep.subr.mxu0 0.0
    %2091 = vmatpush2.msra.mxu0 0.0
    %2092 = vmatprep.subr.mxu0 0.0
    %2093 = vmatpush2.msra.mxu0 0.0
    %2094 = vmatprep.mubr.f32.mxu0 0.0
    %2095 = vmatmul.mubr.f32.gmra.mxu0 %v2028
    %v2096 = vpop.f32.mrf.mxu0
    %v2097 = vadd.f32 %v195, %v2096
    %v2098 = vpop.f32.mrf.mxu0
    %2099 = vdwg.mxu0
    %2101 = vrot.lane.b32.xlu0 %v2026, 96
    %v2102 = vpop.permute.xlu0 %2101
    %v2103 = vsel %vm738, %v2102, 0
    %2105 = vmatprep.subr.mxu0 0.0
    %2106 = vmatpush1.msra.mxu0 0.0
    %2107 = vmatprep.subr.mxu0 0.0
    %2108 = vmatpush1.msra.mxu0 0.0
    %2109 = vmatprep.subr.mxu0 0.0
    %2110 = vmatpush1.msra.mxu0 0.0
    %2111 = vmatprep.subr.mxu0 0.0
    %2112 = vmatpush1.msra.mxu0 0.0
    %2113 = vmatprep.subr.mxu0 0.0
    %2114 = vmatpush1.msra.mxu0 0.0
    %2115 = vmatprep.subr.mxu0 0.0
    %2116 = vmatpush1.msra.mxu0 0.0
    %2117 = vmatprep.subr.mxu0 0.0
    %2118 = vmatpush1.msra.mxu0 0.0
    %2119 = vmatprep.subr.mxu0 0.0
    %2120 = vmatpush1.msra.mxu0 0.0
    %2121 = vmatprep.subr.mxu0 0.0
    %2122 = vmatpush1.msra.mxu0 0.0
    %2123 = vmatprep.subr.mxu0 0.0
    %2124 = vmatpush1.msra.mxu0 0.0
    %2125 = vmatprep.subr.mxu0 0.0
    %2126 = vmatpush1.msra.mxu0 0.0
    %2127 = vmatprep.subr.mxu0 0.0
    %2128 = vmatpush1.msra.mxu0 0.0
    %2129 = vmatprep.subr.mxu0 0.0
    %2130 = vmatpush1.msra.mxu0 %v194
    %2131 = vmatprep.subr.mxu0 0.0
    %2132 = vmatpush1.msra.mxu0 %v193
    %2133 = vmatprep.subr.mxu0 0.0
    %2134 = vmatpush1.msra.mxu0 %v192
    %2135 = vmatprep.subr.mxu0 0.0
    %2136 = vmatpush1.msra.mxu0 %v191
    %2137 = vmatprep.subr.mxu0 0.0
    %2138 = vmatpush2.msra.mxu0 0.0
    %2139 = vmatprep.subr.mxu0 0.0
    %2140 = vmatpush2.msra.mxu0 0.0
    %2141 = vmatprep.subr.mxu0 0.0
    %2142 = vmatpush2.msra.mxu0 0.0
    %2143 = vmatprep.subr.mxu0 0.0
    %2144 = vmatpush2.msra.mxu0 0.0
    %2145 = vmatprep.subr.mxu0 0.0
    %2146 = vmatpush2.msra.mxu0 0.0
    %2147 = vmatprep.subr.mxu0 0.0
    %2148 = vmatpush2.msra.mxu0 0.0
    %2149 = vmatprep.subr.mxu0 0.0
    %2150 = vmatpush2.msra.mxu0 0.0
    %2151 = vmatprep.subr.mxu0 0.0
    %2152 = vmatpush2.msra.mxu0 0.0
    %2153 = vmatprep.subr.mxu0 0.0
    %2154 = vmatpush2.msra.mxu0 0.0
    %2155 = vmatprep.subr.mxu0 0.0
    %2156 = vmatpush2.msra.mxu0 0.0
    %2157 = vmatprep.subr.mxu0 0.0
    %2158 = vmatpush2.msra.mxu0 0.0
    %2159 = vmatprep.subr.mxu0 0.0
    %2160 = vmatpush2.msra.mxu0 0.0
    %2161 = vmatprep.subr.mxu0 0.0
    %2162 = vmatpush2.msra.mxu0 0.0
    %2163 = vmatprep.subr.mxu0 0.0
    %2164 = vmatpush2.msra.mxu0 0.0
    %2165 = vmatprep.subr.mxu0 0.0
    %2166 = vmatpush2.msra.mxu0 0.0
    %2167 = vmatprep.subr.mxu0 0.0
    %2168 = vmatpush2.msra.mxu0 0.0
    %2169 = vmatprep.mubr.f32.mxu0 0.0
    %2170 = vmatmul.mubr.f32.gmra.mxu0 %v2103
    %v2171 = vpop.f32.mrf.mxu0
    %v2172 = vadd.f32 %v196, %v2171
    %v2173 = vpop.f32.mrf.mxu0
    %2174 = vdwg.mxu0
    %v2175 = vadd.f32 %v2097, %v2172
    %v2176 = vxor.u32 %v2175, 2147483648
    %v2177 = vmul.f32 %v2176, 1.442695
    %v2178 = vpow.pop %v2177
    %v2179 = vadd.f32 %v2178, 1.0
    %v2180 = vrcp.pop %v2179
    %v2181 = vmul.f32 1.0, %v2180
    %2183 = vrot.lane.b32.xlu0 %v2172, 64
    %v2184 = vpop.permute.xlu0 %2183
    %v2186 = vmul.f32 %v2181, %v2184
    %2188 = vrot.lane.b32.xlu0 %v2186, 64
    %v2189 = vpop.permute.xlu0 %2188
    %v2191 = vadd.f32 %v2097, %v2189
    %v2192 = vtanh.pop %v2191
    %v2193 = vsub.f32 1.0, %v2181
    %2195 = vrot.lane.b32.xlu0 %v2192, 96
    %v2196 = vpop.permute.xlu0 %2195
    %v2198 = vmul.f32 %v2193, %v2196
    %v2199 = vmul.f32 %v2181, %v2026
    %v2200 = vadd.f32 %v2198, %v2199
    %2202 = vrot.lane.b32.xlu0 %v2200, 96
    %v2203 = vpop.permute.xlu0 %2202
    %vm2205 = vcmask 253952
    %v2206 = vsel %vm2205, %v2203, 0.0
    %2207 = vadd.xlane.f32.xlu0 %v2206
    %v2208 = vpop.xlane.xlu0 %2207
    %v2209 = vrcp.pop 32.0
    %v2210 = vmul.f32 %v2208, %v2209
    %v2211 = vsub.f32 %v2200, %v2210
    %v2212 = vmul.f32 %v2211, %v2211
    %2214 = vrot.lane.b32.xlu0 %v2212, 96
    %v2215 = vpop.permute.xlu0 %2214
    %v2217 = vsel %vm2205, %v2215, 0.0
    %2218 = vadd.xlane.f32.xlu0 %v2217
    %v2219 = vpop.xlane.xlu0 %2218
    %v2220 = vmul.f32 %v2219, %v2209
    %v2221 = vadd.f32 %v2220, 1e-05
    %v2222 = vrsqrt.pop %v2221
    %v2223 = vmul.f32 %v2211, %v2222
    %v2225 = vlaneseq
    %v2226 = vshrl.u32 %v2225, 7
    %v2227 = vsub.s32 0, %v2226
    %v2228 = vrot.slane %v199, %v2227
    %2229 = vrot.lane.b32.xlu0 %v2228, 32
    %v2230 = vpop.permute.xlu0 %2229
    %v2232 = vmul.f32 %v2223, %v2230
    %v2234 = vlaneseq
    %v2235 = vshrl.u32 %v2234, 7
    %v2236 = vsub.s32 0, %v2235
    %v2237 = vrot.slane %v200, %v2236
    %2238 = vrot.lane.b32.xlu0 %v2237, 32
    %v2239 = vpop.permute.xlu0 %2238
    %v2241 = vadd.f32 %v2232, %v2239
    %2243 = vrot.lane.b32.xlu0 %v2241, 96
    %v2244 = vpop.permute.xlu0 %2243
    %v2245 = vsel %vm738, %v2244, 0
    %2247 = vmatprep.subr.mxu0 0.0
    %2248 = vmatpush1.msra.mxu0 0.0
    %2249 = vmatprep.subr.mxu0 0.0
    %2250 = vmatpush1.msra.mxu0 0.0
    %2251 = vmatprep.subr.mxu0 0.0
    %2252 = vmatpush1.msra.mxu0 0.0
    %2253 = vmatprep.subr.mxu0 0.0
    %2254 = vmatpush1.msra.mxu0 0.0
    %2255 = vmatprep.subr.mxu0 0.0
    %2256 = vmatpush1.msra.mxu0 0.0
    %2257 = vmatprep.subr.mxu0 0.0
    %2258 = vmatpush1.msra.mxu0 0.0
    %2259 = vmatprep.subr.mxu0 0.0
    %2260 = vmatpush1.msra.mxu0 0.0
    %2261 = vmatprep.subr.mxu0 0.0
    %2262 = vmatpush1.msra.mxu0 0.0
    %2263 = vmatprep.subr.mxu0 0.0
    %2264 = vmatpush1.msra.mxu0 0.0
    %2265 = vmatprep.subr.mxu0 0.0
    %2266 = vmatpush1.msra.mxu0 0.0
    %2267 = vmatprep.subr.mxu0 0.0
    %2268 = vmatpush1.msra.mxu0 0.0
    %2269 = vmatprep.subr.mxu0 0.0
    %2270 = vmatpush1.msra.mxu0 0.0
    %2271 = vmatprep.subr.mxu0 0.0
    %2272 = vmatpush1.msra.mxu0 %v204
    %2273 = vmatprep.subr.mxu0 0.0
    %2274 = vmatpush1.msra.mxu0 %v203
    %2275 = vmatprep.subr.mxu0 0.0
    %2276 = vmatpush1.msra.mxu0 %v202
    %2277 = vmatprep.subr.mxu0 0.0
    %2278 = vmatpush1.msra.mxu0 %v201
    %2279 = vmatprep.subr.mxu0 0.0
    %2280 = vmatpush2.msra.mxu0 0.0
    %2281 = vmatprep.subr.mxu0 0.0
    %2282 = vmatpush2.msra.mxu0 0.0
    %2283 = vmatprep.subr.mxu0 0.0
    %2284 = vmatpush2.msra.mxu0 0.0
    %2285 = vmatprep.subr.mxu0 0.0
    %2286 = vmatpush2.msra.mxu0 0.0
    %2287 = vmatprep.subr.mxu0 0.0
    %2288 = vmatpush2.msra.mxu0 0.0
    %2289 = vmatprep.subr.mxu0 0.0
    %2290 = vmatpush2.msra.mxu0 0.0
    %2291 = vmatprep.subr.mxu0 0.0
    %2292 = vmatpush2.msra.mxu0 0.0
    %2293 = vmatprep.subr.mxu0 0.0
    %2294 = vmatpush2.msra.mxu0 0.0
    %2295 = vmatprep.subr.mxu0 0.0
    %2296 = vmatpush2.msra.mxu0 0.0
    %2297 = vmatprep.subr.mxu0 0.0
    %2298 = vmatpush2.msra.mxu0 0.0
    %2299 = vmatprep.subr.mxu0 0.0
    %2300 = vmatpush2.msra.mxu0 0.0
    %2301 = vmatprep.subr.mxu0 0.0
    %2302 = vmatpush2.msra.mxu0 0.0
    %2303 = vmatprep.subr.mxu0 0.0
    %2304 = vmatpush2.msra.mxu0 0.0
    %2305 = vmatprep.subr.mxu0 0.0
    %2306 = vmatpush2.msra.mxu0 0.0
    %2307 = vmatprep.subr.mxu0 0.0
    %2308 = vmatpush2.msra.mxu0 0.0
    %2309 = vmatprep.subr.mxu0 0.0
    %2310 = vmatpush2.msra.mxu0 0.0
    %2311 = vmatprep.mubr.f32.mxu0 0.0
    %2312 = vmatmul.mubr.f32.gmra.mxu0 %v2245
    %v2313 = vpop.f32.mrf.mxu0
    %v2314 = vadd.f32 %v205, %v2313
    %v2315 = vpop.f32.mrf.mxu0
    %2316 = vdwg.mxu0
    %vm2317 = vcmp.gt.f32.partialorder %v2314, 0.0
    %v2318 = vmul.f32 %v2314, 0.01
    %v2319 = vsel %vm2317, %v2314, %v2318
    %v2320 = vsel %vm2205, %v2319, 0.0
    %2321 = vadd.xlane.f32.xlu0 %v2320
    %v2322 = vpop.xlane.xlu0 %2321
    %v2323 = vmul.f32 %v2322, %v2209
    %v2324 = vsub.f32 %v2319, %v2323
    %v2325 = vmul.f32 %v2324, %v2324
    %v2326 = vsel %vm2205, %v2325, 0.0
    %2327 = vadd.xlane.f32.xlu0 %v2326
    %v2328 = vpop.xlane.xlu0 %2327
    %v2329 = vmul.f32 %v2328, %v2209
    %v2330 = vadd.f32 %v2329, 1e-05
    %v2331 = vrsqrt.pop %v2330
    %v2332 = vmul.f32 %v2324, %v2331
    %v2333 = vmul.f32 %v2332, %v206
    %v2334 = vadd.f32 %v2333, %v207
    %v2336 = vsel %vm738, %v2334, 0
    %2338 = vmatprep.subr.mxu0 0.0
    %2339 = vmatpush1.msra.mxu0 0.0
    %2340 = vmatprep.subr.mxu0 0.0
    %2341 = vmatpush1.msra.mxu0 0.0
    %2342 = vmatprep.subr.mxu0 0.0
    %2343 = vmatpush1.msra.mxu0 0.0
    %2344 = vmatprep.subr.mxu0 0.0
    %2345 = vmatpush1.msra.mxu0 0.0
    %2346 = vmatprep.subr.mxu0 0.0
    %2347 = vmatpush1.msra.mxu0 0.0
    %2348 = vmatprep.subr.mxu0 0.0
    %2349 = vmatpush1.msra.mxu0 0.0
    %2350 = vmatprep.subr.mxu0 0.0
    %2351 = vmatpush1.msra.mxu0 0.0
    %2352 = vmatprep.subr.mxu0 0.0
    %2353 = vmatpush1.msra.mxu0 0.0
    %2354 = vmatprep.subr.mxu0 0.0
    %2355 = vmatpush1.msra.mxu0 0.0
    %2356 = vmatprep.subr.mxu0 0.0
    %2357 = vmatpush1.msra.mxu0 0.0
    %2358 = vmatprep.subr.mxu0 0.0
    %2359 = vmatpush1.msra.mxu0 0.0
    %2360 = vmatprep.subr.mxu0 0.0
    %2361 = vmatpush1.msra.mxu0 0.0
    %2362 = vmatprep.subr.mxu0 0.0
    %2363 = vmatpush1.msra.mxu0 %v211
    %2364 = vmatprep.subr.mxu0 0.0
    %2365 = vmatpush1.msra.mxu0 %v210
    %2366 = vmatprep.subr.mxu0 0.0
    %2367 = vmatpush1.msra.mxu0 %v209
    %2368 = vmatprep.subr.mxu0 0.0
    %2369 = vmatpush1.msra.mxu0 %v208
    %2370 = vmatprep.subr.mxu0 0.0
    %2371 = vmatpush2.msra.mxu0 0.0
    %2372 = vmatprep.subr.mxu0 0.0
    %2373 = vmatpush2.msra.mxu0 0.0
    %2374 = vmatprep.subr.mxu0 0.0
    %2375 = vmatpush2.msra.mxu0 0.0
    %2376 = vmatprep.subr.mxu0 0.0
    %2377 = vmatpush2.msra.mxu0 0.0
    %2378 = vmatprep.subr.mxu0 0.0
    %2379 = vmatpush2.msra.mxu0 0.0
    %2380 = vmatprep.subr.mxu0 0.0
    %2381 = vmatpush2.msra.mxu0 0.0
    %2382 = vmatprep.subr.mxu0 0.0
    %2383 = vmatpush2.msra.mxu0 0.0
    %2384 = vmatprep.subr.mxu0 0.0
    %2385 = vmatpush2.msra.mxu0 0.0
    %2386 = vmatprep.subr.mxu0 0.0
    %2387 = vmatpush2.msra.mxu0 0.0
    %2388 = vmatprep.subr.mxu0 0.0
    %2389 = vmatpush2.msra.mxu0 0.0
    %2390 = vmatprep.subr.mxu0 0.0
    %2391 = vmatpush2.msra.mxu0 0.0
    %2392 = vmatprep.subr.mxu0 0.0
    %2393 = vmatpush2.msra.mxu0 0.0
    %2394 = vmatprep.subr.mxu0 0.0
    %2395 = vmatpush2.msra.mxu0 0.0
    %2396 = vmatprep.subr.mxu0 0.0
    %2397 = vmatpush2.msra.mxu0 0.0
    %2398 = vmatprep.subr.mxu0 0.0
    %2399 = vmatpush2.msra.mxu0 0.0
    %2400 = vmatprep.subr.mxu0 0.0
    %2401 = vmatpush2.msra.mxu0 0.0
    %2402 = vmatprep.mubr.f32.mxu0 0.0
    %2403 = vmatmul.mubr.f32.gmra.mxu0 %v2336
    %v2404 = vpop.f32.mrf.mxu0
    %v2405 = vadd.f32 %v212, %v2404
    %v2406 = vpop.f32.mrf.mxu0
    %2407 = vdwg.mxu0
    %v2408 = vld [vmem:[%s17] sm:$0x1]
    %v2409 = vmul.f32 %v2405, 0.5
    %v2410 = vmul.f32 %v2409, 1.442695
    %v2411 = vpow.pop %v2410
    %v2414 = vunpack.c.l.s4 1966171168
    %v2415 = vunpack.c.0.s8 %v2414
    %v2416 = vlaneseq
    %v2417 = vshrl.u32 %v2416, 7
    %v2418 = vsub.s32 %v2415, %v2417
    %v2419 = vrot.slane %v2411, %v2418
    %v2421 = vunpack.c.l.s4 1966171168
    %v2422 = vunpack.c.0.s8 %v2421
    %v2423 = vlaneseq
    %v2424 = vshrl.u32 %v2423, 7
    %v2425 = vsub.s32 %v2422, %v2424
    %v2426 = vrot.slane %v2419, %v2425
    %2427 = vrot.lane.b32.xlu0 %v2426, 112
    %v2428 = vpop.permute.xlu0 %2427
    %v2430 = vmul.f32 %v2408, %v2428
    %v2431 = vadd.f32 %v2430, %v2405
    %2432 = vst.msk [vmem:[%s69] sm:$0x1] %vm2205, %v2203
    %2434 = vrot.lane.b32.xlu0 %v2405, 32
    %v2435 = vpop.permute.xlu0 %2434
    %vm2437 = vcmask 385280
    %2438 = vst.msk [vmem:[%s69] sm:$0x1] %vm2437, %v2435
    %vm2439 = vcmask 516480
    %2440 = vst.msk [vmem:[%s69] sm:$0x1] %vm2439, %v2435
    %v2442 = vlaneseq
    %v2443 = vshrl.u32 %v2442, 7
    %v2444 = vsub.s32 0, %v2443
    %v2445 = vrot.slane %v2431, %v2444
    %2446 = vrot.lane.b32.xlu0 %v2445, 64
    %v2447 = vpop.permute.xlu0 %2446
    %vm2449 = vcmask 647680
    %2450 = vst.msk [vmem:[%s69] sm:$0x1] %vm2449, %v2447
    %s2451 = scalar_lea.vmem %s5, 4
    %v2452 = vld [vmem:[%s2451] sm:$0xf]
    %v2454 = vsel %vm221, %v2452, 0
    %2456 = vmatprep.subr.mxu0 0.0
    %2457 = vmatpush1.msra.mxu0 0.0
    %2458 = vmatprep.subr.mxu0 0.0
    %2459 = vmatpush1.msra.mxu0 0.0
    %2460 = vmatprep.subr.mxu0 0.0
    %2461 = vmatpush1.msra.mxu0 0.0
    %2462 = vmatprep.subr.mxu0 0.0
    %2463 = vmatpush1.msra.mxu0 0.0
    %2464 = vmatprep.subr.mxu0 0.0
    %2465 = vmatpush1.msra.mxu0 0.0
    %2466 = vmatprep.subr.mxu0 0.0
    %2467 = vmatpush1.msra.mxu0 0.0
    %2468 = vmatprep.subr.mxu0 0.0
    %2469 = vmatpush1.msra.mxu0 0.0
    %2470 = vmatprep.subr.mxu0 0.0
    %2471 = vmatpush1.msra.mxu0 0.0
    %2472 = vmatprep.subr.mxu0 0.0
    %2473 = vmatpush1.msra.mxu0 0.0
    %2474 = vmatprep.subr.mxu0 0.0
    %2475 = vmatpush1.msra.mxu0 0.0
    %2476 = vmatprep.subr.mxu0 0.0
    %2477 = vmatpush1.msra.mxu0 0.0
    %2478 = vmatprep.subr.mxu0 0.0
    %2479 = vmatpush1.msra.mxu0 0.0
    %2480 = vmatprep.subr.mxu0 0.0
    %2481 = vmatpush1.msra.mxu0 0.0
    %2482 = vmatprep.subr.mxu0 0.0
    %2483 = vmatpush1.msra.mxu0 0.0
    %2484 = vmatprep.subr.mxu0 0.0
    %2485 = vmatpush1.msra.mxu0 0.0
    %2486 = vmatprep.subr.mxu0 0.0
    %2487 = vmatpush1.msra.mxu0 %v308
    %2488 = vmatprep.subr.mxu0 0.0
    %2489 = vmatpush2.msra.mxu0 0.0
    %2490 = vmatprep.subr.mxu0 0.0
    %2491 = vmatpush2.msra.mxu0 0.0
    %2492 = vmatprep.subr.mxu0 0.0
    %2493 = vmatpush2.msra.mxu0 0.0
    %2494 = vmatprep.subr.mxu0 0.0
    %2495 = vmatpush2.msra.mxu0 0.0
    %2496 = vmatprep.subr.mxu0 0.0
    %2497 = vmatpush2.msra.mxu0 0.0
    %2498 = vmatprep.subr.mxu0 0.0
    %2499 = vmatpush2.msra.mxu0 0.0
    %2500 = vmatprep.subr.mxu0 0.0
    %2501 = vmatpush2.msra.mxu0 0.0
    %2502 = vmatprep.subr.mxu0 0.0
    %2503 = vmatpush2.msra.mxu0 0.0
    %2504 = vmatprep.subr.mxu0 0.0
    %2505 = vmatpush2.msra.mxu0 0.0
    %2506 = vmatprep.subr.mxu0 0.0
    %2507 = vmatpush2.msra.mxu0 0.0
    %2508 = vmatprep.subr.mxu0 0.0
    %2509 = vmatpush2.msra.mxu0 0.0
    %2510 = vmatprep.subr.mxu0 0.0
    %2511 = vmatpush2.msra.mxu0 0.0
    %2512 = vmatprep.subr.mxu0 0.0
    %2513 = vmatpush2.msra.mxu0 0.0
    %2514 = vmatprep.subr.mxu0 0.0
    %2515 = vmatpush2.msra.mxu0 0.0
    %2516 = vmatprep.subr.mxu0 0.0
    %2517 = vmatpush2.msra.mxu0 0.0
    %2518 = vmatprep.subr.mxu0 0.0
    %2519 = vmatpush2.msra.mxu0 0.0
    %2520 = vmatprep.mubr.f32.mxu0 0.0
    %2521 = vmatmul.mubr.f32.gmra.mxu0 %v2454
    %v2522 = vpop.f32.mrf.mxu0
    %v2523 = vadd.f32 0.0, %v2522
    %v2524 = vpop.f32.mrf.mxu0
    %2525 = vdwg.mxu0
    %s2526 = scalar_lea.vmem %s7, 16
    %v2527 = vld [vmem:[%s2526] sm:$0xff]
    %v2528 = vld [vmem:[%s2526 + $0x8] sm:$0xff]
    %v2530 = vsel %vm650, %v2527, 0
    %v2533 = vsel %vm650, %v2528, 0
    %2535 = vmatprep.subr.mxu0 0.0
    %2536 = vmatpush1.msra.mxu0 0.0
    %2537 = vmatprep.subr.mxu0 0.0
    %2538 = vmatpush1.msra.mxu0 0.0
    %2539 = vmatprep.subr.mxu0 0.0
    %2540 = vmatpush1.msra.mxu0 0.0
    %2541 = vmatprep.subr.mxu0 0.0
    %2542 = vmatpush1.msra.mxu0 0.0
    %2543 = vmatprep.subr.mxu0 0.0
    %2544 = vmatpush1.msra.mxu0 0.0
    %2545 = vmatprep.subr.mxu0 0.0
    %2546 = vmatpush1.msra.mxu0 0.0
    %2547 = vmatprep.subr.mxu0 0.0
    %2548 = vmatpush1.msra.mxu0 0.0
    %2549 = vmatprep.subr.mxu0 0.0
    %2550 = vmatpush1.msra.mxu0 0.0
    %2551 = vmatprep.subr.mxu0 0.0
    %2552 = vmatpush1.msra.mxu0 %v571
    %2553 = vmatprep.subr.mxu0 0.0
    %2554 = vmatpush1.msra.mxu0 %v570
    %2555 = vmatprep.subr.mxu0 0.0
    %2556 = vmatpush1.msra.mxu0 %v569
    %2557 = vmatprep.subr.mxu0 0.0
    %2558 = vmatpush1.msra.mxu0 %v568
    %2559 = vmatprep.subr.mxu0 0.0
    %2560 = vmatpush1.msra.mxu0 %v567
    %2561 = vmatprep.subr.mxu0 0.0
    %2562 = vmatpush1.msra.mxu0 %v566
    %2563 = vmatprep.subr.mxu0 0.0
    %2564 = vmatpush1.msra.mxu0 %v565
    %2565 = vmatprep.subr.mxu0 0.0
    %2566 = vmatpush1.msra.mxu0 %v564
    %2567 = vmatprep.subr.mxu0 0.0
    %2568 = vmatpush2.msra.mxu0 0.0
    %2569 = vmatprep.subr.mxu0 0.0
    %2570 = vmatpush2.msra.mxu0 0.0
    %2571 = vmatprep.subr.mxu0 0.0
    %2572 = vmatpush2.msra.mxu0 0.0
    %2573 = vmatprep.subr.mxu0 0.0
    %2574 = vmatpush2.msra.mxu0 0.0
    %2575 = vmatprep.subr.mxu0 0.0
    %2576 = vmatpush2.msra.mxu0 0.0
    %2577 = vmatprep.subr.mxu0 0.0
    %2578 = vmatpush2.msra.mxu0 0.0
    %2579 = vmatprep.subr.mxu0 0.0
    %2580 = vmatpush2.msra.mxu0 0.0
    %2581 = vmatprep.subr.mxu0 0.0
    %2582 = vmatpush2.msra.mxu0 0.0
    %2583 = vmatprep.subr.mxu0 0.0
    %2584 = vmatpush2.msra.mxu0 0.0
    %2585 = vmatprep.subr.mxu0 0.0
    %2586 = vmatpush2.msra.mxu0 0.0
    %2587 = vmatprep.subr.mxu0 0.0
    %2588 = vmatpush2.msra.mxu0 0.0
    %2589 = vmatprep.subr.mxu0 0.0
    %2590 = vmatpush2.msra.mxu0 0.0
    %2591 = vmatprep.subr.mxu0 0.0
    %2592 = vmatpush2.msra.mxu0 0.0
    %2593 = vmatprep.subr.mxu0 0.0
    %2594 = vmatpush2.msra.mxu0 0.0
    %2595 = vmatprep.subr.mxu0 0.0
    %2596 = vmatpush2.msra.mxu0 0.0
    %2597 = vmatprep.subr.mxu0 0.0
    %2598 = vmatpush2.msra.mxu0 0.0
    %2599 = vmatprep.mubr.f32.mxu0 0.0
    %2600 = vmatmul.mubr.f32.gmra.mxu0 %v2530
    %v2601 = vpop.f32.mrf.mxu0
    %v2602 = vadd.f32 0.0, %v2601
    %v2603 = vpop.f32.mrf.mxu0
    %2604 = vmatprep.mubr.f32.mxu0 0.0
    %2605 = vmatmul.mubr.f32.gmra.mxu0 %v2533
    %v2606 = vpop.f32.mrf.mxu0
    %v2607 = vadd.f32 0.0, %v2606
    %v2608 = vpop.f32.mrf.mxu0
    %2609 = vdwg.mxu0
    %v2611 = vsel %vm738, %v2523, 0
    %2613 = vmatprep.subr.mxu0 0.0
    %2614 = vmatpush1.msra.mxu0 0.0
    %2615 = vmatprep.subr.mxu0 0.0
    %2616 = vmatpush1.msra.mxu0 0.0
    %2617 = vmatprep.subr.mxu0 0.0
    %2618 = vmatpush1.msra.mxu0 0.0
    %2619 = vmatprep.subr.mxu0 0.0
    %2620 = vmatpush1.msra.mxu0 0.0
    %2621 = vmatprep.subr.mxu0 0.0
    %2622 = vmatpush1.msra.mxu0 0.0
    %2623 = vmatprep.subr.mxu0 0.0
    %2624 = vmatpush1.msra.mxu0 0.0
    %2625 = vmatprep.subr.mxu0 0.0
    %2626 = vmatpush1.msra.mxu0 0.0
    %2627 = vmatprep.subr.mxu0 0.0
    %2628 = vmatpush1.msra.mxu0 0.0
    %2629 = vmatprep.subr.mxu0 0.0
    %2630 = vmatpush1.msra.mxu0 0.0
    %2631 = vmatprep.subr.mxu0 0.0
    %2632 = vmatpush1.msra.mxu0 0.0
    %2633 = vmatprep.subr.mxu0 0.0
    %2634 = vmatpush1.msra.mxu0 0.0
    %2635 = vmatprep.subr.mxu0 0.0
    %2636 = vmatpush1.msra.mxu0 0.0
    %2637 = vmatprep.subr.mxu0 0.0
    %2638 = vmatpush1.msra.mxu0 %v171
    %2639 = vmatprep.subr.mxu0 0.0
    %2640 = vmatpush1.msra.mxu0 %v170
    %2641 = vmatprep.subr.mxu0 0.0
    %2642 = vmatpush1.msra.mxu0 %v169
    %2643 = vmatprep.subr.mxu0 0.0
    %2644 = vmatpush1.msra.mxu0 %v168
    %2645 = vmatprep.subr.mxu0 0.0
    %2646 = vmatpush2.msra.mxu0 0.0
    %2647 = vmatprep.subr.mxu0 0.0
    %2648 = vmatpush2.msra.mxu0 0.0
    %2649 = vmatprep.subr.mxu0 0.0
    %2650 = vmatpush2.msra.mxu0 0.0
    %2651 = vmatprep.subr.mxu0 0.0
    %2652 = vmatpush2.msra.mxu0 0.0
    %2653 = vmatprep.subr.mxu0 0.0
    %2654 = vmatpush2.msra.mxu0 0.0
    %2655 = vmatprep.subr.mxu0 0.0
    %2656 = vmatpush2.msra.mxu0 0.0
    %2657 = vmatprep.subr.mxu0 0.0
    %2658 = vmatpush2.msra.mxu0 0.0
    %2659 = vmatprep.subr.mxu0 0.0
    %2660 = vmatpush2.msra.mxu0 0.0
    %2661 = vmatprep.subr.mxu0 0.0
    %2662 = vmatpush2.msra.mxu0 0.0
    %2663 = vmatprep.subr.mxu0 0.0
    %2664 = vmatpush2.msra.mxu0 0.0
    %2665 = vmatprep.subr.mxu0 0.0
    %2666 = vmatpush2.msra.mxu0 0.0
    %2667 = vmatprep.subr.mxu0 0.0
    %2668 = vmatpush2.msra.mxu0 0.0
    %2669 = vmatprep.subr.mxu0 0.0
    %2670 = vmatpush2.msra.mxu0 0.0
    %2671 = vmatprep.subr.mxu0 0.0
    %2672 = vmatpush2.msra.mxu0 0.0
    %2673 = vmatprep.subr.mxu0 0.0
    %2674 = vmatpush2.msra.mxu0 0.0
    %2675 = vmatprep.subr.mxu0 0.0
    %2676 = vmatpush2.msra.mxu0 0.0
    %2677 = vmatprep.mubr.f32.mxu0 0.0
    %2678 = vmatmul.mubr.f32.gmra.mxu0 %v2611
    %v2679 = vpop.f32.mrf.mxu0
    %v2680 = vadd.f32 %v736, %v2679
    %v2681 = vpop.f32.mrf.mxu0
    %2682 = vdwg.mxu0
    %vm2683 = vcmp.gt.f32.partialorder %v2680, 0.0
    %v2684 = vmul.f32 %v2680, 0.01
    %v2685 = vsel %vm2683, %v2680, %v2684
    %v2687 = vsel %vm821, %v2602, 0
    %v2690 = vsel %vm821, %v2607, 0
    %2692 = vmatprep.subr.mxu0 0.0
    %2693 = vmatpush1.msra.mxu0 0.0
    %2694 = vmatprep.subr.mxu0 0.0
    %2695 = vmatpush1.msra.mxu0 0.0
    %2696 = vmatprep.subr.mxu0 0.0
    %2697 = vmatpush1.msra.mxu0 0.0
    %2698 = vmatprep.subr.mxu0 0.0
    %2699 = vmatpush1.msra.mxu0 0.0
    %2700 = vmatprep.subr.mxu0 0.0
    %2701 = vmatpush1.msra.mxu0 0.0
    %2702 = vmatprep.subr.mxu0 0.0
    %2703 = vmatpush1.msra.mxu0 0.0
    %2704 = vmatprep.subr.mxu0 0.0
    %2705 = vmatpush1.msra.mxu0 0.0
    %2706 = vmatprep.subr.mxu0 0.0
    %2707 = vmatpush1.msra.mxu0 0.0
    %2708 = vmatprep.subr.mxu0 0.0
    %2709 = vmatpush1.msra.mxu0 0.0
    %2710 = vmatprep.subr.mxu0 0.0
    %2711 = vmatpush1.msra.mxu0 0.0
    %2712 = vmatprep.subr.mxu0 0.0
    %2713 = vmatpush1.msra.mxu0 0.0
    %2714 = vmatprep.subr.mxu0 0.0
    %2715 = vmatpush1.msra.mxu0 0.0
    %2716 = vmatprep.subr.mxu0 0.0
    %2717 = vmatpush1.msra.mxu0 0.0
    %2718 = vmatprep.subr.mxu0 0.0
    %2719 = vmatpush1.msra.mxu0 0.0
    %2720 = vmatprep.subr.mxu0 0.0
    %2721 = vmatpush1.msra.mxu0 %v174
    %2722 = vmatprep.subr.mxu0 0.0
    %2723 = vmatpush1.msra.mxu0 %v173
    %2724 = vmatprep.subr.mxu0 0.0
    %2725 = vmatpush2.msra.mxu0 0.0
    %2726 = vmatprep.subr.mxu0 0.0
    %2727 = vmatpush2.msra.mxu0 0.0
    %2728 = vmatprep.subr.mxu0 0.0
    %2729 = vmatpush2.msra.mxu0 0.0
    %2730 = vmatprep.subr.mxu0 0.0
    %2731 = vmatpush2.msra.mxu0 0.0
    %2732 = vmatprep.subr.mxu0 0.0
    %2733 = vmatpush2.msra.mxu0 0.0
    %2734 = vmatprep.subr.mxu0 0.0
    %2735 = vmatpush2.msra.mxu0 0.0
    %2736 = vmatprep.subr.mxu0 0.0
    %2737 = vmatpush2.msra.mxu0 0.0
    %2738 = vmatprep.subr.mxu0 0.0
    %2739 = vmatpush2.msra.mxu0 0.0
    %2740 = vmatprep.subr.mxu0 0.0
    %2741 = vmatpush2.msra.mxu0 0.0
    %2742 = vmatprep.subr.mxu0 0.0
    %2743 = vmatpush2.msra.mxu0 0.0
    %2744 = vmatprep.subr.mxu0 0.0
    %2745 = vmatpush2.msra.mxu0 0.0
    %2746 = vmatprep.subr.mxu0 0.0
    %2747 = vmatpush2.msra.mxu0 0.0
    %2748 = vmatprep.subr.mxu0 0.0
    %2749 = vmatpush2.msra.mxu0 0.0
    %2750 = vmatprep.subr.mxu0 0.0
    %2751 = vmatpush2.msra.mxu0 0.0
    %2752 = vmatprep.subr.mxu0 0.0
    %2753 = vmatpush2.msra.mxu0 0.0
    %2754 = vmatprep.subr.mxu0 0.0
    %2755 = vmatpush2.msra.mxu0 0.0
    %2756 = vmatprep.mubr.f32.mxu0 0.0
    %2757 = vmatmul.mubr.f32.gmra.mxu0 %v2687
    %v2758 = vpop.f32.mrf.mxu0
    %v2759 = vadd.f32 %v819, %v2758
    %v2760 = vpop.f32.mrf.mxu0
    %2761 = vmatprep.mubr.f32.mxu0 0.0
    %2762 = vmatmul.mubr.f32.gmra.mxu0 %v2690
    %v2763 = vpop.f32.mrf.mxu0
    %v2764 = vadd.f32 %v819, %v2763
    %v2765 = vpop.f32.mrf.mxu0
    %2766 = vdwg.mxu0
    %vm2767 = vcmp.gt.f32.partialorder %v2759, 0.0
    %vm2768 = vcmp.gt.f32.partialorder %v2764, 0.0
    %v2769 = vmul.f32 %v2759, 0.01
    %v2770 = vmul.f32 %v2764, 0.01
    %v2771 = vsel %vm2767, %v2759, %v2769
    %v2772 = vsel %vm2768, %v2764, %v2770
    %s2773 = scalar_lea.vmem %s9, 4
    %v2774 = vld [vmem:[%s2773] sm:$0xf]
    %v2776 = vsel %vm910, %v2774, 0
    %v2779 = vsel %vm914, %v2685, 0
    %2781 = vmatprep.subr.mxu0 0.0
    %2782 = vmatpush1.msra.mxu0 0.0
    %2783 = vmatprep.subr.mxu0 0.0
    %2784 = vmatpush1.msra.mxu0 0.0
    %2785 = vmatprep.subr.mxu0 0.0
    %2786 = vmatpush1.msra.mxu0 0.0
    %2787 = vmatprep.subr.mxu0 0.0
    %2788 = vmatpush1.msra.mxu0 0.0
    %2789 = vmatprep.subr.mxu0 0.0
    %2790 = vmatpush1.msra.mxu0 0.0
    %2791 = vmatprep.subr.mxu0 0.0
    %2792 = vmatpush1.msra.mxu0 0.0
    %2793 = vmatprep.subr.mxu0 0.0
    %2794 = vmatpush1.msra.mxu0 0.0
    %2795 = vmatprep.subr.mxu0 0.0
    %2796 = vmatpush1.msra.mxu0 0.0
    %2797 = vmatprep.subr.mxu0 0.0
    %2798 = vmatpush1.msra.mxu0 0.0
    %2799 = vmatprep.subr.mxu0 0.0
    %2800 = vmatpush1.msra.mxu0 0.0
    %2801 = vmatprep.subr.mxu0 0.0
    %2802 = vmatpush1.msra.mxu0 0.0
    %2803 = vmatprep.subr.mxu0 0.0
    %2804 = vmatpush1.msra.mxu0 0.0
    %2805 = vmatprep.subr.mxu0 0.0
    %2806 = vmatpush1.msra.mxu0 0.0
    %2807 = vmatprep.subr.mxu0 0.0
    %2808 = vmatpush1.msra.mxu0 0.0
    %2809 = vmatprep.subr.mxu0 0.0
    %2810 = vmatpush1.msra.mxu0 0.0
    %2811 = vmatprep.subr.mxu0 0.0
    %2812 = vmatpush1.msra.mxu0 %v2779
    %2813 = vmatprep.subr.mxu0 0.0
    %2814 = vmatpush2.msra.mxu0 0.0
    %2815 = vmatprep.subr.mxu0 0.0
    %2816 = vmatpush2.msra.mxu0 0.0
    %2817 = vmatprep.subr.mxu0 0.0
    %2818 = vmatpush2.msra.mxu0 0.0
    %2819 = vmatprep.subr.mxu0 0.0
    %2820 = vmatpush2.msra.mxu0 0.0
    %2821 = vmatprep.subr.mxu0 0.0
    %2822 = vmatpush2.msra.mxu0 0.0
    %2823 = vmatprep.subr.mxu0 0.0
    %2824 = vmatpush2.msra.mxu0 0.0
    %2825 = vmatprep.subr.mxu0 0.0
    %2826 = vmatpush2.msra.mxu0 0.0
    %2827 = vmatprep.subr.mxu0 0.0
    %2828 = vmatpush2.msra.mxu0 0.0
    %2829 = vmatprep.subr.mxu0 0.0
    %2830 = vmatpush2.msra.mxu0 0.0
    %2831 = vmatprep.subr.mxu0 0.0
    %2832 = vmatpush2.msra.mxu0 0.0
    %2833 = vmatprep.subr.mxu0 0.0
    %2834 = vmatpush2.msra.mxu0 0.0
    %2835 = vmatprep.subr.mxu0 0.0
    %2836 = vmatpush2.msra.mxu0 0.0
    %2837 = vmatprep.subr.mxu0 0.0
    %2838 = vmatpush2.msra.mxu0 0.0
    %2839 = vmatprep.subr.mxu0 0.0
    %2840 = vmatpush2.msra.mxu0 0.0
    %2841 = vmatprep.subr.mxu0 0.0
    %2842 = vmatpush2.msra.mxu0 0.0
    %2843 = vmatprep.subr.mxu0 0.0
    %2844 = vmatpush2.msra.mxu0 0.0
    %2845 = vmatprep.mubr.f32.mxu0 0.0
    %2846 = vmatmul.mubr.f32.gmra.mxu0 %v2776
    %v2847 = vpop.f32.mrf.mxu0
    %v2848 = vadd.f32 0.0, %v2847
    %v2849 = vpop.f32.mrf.mxu0
    %2850 = vdwg.mxu0
    %s2851 = scalar_lea.vmem %s11, 16
    %v2852 = vld [vmem:[%s2851] sm:$0xff]
    %v2853 = vld [vmem:[%s2851 + $0x8] sm:$0xff]
    %v2855 = vsel %vm821, %v2852, 0
    %v2858 = vsel %vm821, %v2853, 0
    %2860 = vmatprep.subr.mxu0 0.0
    %2861 = vmatpush1.msra.mxu0 0.0
    %2862 = vmatprep.subr.mxu0 0.0
    %2863 = vmatpush1.msra.mxu0 0.0
    %2864 = vmatprep.subr.mxu0 0.0
    %2865 = vmatpush1.msra.mxu0 0.0
    %2866 = vmatprep.subr.mxu0 0.0
    %2867 = vmatpush1.msra.mxu0 0.0
    %2868 = vmatprep.subr.mxu0 0.0
    %2869 = vmatpush1.msra.mxu0 0.0
    %2870 = vmatprep.subr.mxu0 0.0
    %2871 = vmatpush1.msra.mxu0 0.0
    %2872 = vmatprep.subr.mxu0 0.0
    %2873 = vmatpush1.msra.mxu0 0.0
    %2874 = vmatprep.subr.mxu0 0.0
    %2875 = vmatpush1.msra.mxu0 0.0
    %2876 = vmatprep.subr.mxu0 0.0
    %2877 = vmatpush1.msra.mxu0 0.0
    %2878 = vmatprep.subr.mxu0 0.0
    %2879 = vmatpush1.msra.mxu0 0.0
    %2880 = vmatprep.subr.mxu0 0.0
    %2881 = vmatpush1.msra.mxu0 0.0
    %2882 = vmatprep.subr.mxu0 0.0
    %2883 = vmatpush1.msra.mxu0 0.0
    %2884 = vmatprep.subr.mxu0 0.0
    %2885 = vmatpush1.msra.mxu0 0.0
    %2886 = vmatprep.subr.mxu0 0.0
    %2887 = vmatpush1.msra.mxu0 0.0
    %2888 = vmatprep.subr.mxu0 0.0
    %2889 = vmatpush1.msra.mxu0 %v2772
    %2890 = vmatprep.subr.mxu0 0.0
    %2891 = vmatpush1.msra.mxu0 %v2771
    %2892 = vmatprep.subr.mxu0 0.0
    %2893 = vmatpush2.msra.mxu0 0.0
    %2894 = vmatprep.subr.mxu0 0.0
    %2895 = vmatpush2.msra.mxu0 0.0
    %2896 = vmatprep.subr.mxu0 0.0
    %2897 = vmatpush2.msra.mxu0 0.0
    %2898 = vmatprep.subr.mxu0 0.0
    %2899 = vmatpush2.msra.mxu0 0.0
    %2900 = vmatprep.subr.mxu0 0.0
    %2901 = vmatpush2.msra.mxu0 0.0
    %2902 = vmatprep.subr.mxu0 0.0
    %2903 = vmatpush2.msra.mxu0 0.0
    %2904 = vmatprep.subr.mxu0 0.0
    %2905 = vmatpush2.msra.mxu0 0.0
    %2906 = vmatprep.subr.mxu0 0.0
    %2907 = vmatpush2.msra.mxu0 0.0
    %2908 = vmatprep.subr.mxu0 0.0
    %2909 = vmatpush2.msra.mxu0 0.0
    %2910 = vmatprep.subr.mxu0 0.0
    %2911 = vmatpush2.msra.mxu0 0.0
    %2912 = vmatprep.subr.mxu0 0.0
    %2913 = vmatpush2.msra.mxu0 0.0
    %2914 = vmatprep.subr.mxu0 0.0
    %2915 = vmatpush2.msra.mxu0 0.0
    %2916 = vmatprep.subr.mxu0 0.0
    %2917 = vmatpush2.msra.mxu0 0.0
    %2918 = vmatprep.subr.mxu0 0.0
    %2919 = vmatpush2.msra.mxu0 0.0
    %2920 = vmatprep.subr.mxu0 0.0
    %2921 = vmatpush2.msra.mxu0 0.0
    %2922 = vmatprep.subr.mxu0 0.0
    %2923 = vmatpush2.msra.mxu0 0.0
    %2924 = vmatprep.mubr.f32.mxu0 0.0
    %2925 = vmatmul.mubr.f32.gmra.mxu0 %v2855
    %v2926 = vpop.f32.mrf.mxu0
    %v2927 = vadd.f32 0.0, %v2926
    %v2928 = vpop.f32.mrf.mxu0
    %2929 = vmatprep.mubr.f32.mxu0 0.0
    %2930 = vmatmul.mubr.f32.gmra.mxu0 %v2858
    %v2931 = vpop.f32.mrf.mxu0
    %v2932 = vadd.f32 0.0, %v2931
    %v2933 = vpop.f32.mrf.mxu0
    %2934 = vdwg.mxu0
    %s2935 = scalar_lea.vmem %s13, 4
    %v2936 = vld [vmem:[%s2935] sm:$0xf]
    %v2938 = vsel %vm1072, %v2936, 0
    %2940 = vmatprep.subr.mxu0 0.0
    %2941 = vmatpush1.msra.mxu0 0.0
    %2942 = vmatprep.subr.mxu0 0.0
    %2943 = vmatpush1.msra.mxu0 0.0
    %2944 = vmatprep.subr.mxu0 0.0
    %2945 = vmatpush1.msra.mxu0 0.0
    %2946 = vmatprep.subr.mxu0 0.0
    %2947 = vmatpush1.msra.mxu0 0.0
    %2948 = vmatprep.subr.mxu0 0.0
    %2949 = vmatpush1.msra.mxu0 0.0
    %2950 = vmatprep.subr.mxu0 0.0
    %2951 = vmatpush1.msra.mxu0 0.0
    %2952 = vmatprep.subr.mxu0 0.0
    %2953 = vmatpush1.msra.mxu0 0.0
    %2954 = vmatprep.subr.mxu0 0.0
    %2955 = vmatpush1.msra.mxu0 0.0
    %2956 = vmatprep.subr.mxu0 0.0
    %2957 = vmatpush1.msra.mxu0 0.0
    %2958 = vmatprep.subr.mxu0 0.0
    %2959 = vmatpush1.msra.mxu0 0.0
    %2960 = vmatprep.subr.mxu0 0.0
    %2961 = vmatpush1.msra.mxu0 0.0
    %2962 = vmatprep.subr.mxu0 0.0
    %2963 = vmatpush1.msra.mxu0 0.0
    %2964 = vmatprep.subr.mxu0 0.0
    %2965 = vmatpush1.msra.mxu0 0.0
    %2966 = vmatprep.subr.mxu0 0.0
    %2967 = vmatpush1.msra.mxu0 0.0
    %2968 = vmatprep.subr.mxu0 0.0
    %2969 = vmatpush1.msra.mxu0 %v1078
    %2970 = vmatprep.subr.mxu0 0.0
    %2971 = vmatpush1.msra.mxu0 %v176
    %2972 = vmatprep.subr.mxu0 0.0
    %2973 = vmatpush2.msra.mxu0 0.0
    %2974 = vmatprep.subr.mxu0 0.0
    %2975 = vmatpush2.msra.mxu0 0.0
    %2976 = vmatprep.subr.mxu0 0.0
    %2977 = vmatpush2.msra.mxu0 0.0
    %2978 = vmatprep.subr.mxu0 0.0
    %2979 = vmatpush2.msra.mxu0 0.0
    %2980 = vmatprep.subr.mxu0 0.0
    %2981 = vmatpush2.msra.mxu0 0.0
    %2982 = vmatprep.subr.mxu0 0.0
    %2983 = vmatpush2.msra.mxu0 0.0
    %2984 = vmatprep.subr.mxu0 0.0
    %2985 = vmatpush2.msra.mxu0 0.0
    %2986 = vmatprep.subr.mxu0 0.0
    %2987 = vmatpush2.msra.mxu0 0.0
    %2988 = vmatprep.subr.mxu0 0.0
    %2989 = vmatpush2.msra.mxu0 0.0
    %2990 = vmatprep.subr.mxu0 0.0
    %2991 = vmatpush2.msra.mxu0 0.0
    %2992 = vmatprep.subr.mxu0 0.0
    %2993 = vmatpush2.msra.mxu0 0.0
    %2994 = vmatprep.subr.mxu0 0.0
    %2995 = vmatpush2.msra.mxu0 0.0
    %2996 = vmatprep.subr.mxu0 0.0
    %2997 = vmatpush2.msra.mxu0 0.0
    %2998 = vmatprep.subr.mxu0 0.0
    %2999 = vmatpush2.msra.mxu0 0.0
    %3000 = vmatprep.subr.mxu0 0.0
    %3001 = vmatpush2.msra.mxu0 0.0
    %3002 = vmatprep.subr.mxu0 0.0
    %3003 = vmatpush2.msra.mxu0 0.0
    %3004 = vmatprep.mubr.f32.mxu0 0.0
    %3005 = vmatmul.mubr.f32.gmra.mxu0 %v2938
    %v3006 = vpop.f32.mrf.mxu0
    %v3007 = vadd.f32 %v2848, %v3006
    %v3008 = vpop.f32.mrf.mxu0
    %3009 = vdwg.mxu0
    %s3010 = scalar_lea.vmem %s15, 16
    %v3011 = vld [vmem:[%s3010] sm:$0xff]
    %v3012 = vld [vmem:[%s3010 + $0x8] sm:$0xff]
    %v3014 = vsel %vm1152, %v3011, 0
    %v3017 = vsel %vm1152, %v3012, 0
    %3019 = vmatprep.subr.mxu0 0.0
    %3020 = vmatpush1.msra.mxu0 0.0
    %3021 = vmatprep.subr.mxu0 0.0
    %3022 = vmatpush1.msra.mxu0 0.0
    %3023 = vmatprep.subr.mxu0 0.0
    %3024 = vmatpush1.msra.mxu0 0.0
    %3025 = vmatprep.subr.mxu0 0.0
    %3026 = vmatpush1.msra.mxu0 0.0
    %3027 = vmatprep.subr.mxu0 0.0
    %3028 = vmatpush1.msra.mxu0 0.0
    %3029 = vmatprep.subr.mxu0 0.0
    %3030 = vmatpush1.msra.mxu0 0.0
    %3031 = vmatprep.subr.mxu0 0.0
    %3032 = vmatpush1.msra.mxu0 0.0
    %3033 = vmatprep.subr.mxu0 0.0
    %3034 = vmatpush1.msra.mxu0 %v1160
    %3035 = vmatprep.subr.mxu0 0.0
    %3036 = vmatpush1.msra.mxu0 %v185
    %3037 = vmatprep.subr.mxu0 0.0
    %3038 = vmatpush1.msra.mxu0 %v184
    %3039 = vmatprep.subr.mxu0 0.0
    %3040 = vmatpush1.msra.mxu0 %v183
    %3041 = vmatprep.subr.mxu0 0.0
    %3042 = vmatpush1.msra.mxu0 %v182
    %3043 = vmatprep.subr.mxu0 0.0
    %3044 = vmatpush1.msra.mxu0 %v181
    %3045 = vmatprep.subr.mxu0 0.0
    %3046 = vmatpush1.msra.mxu0 %v180
    %3047 = vmatprep.subr.mxu0 0.0
    %3048 = vmatpush1.msra.mxu0 %v179
    %3049 = vmatprep.subr.mxu0 0.0
    %3050 = vmatpush1.msra.mxu0 %v178
    %3051 = vmatprep.subr.mxu0 0.0
    %3052 = vmatpush2.msra.mxu0 0.0
    %3053 = vmatprep.subr.mxu0 0.0
    %3054 = vmatpush2.msra.mxu0 0.0
    %3055 = vmatprep.subr.mxu0 0.0
    %3056 = vmatpush2.msra.mxu0 0.0
    %3057 = vmatprep.subr.mxu0 0.0
    %3058 = vmatpush2.msra.mxu0 0.0
    %3059 = vmatprep.subr.mxu0 0.0
    %3060 = vmatpush2.msra.mxu0 0.0
    %3061 = vmatprep.subr.mxu0 0.0
    %3062 = vmatpush2.msra.mxu0 0.0
    %3063 = vmatprep.subr.mxu0 0.0
    %3064 = vmatpush2.msra.mxu0 0.0
    %3065 = vmatprep.subr.mxu0 0.0
    %3066 = vmatpush2.msra.mxu0 0.0
    %3067 = vmatprep.subr.mxu0 0.0
    %3068 = vmatpush2.msra.mxu0 0.0
    %3069 = vmatprep.subr.mxu0 0.0
    %3070 = vmatpush2.msra.mxu0 0.0
    %3071 = vmatprep.subr.mxu0 0.0
    %3072 = vmatpush2.msra.mxu0 0.0
    %3073 = vmatprep.subr.mxu0 0.0
    %3074 = vmatpush2.msra.mxu0 0.0
    %3075 = vmatprep.subr.mxu0 0.0
    %3076 = vmatpush2.msra.mxu0 0.0
    %3077 = vmatprep.subr.mxu0 0.0
    %3078 = vmatpush2.msra.mxu0 0.0
    %3079 = vmatprep.subr.mxu0 0.0
    %3080 = vmatpush2.msra.mxu0 0.0
    %3081 = vmatprep.subr.mxu0 0.0
    %3082 = vmatpush2.msra.mxu0 0.0
    %3083 = vmatprep.mubr.f32.mxu0 0.0
    %3084 = vmatmul.mubr.f32.gmra.mxu0 %v3014
    %v3085 = vpop.f32.mrf.mxu0
    %v3086 = vadd.f32 %v2927, %v3085
    %v3087 = vpop.f32.mrf.mxu0
    %3088 = vmatprep.mubr.f32.mxu0 0.0
    %3089 = vmatmul.mubr.f32.gmra.mxu0 %v3017
    %v3090 = vpop.f32.mrf.mxu0
    %v3091 = vadd.f32 %v2932, %v3090
    %v3092 = vpop.f32.mrf.mxu0
    %3093 = vdwg.mxu0
    %s3094 = scalar_lea.vmem [#allocation5], 4
    %3095 = vst.msk [vmem:[%s3094] sm:$0xf] %vm1237, %v2848
    %s3096 = scalar_lea.vmem [#allocation6], 16
    %3097 = vst.msk [vmem:[%s3096] sm:$0xff] %vm821, %v2927
    %3098 = vst.msk [vmem:[%s3096 + $0x8] sm:$0xff] %vm821, %v2932
    %s3099 = scalar_lea.vmem [#allocation8], 16
    %3100 = vst.msk [vmem:[%s3099] sm:$0xff] %vm821, %v3086
    %3101 = vst.msk [vmem:[%s3099 + $0x8] sm:$0xff] %vm821, %v3091
    %v3102 = vmul.f32 %v3007, %v1245
    %v3103 = vsel %vm1237, %v3102, 0.0
    %v3104 = vrot.slane %v3103, 4
    %v3105 = vadd.f32 %v3103, %v3104
    %v3106 = vrot.slane %v3105, 2
    %v3107 = vadd.f32 %v3105, %v3106
    %v3108 = vrot.slane %v3107, 1
    %v3109 = vadd.f32 %v3107, %v3108
    %v3110 = vmul.f32 %v3109, 0.25
    %v3112 = vsel %vm738, %v3110, 0
    %3114 = vmatprep.subr.mxu0 0.0
    %3115 = vmatpush1.msra.mxu0 0.0
    %3116 = vmatprep.subr.mxu0 0.0
    %3117 = vmatpush1.msra.mxu0 0.0
    %3118 = vmatprep.subr.mxu0 0.0
    %3119 = vmatpush1.msra.mxu0 0.0
    %3120 = vmatprep.subr.mxu0 0.0
    %3121 = vmatpush1.msra.mxu0 0.0
    %3122 = vmatprep.subr.mxu0 0.0
    %3123 = vmatpush1.msra.mxu0 0.0
    %3124 = vmatprep.subr.mxu0 0.0
    %3125 = vmatpush1.msra.mxu0 0.0
    %3126 = vmatprep.subr.mxu0 0.0
    %3127 = vmatpush1.msra.mxu0 0.0
    %3128 = vmatprep.subr.mxu0 0.0
    %3129 = vmatpush1.msra.mxu0 0.0
    %3130 = vmatprep.subr.mxu0 0.0
    %3131 = vmatpush1.msra.mxu0 0.0
    %3132 = vmatprep.subr.mxu0 0.0
    %3133 = vmatpush1.msra.mxu0 0.0
    %3134 = vmatprep.subr.mxu0 0.0
    %3135 = vmatpush1.msra.mxu0 0.0
    %3136 = vmatprep.subr.mxu0 0.0
    %3137 = vmatpush1.msra.mxu0 0.0
    %3138 = vmatprep.subr.mxu0 0.0
    %3139 = vmatpush1.msra.mxu0 %v190
    %3140 = vmatprep.subr.mxu0 0.0
    %3141 = vmatpush1.msra.mxu0 %v189
    %3142 = vmatprep.subr.mxu0 0.0
    %3143 = vmatpush1.msra.mxu0 %v188
    %3144 = vmatprep.subr.mxu0 0.0
    %3145 = vmatpush1.msra.mxu0 %v187
    %3146 = vmatprep.subr.mxu0 0.0
    %3147 = vmatpush2.msra.mxu0 0.0
    %3148 = vmatprep.subr.mxu0 0.0
    %3149 = vmatpush2.msra.mxu0 0.0
    %3150 = vmatprep.subr.mxu0 0.0
    %3151 = vmatpush2.msra.mxu0 0.0
    %3152 = vmatprep.subr.mxu0 0.0
    %3153 = vmatpush2.msra.mxu0 0.0
    %3154 = vmatprep.subr.mxu0 0.0
    %3155 = vmatpush2.msra.mxu0 0.0
    %3156 = vmatprep.subr.mxu0 0.0
    %3157 = vmatpush2.msra.mxu0 0.0
    %3158 = vmatprep.subr.mxu0 0.0
    %3159 = vmatpush2.msra.mxu0 0.0
    %3160 = vmatprep.subr.mxu0 0.0
    %3161 = vmatpush2.msra.mxu0 0.0
    %3162 = vmatprep.subr.mxu0 0.0
    %3163 = vmatpush2.msra.mxu0 0.0
    %3164 = vmatprep.subr.mxu0 0.0
    %3165 = vmatpush2.msra.mxu0 0.0
    %3166 = vmatprep.subr.mxu0 0.0
    %3167 = vmatpush2.msra.mxu0 0.0
    %3168 = vmatprep.subr.mxu0 0.0
    %3169 = vmatpush2.msra.mxu0 0.0
    %3170 = vmatprep.subr.mxu0 0.0
    %3171 = vmatpush2.msra.mxu0 0.0
    %3172 = vmatprep.subr.mxu0 0.0
    %3173 = vmatpush2.msra.mxu0 0.0
    %3174 = vmatprep.subr.mxu0 0.0
    %3175 = vmatpush2.msra.mxu0 0.0
    %3176 = vmatprep.subr.mxu0 0.0
    %3177 = vmatpush2.msra.mxu0 0.0
    %3178 = vmatprep.mubr.f32.mxu0 0.0
    %3179 = vmatmul.mubr.f32.gmra.mxu0 %v3112
    %v3180 = vpop.f32.mrf.mxu0
    %v3181 = vadd.f32 %v195, %v3180
    %v3182 = vpop.f32.mrf.mxu0
    %3183 = vdwg.mxu0
    %v3184 = vadd.f32 %v3181, %v1398
    %v3185 = vxor.u32 %v3184, 2147483648
    %v3186 = vmul.f32 %v3185, 1.442695
    %v3187 = vpow.pop %v3186
    %v3188 = vadd.f32 %v3187, 1.0
    %v3189 = vrcp.pop %v3188
    %v3190 = vmul.f32 1.0, %v3189
    %v3191 = vmul.f32 %v3190, %v1410
    %3193 = vrot.lane.b32.xlu0 %v3191, 64
    %v3194 = vpop.permute.xlu0 %3193
    %v3196 = vadd.f32 %v3181, %v3194
    %v3197 = vtanh.pop %v3196
    %v3198 = vsub.f32 1.0, %v3190
    %3200 = vrot.lane.b32.xlu0 %v3197, 96
    %v3201 = vpop.permute.xlu0 %3200
    %v3203 = vmul.f32 %v3198, %v3201
    %v3204 = vmul.f32 %v3190, %v1430
    %v3205 = vadd.f32 %v3203, %v3204
    %s3206 = sld [smem:[#allocation2 + $0x83]]
    %v3207 = vstv %s3206
    %v3208 = vmul.f32 %v3205, %v3207
    %s3209 = ssub.f32 1.0, %s3206
    %v3210 = vstv %s3209
    %v3211 = vmul.f32 %v197, %v3210
    %v3213 = vlaneseq
    %v3214 = vshrl.u32 %v3213, 7
    %v3215 = vsub.s32 0, %v3214
    %v3216 = vrot.slane %v3211, %v3215
    %3217 = vrot.lane.b32.xlu0 %v3216, 32
    %v3218 = vpop.permute.xlu0 %3217
    %v3220 = vadd.f32 %v3208, %v3218
    %v3221 = vmul.f32 %v3007, %v1451
    %v3222 = vsel %vm1237, %v3221, 0.0
    %v3223 = vrot.slane %v3222, 4
    %v3224 = vadd.f32 %v3222, %v3223
    %v3225 = vrot.slane %v3224, 2
    %v3226 = vadd.f32 %v3224, %v3225
    %v3227 = vrot.slane %v3226, 1
    %v3228 = vadd.f32 %v3226, %v3227
    %v3229 = vmul.f32 %v3228, 0.33333334
    %v3231 = vsel %vm738, %v3229, 0
    %3233 = vmatprep.subr.mxu0 0.0
    %3234 = vmatpush1.msra.mxu0 0.0
    %3235 = vmatprep.subr.mxu0 0.0
    %3236 = vmatpush1.msra.mxu0 0.0
    %3237 = vmatprep.subr.mxu0 0.0
    %3238 = vmatpush1.msra.mxu0 0.0
    %3239 = vmatprep.subr.mxu0 0.0
    %3240 = vmatpush1.msra.mxu0 0.0
    %3241 = vmatprep.subr.mxu0 0.0
    %3242 = vmatpush1.msra.mxu0 0.0
    %3243 = vmatprep.subr.mxu0 0.0
    %3244 = vmatpush1.msra.mxu0 0.0
    %3245 = vmatprep.subr.mxu0 0.0
    %3246 = vmatpush1.msra.mxu0 0.0
    %3247 = vmatprep.subr.mxu0 0.0
    %3248 = vmatpush1.msra.mxu0 0.0
    %3249 = vmatprep.subr.mxu0 0.0
    %3250 = vmatpush1.msra.mxu0 0.0
    %3251 = vmatprep.subr.mxu0 0.0
    %3252 = vmatpush1.msra.mxu0 0.0
    %3253 = vmatprep.subr.mxu0 0.0
    %3254 = vmatpush1.msra.mxu0 0.0
    %3255 = vmatprep.subr.mxu0 0.0
    %3256 = vmatpush1.msra.mxu0 0.0
    %3257 = vmatprep.subr.mxu0 0.0
    %3258 = vmatpush1.msra.mxu0 %v190
    %3259 = vmatprep.subr.mxu0 0.0
    %3260 = vmatpush1.msra.mxu0 %v189
    %3261 = vmatprep.subr.mxu0 0.0
    %3262 = vmatpush1.msra.mxu0 %v188
    %3263 = vmatprep.subr.mxu0 0.0
    %3264 = vmatpush1.msra.mxu0 %v187
    %3265 = vmatprep.subr.mxu0 0.0
    %3266 = vmatpush2.msra.mxu0 0.0
    %3267 = vmatprep.subr.mxu0 0.0
    %3268 = vmatpush2.msra.mxu0 0.0
    %3269 = vmatprep.subr.mxu0 0.0
    %3270 = vmatpush2.msra.mxu0 0.0
    %3271 = vmatprep.subr.mxu0 0.0
    %3272 = vmatpush2.msra.mxu0 0.0
    %3273 = vmatprep.subr.mxu0 0.0
    %3274 = vmatpush2.msra.mxu0 0.0
    %3275 = vmatprep.subr.mxu0 0.0
    %3276 = vmatpush2.msra.mxu0 0.0
    %3277 = vmatprep.subr.mxu0 0.0
    %3278 = vmatpush2.msra.mxu0 0.0
    %3279 = vmatprep.subr.mxu0 0.0
    %3280 = vmatpush2.msra.mxu0 0.0
    %3281 = vmatprep.subr.mxu0 0.0
    %3282 = vmatpush2.msra.mxu0 0.0
    %3283 = vmatprep.subr.mxu0 0.0
    %3284 = vmatpush2.msra.mxu0 0.0
    %3285 = vmatprep.subr.mxu0 0.0
    %3286 = vmatpush2.msra.mxu0 0.0
    %3287 = vmatprep.subr.mxu0 0.0
    %3288 = vmatpush2.msra.mxu0 0.0
    %3289 = vmatprep.subr.mxu0 0.0
    %3290 = vmatpush2.msra.mxu0 0.0
    %3291 = vmatprep.subr.mxu0 0.0
    %3292 = vmatpush2.msra.mxu0 0.0
    %3293 = vmatprep.subr.mxu0 0.0
    %3294 = vmatpush2.msra.mxu0 0.0
    %3295 = vmatprep.subr.mxu0 0.0
    %3296 = vmatpush2.msra.mxu0 0.0
    %3297 = vmatprep.mubr.f32.mxu0 0.0
    %3298 = vmatmul.mubr.f32.gmra.mxu0 %v3231
    %v3299 = vpop.f32.mrf.mxu0
    %v3300 = vadd.f32 %v195, %v3299
    %v3301 = vpop.f32.mrf.mxu0
    %3302 = vdwg.mxu0
    %3304 = vrot.lane.b32.xlu0 %v3220, 96
    %v3305 = vpop.permute.xlu0 %3304
    %v3306 = vsel %vm738, %v3305, 0
    %3308 = vmatprep.subr.mxu0 0.0
    %3309 = vmatpush1.msra.mxu0 0.0
    %3310 = vmatprep.subr.mxu0 0.0
    %3311 = vmatpush1.msra.mxu0 0.0
    %3312 = vmatprep.subr.mxu0 0.0
    %3313 = vmatpush1.msra.mxu0 0.0
    %3314 = vmatprep.subr.mxu0 0.0
    %3315 = vmatpush1.msra.mxu0 0.0
    %3316 = vmatprep.subr.mxu0 0.0
    %3317 = vmatpush1.msra.mxu0 0.0
    %3318 = vmatprep.subr.mxu0 0.0
    %3319 = vmatpush1.msra.mxu0 0.0
    %3320 = vmatprep.subr.mxu0 0.0
    %3321 = vmatpush1.msra.mxu0 0.0
    %3322 = vmatprep.subr.mxu0 0.0
    %3323 = vmatpush1.msra.mxu0 0.0
    %3324 = vmatprep.subr.mxu0 0.0
    %3325 = vmatpush1.msra.mxu0 0.0
    %3326 = vmatprep.subr.mxu0 0.0
    %3327 = vmatpush1.msra.mxu0 0.0
    %3328 = vmatprep.subr.mxu0 0.0
    %3329 = vmatpush1.msra.mxu0 0.0
    %3330 = vmatprep.subr.mxu0 0.0
    %3331 = vmatpush1.msra.mxu0 0.0
    %3332 = vmatprep.subr.mxu0 0.0
    %3333 = vmatpush1.msra.mxu0 %v194
    %3334 = vmatprep.subr.mxu0 0.0
    %3335 = vmatpush1.msra.mxu0 %v193
    %3336 = vmatprep.subr.mxu0 0.0
    %3337 = vmatpush1.msra.mxu0 %v192
    %3338 = vmatprep.subr.mxu0 0.0
    %3339 = vmatpush1.msra.mxu0 %v191
    %3340 = vmatprep.subr.mxu0 0.0
    %3341 = vmatpush2.msra.mxu0 0.0
    %3342 = vmatprep.subr.mxu0 0.0
    %3343 = vmatpush2.msra.mxu0 0.0
    %3344 = vmatprep.subr.mxu0 0.0
    %3345 = vmatpush2.msra.mxu0 0.0
    %3346 = vmatprep.subr.mxu0 0.0
    %3347 = vmatpush2.msra.mxu0 0.0
    %3348 = vmatprep.subr.mxu0 0.0
    %3349 = vmatpush2.msra.mxu0 0.0
    %3350 = vmatprep.subr.mxu0 0.0
    %3351 = vmatpush2.msra.mxu0 0.0
    %3352 = vmatprep.subr.mxu0 0.0
    %3353 = vmatpush2.msra.mxu0 0.0
    %3354 = vmatprep.subr.mxu0 0.0
    %3355 = vmatpush2.msra.mxu0 0.0
    %3356 = vmatprep.subr.mxu0 0.0
    %3357 = vmatpush2.msra.mxu0 0.0
    %3358 = vmatprep.subr.mxu0 0.0
    %3359 = vmatpush2.msra.mxu0 0.0
    %3360 = vmatprep.subr.mxu0 0.0
    %3361 = vmatpush2.msra.mxu0 0.0
    %3362 = vmatprep.subr.mxu0 0.0
    %3363 = vmatpush2.msra.mxu0 0.0
    %3364 = vmatprep.subr.mxu0 0.0
    %3365 = vmatpush2.msra.mxu0 0.0
    %3366 = vmatprep.subr.mxu0 0.0
    %3367 = vmatpush2.msra.mxu0 0.0
    %3368 = vmatprep.subr.mxu0 0.0
    %3369 = vmatpush2.msra.mxu0 0.0
    %3370 = vmatprep.subr.mxu0 0.0
    %3371 = vmatpush2.msra.mxu0 0.0
    %3372 = vmatprep.mubr.f32.mxu0 0.0
    %3373 = vmatmul.mubr.f32.gmra.mxu0 %v3306
    %v3374 = vpop.f32.mrf.mxu0
    %v3375 = vadd.f32 %v196, %v3374
    %v3376 = vpop.f32.mrf.mxu0
    %3377 = vdwg.mxu0
    %v3378 = vadd.f32 %v3300, %v3375
    %v3379 = vxor.u32 %v3378, 2147483648
    %v3380 = vmul.f32 %v3379, 1.442695
    %v3381 = vpow.pop %v3380
    %v3382 = vadd.f32 %v3381, 1.0
    %v3383 = vrcp.pop %v3382
    %v3384 = vmul.f32 1.0, %v3383
    %3386 = vrot.lane.b32.xlu0 %v3375, 64
    %v3387 = vpop.permute.xlu0 %3386
    %v3389 = vmul.f32 %v3384, %v3387
    %3391 = vrot.lane.b32.xlu0 %v3389, 64
    %v3392 = vpop.permute.xlu0 %3391
    %v3394 = vadd.f32 %v3300, %v3392
    %v3395 = vtanh.pop %v3394
    %v3396 = vsub.f32 1.0, %v3384
    %3398 = vrot.lane.b32.xlu0 %v3395, 96
    %v3399 = vpop.permute.xlu0 %3398
    %v3401 = vmul.f32 %v3396, %v3399
    %v3402 = vmul.f32 %v3384, %v3220
    %v3403 = vadd.f32 %v3401, %v3402
    %s3404 = sld [smem:[#allocation2 + $0x82]]
    %v3405 = vstv %s3404
    %v3406 = vmul.f32 %v3403, %v3405
    %s3407 = ssub.f32 1.0, %s3404
    %v3408 = vstv %s3407
    %v3409 = vmul.f32 %v3220, %v3408
    %v3410 = vadd.f32 %v3406, %v3409
    %v3411 = vmul.f32 %v3007, %v1644
    %v3412 = vsel %vm1237, %v3411, 0.0
    %v3413 = vrot.slane %v3412, 4
    %v3414 = vadd.f32 %v3412, %v3413
    %v3415 = vrot.slane %v3414, 2
    %v3416 = vadd.f32 %v3414, %v3415
    %v3417 = vrot.slane %v3416, 1
    %v3418 = vadd.f32 %v3416, %v3417
    %v3419 = vmul.f32 %v3418, 0.5
    %v3421 = vsel %vm738, %v3419, 0
    %3423 = vmatprep.subr.mxu0 0.0
    %3424 = vmatpush1.msra.mxu0 0.0
    %3425 = vmatprep.subr.mxu0 0.0
    %3426 = vmatpush1.msra.mxu0 0.0
    %3427 = vmatprep.subr.mxu0 0.0
    %3428 = vmatpush1.msra.mxu0 0.0
    %3429 = vmatprep.subr.mxu0 0.0
    %3430 = vmatpush1.msra.mxu0 0.0
    %3431 = vmatprep.subr.mxu0 0.0
    %3432 = vmatpush1.msra.mxu0 0.0
    %3433 = vmatprep.subr.mxu0 0.0
    %3434 = vmatpush1.msra.mxu0 0.0
    %3435 = vmatprep.subr.mxu0 0.0
    %3436 = vmatpush1.msra.mxu0 0.0
    %3437 = vmatprep.subr.mxu0 0.0
    %3438 = vmatpush1.msra.mxu0 0.0
    %3439 = vmatprep.subr.mxu0 0.0
    %3440 = vmatpush1.msra.mxu0 0.0
    %3441 = vmatprep.subr.mxu0 0.0
    %3442 = vmatpush1.msra.mxu0 0.0
    %3443 = vmatprep.subr.mxu0 0.0
    %3444 = vmatpush1.msra.mxu0 0.0
    %3445 = vmatprep.subr.mxu0 0.0
    %3446 = vmatpush1.msra.mxu0 0.0
    %3447 = vmatprep.subr.mxu0 0.0
    %3448 = vmatpush1.msra.mxu0 %v190
    %3449 = vmatprep.subr.mxu0 0.0
    %3450 = vmatpush1.msra.mxu0 %v189
    %3451 = vmatprep.subr.mxu0 0.0
    %3452 = vmatpush1.msra.mxu0 %v188
    %3453 = vmatprep.subr.mxu0 0.0
    %3454 = vmatpush1.msra.mxu0 %v187
    %3455 = vmatprep.subr.mxu0 0.0
    %3456 = vmatpush2.msra.mxu0 0.0
    %3457 = vmatprep.subr.mxu0 0.0
    %3458 = vmatpush2.msra.mxu0 0.0
    %3459 = vmatprep.subr.mxu0 0.0
    %3460 = vmatpush2.msra.mxu0 0.0
    %3461 = vmatprep.subr.mxu0 0.0
    %3462 = vmatpush2.msra.mxu0 0.0
    %3463 = vmatprep.subr.mxu0 0.0
    %3464 = vmatpush2.msra.mxu0 0.0
    %3465 = vmatprep.subr.mxu0 0.0
    %3466 = vmatpush2.msra.mxu0 0.0
    %3467 = vmatprep.subr.mxu0 0.0
    %3468 = vmatpush2.msra.mxu0 0.0
    %3469 = vmatprep.subr.mxu0 0.0
    %3470 = vmatpush2.msra.mxu0 0.0
    %3471 = vmatprep.subr.mxu0 0.0
    %3472 = vmatpush2.msra.mxu0 0.0
    %3473 = vmatprep.subr.mxu0 0.0
    %3474 = vmatpush2.msra.mxu0 0.0
    %3475 = vmatprep.subr.mxu0 0.0
    %3476 = vmatpush2.msra.mxu0 0.0
    %3477 = vmatprep.subr.mxu0 0.0
    %3478 = vmatpush2.msra.mxu0 0.0
    %3479 = vmatprep.subr.mxu0 0.0
    %3480 = vmatpush2.msra.mxu0 0.0
    %3481 = vmatprep.subr.mxu0 0.0
    %3482 = vmatpush2.msra.mxu0 0.0
    %3483 = vmatprep.subr.mxu0 0.0
    %3484 = vmatpush2.msra.mxu0 0.0
    %3485 = vmatprep.subr.mxu0 0.0
    %3486 = vmatpush2.msra.mxu0 0.0
    %3487 = vmatprep.mubr.f32.mxu0 0.0
    %3488 = vmatmul.mubr.f32.gmra.mxu0 %v3421
    %v3489 = vpop.f32.mrf.mxu0
    %v3490 = vadd.f32 %v195, %v3489
    %v3491 = vpop.f32.mrf.mxu0
    %3492 = vdwg.mxu0
    %3494 = vrot.lane.b32.xlu0 %v3410, 96
    %v3495 = vpop.permute.xlu0 %3494
    %v3496 = vsel %vm738, %v3495, 0
    %3498 = vmatprep.subr.mxu0 0.0
    %3499 = vmatpush1.msra.mxu0 0.0
    %3500 = vmatprep.subr.mxu0 0.0
    %3501 = vmatpush1.msra.mxu0 0.0
    %3502 = vmatprep.subr.mxu0 0.0
    %3503 = vmatpush1.msra.mxu0 0.0
    %3504 = vmatprep.subr.mxu0 0.0
    %3505 = vmatpush1.msra.mxu0 0.0
    %3506 = vmatprep.subr.mxu0 0.0
    %3507 = vmatpush1.msra.mxu0 0.0
    %3508 = vmatprep.subr.mxu0 0.0
    %3509 = vmatpush1.msra.mxu0 0.0
    %3510 = vmatprep.subr.mxu0 0.0
    %3511 = vmatpush1.msra.mxu0 0.0
    %3512 = vmatprep.subr.mxu0 0.0
    %3513 = vmatpush1.msra.mxu0 0.0
    %3514 = vmatprep.subr.mxu0 0.0
    %3515 = vmatpush1.msra.mxu0 0.0
    %3516 = vmatprep.subr.mxu0 0.0
    %3517 = vmatpush1.msra.mxu0 0.0
    %3518 = vmatprep.subr.mxu0 0.0
    %3519 = vmatpush1.msra.mxu0 0.0
    %3520 = vmatprep.subr.mxu0 0.0
    %3521 = vmatpush1.msra.mxu0 0.0
    %3522 = vmatprep.subr.mxu0 0.0
    %3523 = vmatpush1.msra.mxu0 %v194
    %3524 = vmatprep.subr.mxu0 0.0
    %3525 = vmatpush1.msra.mxu0 %v193
    %3526 = vmatprep.subr.mxu0 0.0
    %3527 = vmatpush1.msra.mxu0 %v192
    %3528 = vmatprep.subr.mxu0 0.0
    %3529 = vmatpush1.msra.mxu0 %v191
    %3530 = vmatprep.subr.mxu0 0.0
    %3531 = vmatpush2.msra.mxu0 0.0
    %3532 = vmatprep.subr.mxu0 0.0
    %3533 = vmatpush2.msra.mxu0 0.0
    %3534 = vmatprep.subr.mxu0 0.0
    %3535 = vmatpush2.msra.mxu0 0.0
    %3536 = vmatprep.subr.mxu0 0.0
    %3537 = vmatpush2.msra.mxu0 0.0
    %3538 = vmatprep.subr.mxu0 0.0
    %3539 = vmatpush2.msra.mxu0 0.0
    %3540 = vmatprep.subr.mxu0 0.0
    %3541 = vmatpush2.msra.mxu0 0.0
    %3542 = vmatprep.subr.mxu0 0.0
    %3543 = vmatpush2.msra.mxu0 0.0
    %3544 = vmatprep.subr.mxu0 0.0
    %3545 = vmatpush2.msra.mxu0 0.0
    %3546 = vmatprep.subr.mxu0 0.0
    %3547 = vmatpush2.msra.mxu0 0.0
    %3548 = vmatprep.subr.mxu0 0.0
    %3549 = vmatpush2.msra.mxu0 0.0
    %3550 = vmatprep.subr.mxu0 0.0
    %3551 = vmatpush2.msra.mxu0 0.0
    %3552 = vmatprep.subr.mxu0 0.0
    %3553 = vmatpush2.msra.mxu0 0.0
    %3554 = vmatprep.subr.mxu0 0.0
    %3555 = vmatpush2.msra.mxu0 0.0
    %3556 = vmatprep.subr.mxu0 0.0
    %3557 = vmatpush2.msra.mxu0 0.0
    %3558 = vmatprep.subr.mxu0 0.0
    %3559 = vmatpush2.msra.mxu0 0.0
    %3560 = vmatprep.subr.mxu0 0.0
    %3561 = vmatpush2.msra.mxu0 0.0
    %3562 = vmatprep.mubr.f32.mxu0 0.0
    %3563 = vmatmul.mubr.f32.gmra.mxu0 %v3496
    %v3564 = vpop.f32.mrf.mxu0
    %v3565 = vadd.f32 %v196, %v3564
    %v3566 = vpop.f32.mrf.mxu0
    %3567 = vdwg.mxu0
    %v3568 = vadd.f32 %v3490, %v3565
    %v3569 = vxor.u32 %v3568, 2147483648
    %v3570 = vmul.f32 %v3569, 1.442695
    %v3571 = vpow.pop %v3570
    %v3572 = vadd.f32 %v3571, 1.0
    %v3573 = vrcp.pop %v3572
    %v3574 = vmul.f32 1.0, %v3573
    %3576 = vrot.lane.b32.xlu0 %v3565, 64
    %v3577 = vpop.permute.xlu0 %3576
    %v3579 = vmul.f32 %v3574, %v3577
    %3581 = vrot.lane.b32.xlu0 %v3579, 64
    %v3582 = vpop.permute.xlu0 %3581
    %v3584 = vadd.f32 %v3490, %v3582
    %v3585 = vtanh.pop %v3584
    %v3586 = vsub.f32 1.0, %v3574
    %3588 = vrot.lane.b32.xlu0 %v3585, 96
    %v3589 = vpop.permute.xlu0 %3588
    %v3591 = vmul.f32 %v3586, %v3589
    %v3592 = vmul.f32 %v3574, %v3410
    %v3593 = vadd.f32 %v3591, %v3592
    %s3594 = sld [smem:[#allocation2 + $0x81]]
    %v3595 = vstv %s3594
    %v3596 = vmul.f32 %v3593, %v3595
    %s3597 = ssub.f32 1.0, %s3594
    %v3598 = vstv %s3597
    %v3599 = vmul.f32 %v3410, %v3598
    %v3600 = vadd.f32 %v3596, %v3599
    %v3601 = vmul.f32 %v3007, %v1837
    %v3602 = vsel %vm1237, %v3601, 0.0
    %v3603 = vrot.slane %v3602, 4
    %v3604 = vadd.f32 %v3602, %v3603
    %v3605 = vrot.slane %v3604, 2
    %v3606 = vadd.f32 %v3604, %v3605
    %v3607 = vrot.slane %v3606, 1
    %v3608 = vadd.f32 %v3606, %v3607
    %v3610 = vsel %vm738, %v3608, 0
    %3612 = vmatprep.subr.mxu0 0.0
    %3613 = vmatpush1.msra.mxu0 0.0
    %3614 = vmatprep.subr.mxu0 0.0
    %3615 = vmatpush1.msra.mxu0 0.0
    %3616 = vmatprep.subr.mxu0 0.0
    %3617 = vmatpush1.msra.mxu0 0.0
    %3618 = vmatprep.subr.mxu0 0.0
    %3619 = vmatpush1.msra.mxu0 0.0
    %3620 = vmatprep.subr.mxu0 0.0
    %3621 = vmatpush1.msra.mxu0 0.0
    %3622 = vmatprep.subr.mxu0 0.0
    %3623 = vmatpush1.msra.mxu0 0.0
    %3624 = vmatprep.subr.mxu0 0.0
    %3625 = vmatpush1.msra.mxu0 0.0
    %3626 = vmatprep.subr.mxu0 0.0
    %3627 = vmatpush1.msra.mxu0 0.0
    %3628 = vmatprep.subr.mxu0 0.0
    %3629 = vmatpush1.msra.mxu0 0.0
    %3630 = vmatprep.subr.mxu0 0.0
    %3631 = vmatpush1.msra.mxu0 0.0
    %3632 = vmatprep.subr.mxu0 0.0
    %3633 = vmatpush1.msra.mxu0 0.0
    %3634 = vmatprep.subr.mxu0 0.0
    %3635 = vmatpush1.msra.mxu0 0.0
    %3636 = vmatprep.subr.mxu0 0.0
    %3637 = vmatpush1.msra.mxu0 %v190
    %3638 = vmatprep.subr.mxu0 0.0
    %3639 = vmatpush1.msra.mxu0 %v189
    %3640 = vmatprep.subr.mxu0 0.0
    %3641 = vmatpush1.msra.mxu0 %v188
    %3642 = vmatprep.subr.mxu0 0.0
    %3643 = vmatpush1.msra.mxu0 %v187
    %3644 = vmatprep.subr.mxu0 0.0
    %3645 = vmatpush2.msra.mxu0 0.0
    %3646 = vmatprep.subr.mxu0 0.0
    %3647 = vmatpush2.msra.mxu0 0.0
    %3648 = vmatprep.subr.mxu0 0.0
    %3649 = vmatpush2.msra.mxu0 0.0
    %3650 = vmatprep.subr.mxu0 0.0
    %3651 = vmatpush2.msra.mxu0 0.0
    %3652 = vmatprep.subr.mxu0 0.0
    %3653 = vmatpush2.msra.mxu0 0.0
    %3654 = vmatprep.subr.mxu0 0.0
    %3655 = vmatpush2.msra.mxu0 0.0
    %3656 = vmatprep.subr.mxu0 0.0
    %3657 = vmatpush2.msra.mxu0 0.0
    %3658 = vmatprep.subr.mxu0 0.0
    %3659 = vmatpush2.msra.mxu0 0.0
    %3660 = vmatprep.subr.mxu0 0.0
    %3661 = vmatpush2.msra.mxu0 0.0
    %3662 = vmatprep.subr.mxu0 0.0
    %3663 = vmatpush2.msra.mxu0 0.0
    %3664 = vmatprep.subr.mxu0 0.0
    %3665 = vmatpush2.msra.mxu0 0.0
    %3666 = vmatprep.subr.mxu0 0.0
    %3667 = vmatpush2.msra.mxu0 0.0
    %3668 = vmatprep.subr.mxu0 0.0
    %3669 = vmatpush2.msra.mxu0 0.0
    %3670 = vmatprep.subr.mxu0 0.0
    %3671 = vmatpush2.msra.mxu0 0.0
    %3672 = vmatprep.subr.mxu0 0.0
    %3673 = vmatpush2.msra.mxu0 0.0
    %3674 = vmatprep.subr.mxu0 0.0
    %3675 = vmatpush2.msra.mxu0 0.0
    %3676 = vmatprep.mubr.f32.mxu0 0.0
    %3677 = vmatmul.mubr.f32.gmra.mxu0 %v3610
    %v3678 = vpop.f32.mrf.mxu0
    %v3679 = vadd.f32 %v195, %v3678
    %v3680 = vpop.f32.mrf.mxu0
    %3681 = vdwg.mxu0
    %3683 = vrot.lane.b32.xlu0 %v3600, 96
    %v3684 = vpop.permute.xlu0 %3683
    %v3685 = vsel %vm738, %v3684, 0
    %3687 = vmatprep.subr.mxu0 0.0
    %3688 = vmatpush1.msra.mxu0 0.0
    %3689 = vmatprep.subr.mxu0 0.0
    %3690 = vmatpush1.msra.mxu0 0.0
    %3691 = vmatprep.subr.mxu0 0.0
    %3692 = vmatpush1.msra.mxu0 0.0
    %3693 = vmatprep.subr.mxu0 0.0
    %3694 = vmatpush1.msra.mxu0 0.0
    %3695 = vmatprep.subr.mxu0 0.0
    %3696 = vmatpush1.msra.mxu0 0.0
    %3697 = vmatprep.subr.mxu0 0.0
    %3698 = vmatpush1.msra.mxu0 0.0
    %3699 = vmatprep.subr.mxu0 0.0
    %3700 = vmatpush1.msra.mxu0 0.0
    %3701 = vmatprep.subr.mxu0 0.0
    %3702 = vmatpush1.msra.mxu0 0.0
    %3703 = vmatprep.subr.mxu0 0.0
    %3704 = vmatpush1.msra.mxu0 0.0
    %3705 = vmatprep.subr.mxu0 0.0
    %3706 = vmatpush1.msra.mxu0 0.0
    %3707 = vmatprep.subr.mxu0 0.0
    %3708 = vmatpush1.msra.mxu0 0.0
    %3709 = vmatprep.subr.mxu0 0.0
    %3710 = vmatpush1.msra.mxu0 0.0
    %3711 = vmatprep.subr.mxu0 0.0
    %3712 = vmatpush1.msra.mxu0 %v194
    %3713 = vmatprep.subr.mxu0 0.0
    %3714 = vmatpush1.msra.mxu0 %v193
    %3715 = vmatprep.subr.mxu0 0.0
    %3716 = vmatpush1.msra.mxu0 %v192
    %3717 = vmatprep.subr.mxu0 0.0
    %3718 = vmatpush1.msra.mxu0 %v191
    %3719 = vmatprep.subr.mxu0 0.0
    %3720 = vmatpush2.msra.mxu0 0.0
    %3721 = vmatprep.subr.mxu0 0.0
    %3722 = vmatpush2.msra.mxu0 0.0
    %3723 = vmatprep.subr.mxu0 0.0
    %3724 = vmatpush2.msra.mxu0 0.0
    %3725 = vmatprep.subr.mxu0 0.0
    %3726 = vmatpush2.msra.mxu0 0.0
    %3727 = vmatprep.subr.mxu0 0.0
    %3728 = vmatpush2.msra.mxu0 0.0
    %3729 = vmatprep.subr.mxu0 0.0
    %3730 = vmatpush2.msra.mxu0 0.0
    %3731 = vmatprep.subr.mxu0 0.0
    %3732 = vmatpush2.msra.mxu0 0.0
    %3733 = vmatprep.subr.mxu0 0.0
    %3734 = vmatpush2.msra.mxu0 0.0
    %3735 = vmatprep.subr.mxu0 0.0
    %3736 = vmatpush2.msra.mxu0 0.0
    %3737 = vmatprep.subr.mxu0 0.0
    %3738 = vmatpush2.msra.mxu0 0.0
    %3739 = vmatprep.subr.mxu0 0.0
    %3740 = vmatpush2.msra.mxu0 0.0
    %3741 = vmatprep.subr.mxu0 0.0
    %3742 = vmatpush2.msra.mxu0 0.0
    %3743 = vmatprep.subr.mxu0 0.0
    %3744 = vmatpush2.msra.mxu0 0.0
    %3745 = vmatprep.subr.mxu0 0.0
    %3746 = vmatpush2.msra.mxu0 0.0
    %3747 = vmatprep.subr.mxu0 0.0
    %3748 = vmatpush2.msra.mxu0 0.0
    %3749 = vmatprep.subr.mxu0 0.0
    %3750 = vmatpush2.msra.mxu0 0.0
    %3751 = vmatprep.mubr.f32.mxu0 0.0
    %3752 = vmatmul.mubr.f32.gmra.mxu0 %v3685
    %v3753 = vpop.f32.mrf.mxu0
    %v3754 = vadd.f32 %v196, %v3753
    %v3755 = vpop.f32.mrf.mxu0
    %3756 = vdwg.mxu0
    %v3757 = vadd.f32 %v3679, %v3754
    %v3758 = vxor.u32 %v3757, 2147483648
    %v3759 = vmul.f32 %v3758, 1.442695
    %v3760 = vpow.pop %v3759
    %v3761 = vadd.f32 %v3760, 1.0
    %v3762 = vrcp.pop %v3761
    %v3763 = vmul.f32 1.0, %v3762
    %3765 = vrot.lane.b32.xlu0 %v3754, 64
    %v3766 = vpop.permute.xlu0 %3765
    %v3768 = vmul.f32 %v3763, %v3766
    %3770 = vrot.lane.b32.xlu0 %v3768, 64
    %v3771 = vpop.permute.xlu0 %3770
    %v3773 = vadd.f32 %v3679, %v3771
    %v3774 = vtanh.pop %v3773
    %v3775 = vsub.f32 1.0, %v3763
    %3777 = vrot.lane.b32.xlu0 %v3774, 96
    %v3778 = vpop.permute.xlu0 %3777
    %v3780 = vmul.f32 %v3775, %v3778
    %v3781 = vmul.f32 %v3763, %v3600
    %v3782 = vadd.f32 %v3780, %v3781
    %s3783 = sld [smem:[#allocation2 + $0x80]]
    %v3784 = vstv %s3783
    %v3785 = vmul.f32 %v3782, %v3784
    %s3786 = ssub.f32 1.0, %s3783
    %v3787 = vstv %s3786
    %v3788 = vmul.f32 %v3600, %v3787
    %v3789 = vadd.f32 %v3785, %v3788
    %3791 = vrot.lane.b32.xlu0 %v3789, 96
    %v3792 = vpop.permute.xlu0 %3791
    %v3793 = vsel %vm738, %v3792, 0
    %3795 = vmatprep.subr.mxu0 0.0
    %3796 = vmatpush1.msra.mxu0 0.0
    %3797 = vmatprep.subr.mxu0 0.0
    %3798 = vmatpush1.msra.mxu0 0.0
    %3799 = vmatprep.subr.mxu0 0.0
    %3800 = vmatpush1.msra.mxu0 0.0
    %3801 = vmatprep.subr.mxu0 0.0
    %3802 = vmatpush1.msra.mxu0 0.0
    %3803 = vmatprep.subr.mxu0 0.0
    %3804 = vmatpush1.msra.mxu0 0.0
    %3805 = vmatprep.subr.mxu0 0.0
    %3806 = vmatpush1.msra.mxu0 0.0
    %3807 = vmatprep.subr.mxu0 0.0
    %3808 = vmatpush1.msra.mxu0 0.0
    %3809 = vmatprep.subr.mxu0 0.0
    %3810 = vmatpush1.msra.mxu0 0.0
    %3811 = vmatprep.subr.mxu0 0.0
    %3812 = vmatpush1.msra.mxu0 0.0
    %3813 = vmatprep.subr.mxu0 0.0
    %3814 = vmatpush1.msra.mxu0 0.0
    %3815 = vmatprep.subr.mxu0 0.0
    %3816 = vmatpush1.msra.mxu0 0.0
    %3817 = vmatprep.subr.mxu0 0.0
    %3818 = vmatpush1.msra.mxu0 0.0
    %3819 = vmatprep.subr.mxu0 0.0
    %3820 = vmatpush1.msra.mxu0 %v194
    %3821 = vmatprep.subr.mxu0 0.0
    %3822 = vmatpush1.msra.mxu0 %v193
    %3823 = vmatprep.subr.mxu0 0.0
    %3824 = vmatpush1.msra.mxu0 %v192
    %3825 = vmatprep.subr.mxu0 0.0
    %3826 = vmatpush1.msra.mxu0 %v191
    %3827 = vmatprep.subr.mxu0 0.0
    %3828 = vmatpush2.msra.mxu0 0.0
    %3829 = vmatprep.subr.mxu0 0.0
    %3830 = vmatpush2.msra.mxu0 0.0
    %3831 = vmatprep.subr.mxu0 0.0
    %3832 = vmatpush2.msra.mxu0 0.0
    %3833 = vmatprep.subr.mxu0 0.0
    %3834 = vmatpush2.msra.mxu0 0.0
    %3835 = vmatprep.subr.mxu0 0.0
    %3836 = vmatpush2.msra.mxu0 0.0
    %3837 = vmatprep.subr.mxu0 0.0
    %3838 = vmatpush2.msra.mxu0 0.0
    %3839 = vmatprep.subr.mxu0 0.0
    %3840 = vmatpush2.msra.mxu0 0.0
    %3841 = vmatprep.subr.mxu0 0.0
    %3842 = vmatpush2.msra.mxu0 0.0
    %3843 = vmatprep.subr.mxu0 0.0
    %3844 = vmatpush2.msra.mxu0 0.0
    %3845 = vmatprep.subr.mxu0 0.0
    %3846 = vmatpush2.msra.mxu0 0.0
    %3847 = vmatprep.subr.mxu0 0.0
    %3848 = vmatpush2.msra.mxu0 0.0
    %3849 = vmatprep.subr.mxu0 0.0
    %3850 = vmatpush2.msra.mxu0 0.0
    %3851 = vmatprep.subr.mxu0 0.0
    %3852 = vmatpush2.msra.mxu0 0.0
    %3853 = vmatprep.subr.mxu0 0.0
    %3854 = vmatpush2.msra.mxu0 0.0
    %3855 = vmatprep.subr.mxu0 0.0
    %3856 = vmatpush2.msra.mxu0 0.0
    %3857 = vmatprep.subr.mxu0 0.0
    %3858 = vmatpush2.msra.mxu0 0.0
    %3859 = vmatprep.mubr.f32.mxu0 0.0
    %3860 = vmatmul.mubr.f32.gmra.mxu0 %v3793
    %v3861 = vpop.f32.mrf.mxu0
    %v3862 = vadd.f32 %v196, %v3861
    %v3863 = vpop.f32.mrf.mxu0
    %3864 = vdwg.mxu0
    %v3865 = vadd.f32 %v2097, %v3862
    %v3866 = vxor.u32 %v3865, 2147483648
    %v3867 = vmul.f32 %v3866, 1.442695
    %v3868 = vpow.pop %v3867
    %v3869 = vadd.f32 %v3868, 1.0
    %v3870 = vrcp.pop %v3869
    %v3871 = vmul.f32 1.0, %v3870
    %3873 = vrot.lane.b32.xlu0 %v3862, 64
    %v3874 = vpop.permute.xlu0 %3873
    %v3876 = vmul.f32 %v3871, %v3874
    %3878 = vrot.lane.b32.xlu0 %v3876, 64
    %v3879 = vpop.permute.xlu0 %3878
    %v3881 = vadd.f32 %v2097, %v3879
    %v3882 = vtanh.pop %v3881
    %v3883 = vsub.f32 1.0, %v3871
    %3885 = vrot.lane.b32.xlu0 %v3882, 96
    %v3886 = vpop.permute.xlu0 %3885
    %v3888 = vmul.f32 %v3883, %v3886
    %v3889 = vmul.f32 %v3871, %v3789
    %v3890 = vadd.f32 %v3888, %v3889
    %3892 = vrot.lane.b32.xlu0 %v3890, 96
    %v3893 = vpop.permute.xlu0 %3892
    %v3895 = vsel %vm2205, %v3893, 0.0
    %3896 = vadd.xlane.f32.xlu0 %v3895
    %v3897 = vpop.xlane.xlu0 %3896
    %v3898 = vmul.f32 %v3897, %v2209
    %v3899 = vsub.f32 %v3890, %v3898
    %v3900 = vmul.f32 %v3899, %v3899
    %3902 = vrot.lane.b32.xlu0 %v3900, 96
    %v3903 = vpop.permute.xlu0 %3902
    %v3905 = vsel %vm2205, %v3903, 0.0
    %3906 = vadd.xlane.f32.xlu0 %v3905
    %v3907 = vpop.xlane.xlu0 %3906
    %v3908 = vmul.f32 %v3907, %v2209
    %v3909 = vadd.f32 %v3908, 1e-05
    %v3910 = vrsqrt.pop %v3909
    %v3911 = vmul.f32 %v3899, %v3910
    %v3912 = vmul.f32 %v3911, %v2230
    %v3913 = vadd.f32 %v3912, %v2239
    %3915 = vrot.lane.b32.xlu0 %v3913, 96
    %v3916 = vpop.permute.xlu0 %3915
    %v3917 = vsel %vm738, %v3916, 0
    %3919 = vmatprep.subr.mxu0 0.0
    %3920 = vmatpush1.msra.mxu0 0.0
    %3921 = vmatprep.subr.mxu0 0.0
    %3922 = vmatpush1.msra.mxu0 0.0
    %3923 = vmatprep.subr.mxu0 0.0
    %3924 = vmatpush1.msra.mxu0 0.0
    %3925 = vmatprep.subr.mxu0 0.0
    %3926 = vmatpush1.msra.mxu0 0.0
    %3927 = vmatprep.subr.mxu0 0.0
    %3928 = vmatpush1.msra.mxu0 0.0
    %3929 = vmatprep.subr.mxu0 0.0
    %3930 = vmatpush1.msra.mxu0 0.0
    %3931 = vmatprep.subr.mxu0 0.0
    %3932 = vmatpush1.msra.mxu0 0.0
    %3933 = vmatprep.subr.mxu0 0.0
    %3934 = vmatpush1.msra.mxu0 0.0
    %3935 = vmatprep.subr.mxu0 0.0
    %3936 = vmatpush1.msra.mxu0 0.0
    %3937 = vmatprep.subr.mxu0 0.0
    %3938 = vmatpush1.msra.mxu0 0.0
    %3939 = vmatprep.subr.mxu0 0.0
    %3940 = vmatpush1.msra.mxu0 0.0
    %3941 = vmatprep.subr.mxu0 0.0
    %3942 = vmatpush1.msra.mxu0 0.0
    %3943 = vmatprep.subr.mxu0 0.0
    %3944 = vmatpush1.msra.mxu0 %v204
    %3945 = vmatprep.subr.mxu0 0.0
    %3946 = vmatpush1.msra.mxu0 %v203
    %3947 = vmatprep.subr.mxu0 0.0
    %3948 = vmatpush1.msra.mxu0 %v202
    %3949 = vmatprep.subr.mxu0 0.0
    %3950 = vmatpush1.msra.mxu0 %v201
    %3951 = vmatprep.subr.mxu0 0.0
    %3952 = vmatpush2.msra.mxu0 0.0
    %3953 = vmatprep.subr.mxu0 0.0
    %3954 = vmatpush2.msra.mxu0 0.0
    %3955 = vmatprep.subr.mxu0 0.0
    %3956 = vmatpush2.msra.mxu0 0.0
    %3957 = vmatprep.subr.mxu0 0.0
    %3958 = vmatpush2.msra.mxu0 0.0
    %3959 = vmatprep.subr.mxu0 0.0
    %3960 = vmatpush2.msra.mxu0 0.0
    %3961 = vmatprep.subr.mxu0 0.0
    %3962 = vmatpush2.msra.mxu0 0.0
    %3963 = vmatprep.subr.mxu0 0.0
    %3964 = vmatpush2.msra.mxu0 0.0
    %3965 = vmatprep.subr.mxu0 0.0
    %3966 = vmatpush2.msra.mxu0 0.0
    %3967 = vmatprep.subr.mxu0 0.0
    %3968 = vmatpush2.msra.mxu0 0.0
    %3969 = vmatprep.subr.mxu0 0.0
    %3970 = vmatpush2.msra.mxu0 0.0
    %3971 = vmatprep.subr.mxu0 0.0
    %3972 = vmatpush2.msra.mxu0 0.0
    %3973 = vmatprep.subr.mxu0 0.0
    %3974 = vmatpush2.msra.mxu0 0.0
    %3975 = vmatprep.subr.mxu0 0.0
    %3976 = vmatpush2.msra.mxu0 0.0
    %3977 = vmatprep.subr.mxu0 0.0
    %3978 = vmatpush2.msra.mxu0 0.0
    %3979 = vmatprep.subr.mxu0 0.0
    %3980 = vmatpush2.msra.mxu0 0.0
    %3981 = vmatprep.subr.mxu0 0.0
    %3982 = vmatpush2.msra.mxu0 0.0
    %3983 = vmatprep.mubr.f32.mxu0 0.0
    %3984 = vmatmul.mubr.f32.gmra.mxu0 %v3917
    %v3985 = vpop.f32.mrf.mxu0
    %v3986 = vadd.f32 %v205, %v3985
    %v3987 = vpop.f32.mrf.mxu0
    %3988 = vdwg.mxu0
    %vm3989 = vcmp.gt.f32.partialorder %v3986, 0.0
    %v3990 = vmul.f32 %v3986, 0.01
    %v3991 = vsel %vm3989, %v3986, %v3990
    %v3992 = vsel %vm2205, %v3991, 0.0
    %3993 = vadd.xlane.f32.xlu0 %v3992
    %v3994 = vpop.xlane.xlu0 %3993
    %v3995 = vmul.f32 %v3994, %v2209
    %v3996 = vsub.f32 %v3991, %v3995
    %v3997 = vmul.f32 %v3996, %v3996
    %v3998 = vsel %vm2205, %v3997, 0.0
    %3999 = vadd.xlane.f32.xlu0 %v3998
    %v4000 = vpop.xlane.xlu0 %3999
    %v4001 = vmul.f32 %v4000, %v2209
    %v4002 = vadd.f32 %v4001, 1e-05
    %v4003 = vrsqrt.pop %v4002
    %v4004 = vmul.f32 %v3996, %v4003
    %v4005 = vmul.f32 %v4004, %v206
    %v4006 = vadd.f32 %v4005, %v207
    %v4008 = vsel %vm738, %v4006, 0
    %4010 = vmatprep.subr.mxu0 0.0
    %4011 = vmatpush1.msra.mxu0 0.0
    %4012 = vmatprep.subr.mxu0 0.0
    %4013 = vmatpush1.msra.mxu0 0.0
    %4014 = vmatprep.subr.mxu0 0.0
    %4015 = vmatpush1.msra.mxu0 0.0
    %4016 = vmatprep.subr.mxu0 0.0
    %4017 = vmatpush1.msra.mxu0 0.0
    %4018 = vmatprep.subr.mxu0 0.0
    %4019 = vmatpush1.msra.mxu0 0.0
    %4020 = vmatprep.subr.mxu0 0.0
    %4021 = vmatpush1.msra.mxu0 0.0
    %4022 = vmatprep.subr.mxu0 0.0
    %4023 = vmatpush1.msra.mxu0 0.0
    %4024 = vmatprep.subr.mxu0 0.0
    %4025 = vmatpush1.msra.mxu0 0.0
    %4026 = vmatprep.subr.mxu0 0.0
    %4027 = vmatpush1.msra.mxu0 0.0
    %4028 = vmatprep.subr.mxu0 0.0
    %4029 = vmatpush1.msra.mxu0 0.0
    %4030 = vmatprep.subr.mxu0 0.0
    %4031 = vmatpush1.msra.mxu0 0.0
    %4032 = vmatprep.subr.mxu0 0.0
    %4033 = vmatpush1.msra.mxu0 0.0
    %4034 = vmatprep.subr.mxu0 0.0
    %4035 = vmatpush1.msra.mxu0 %v211
    %4036 = vmatprep.subr.mxu0 0.0
    %4037 = vmatpush1.msra.mxu0 %v210
    %4038 = vmatprep.subr.mxu0 0.0
    %4039 = vmatpush1.msra.mxu0 %v209
    %4040 = vmatprep.subr.mxu0 0.0
    %4041 = vmatpush1.msra.mxu0 %v208
    %4042 = vmatprep.subr.mxu0 0.0
    %4043 = vmatpush2.msra.mxu0 0.0
    %4044 = vmatprep.subr.mxu0 0.0
    %4045 = vmatpush2.msra.mxu0 0.0
    %4046 = vmatprep.subr.mxu0 0.0
    %4047 = vmatpush2.msra.mxu0 0.0
    %4048 = vmatprep.subr.mxu0 0.0
    %4049 = vmatpush2.msra.mxu0 0.0
    %4050 = vmatprep.subr.mxu0 0.0
    %4051 = vmatpush2.msra.mxu0 0.0
    %4052 = vmatprep.subr.mxu0 0.0
    %4053 = vmatpush2.msra.mxu0 0.0
    %4054 = vmatprep.subr.mxu0 0.0
    %4055 = vmatpush2.msra.mxu0 0.0
    %4056 = vmatprep.subr.mxu0 0.0
    %4057 = vmatpush2.msra.mxu0 0.0
    %4058 = vmatprep.subr.mxu0 0.0
    %4059 = vmatpush2.msra.mxu0 0.0
    %4060 = vmatprep.subr.mxu0 0.0
    %4061 = vmatpush2.msra.mxu0 0.0
    %4062 = vmatprep.subr.mxu0 0.0
    %4063 = vmatpush2.msra.mxu0 0.0
    %4064 = vmatprep.subr.mxu0 0.0
    %4065 = vmatpush2.msra.mxu0 0.0
    %4066 = vmatprep.subr.mxu0 0.0
    %4067 = vmatpush2.msra.mxu0 0.0
    %4068 = vmatprep.subr.mxu0 0.0
    %4069 = vmatpush2.msra.mxu0 0.0
    %4070 = vmatprep.subr.mxu0 0.0
    %4071 = vmatpush2.msra.mxu0 0.0
    %4072 = vmatprep.subr.mxu0 0.0
    %4073 = vmatpush2.msra.mxu0 0.0
    %4074 = vmatprep.mubr.f32.mxu0 0.0
    %4075 = vmatmul.mubr.f32.gmra.mxu0 %v4008
    %v4076 = vpop.f32.mrf.mxu0
    %v4077 = vadd.f32 %v212, %v4076
    %v4078 = vpop.f32.mrf.mxu0
    %4079 = vdwg.mxu0
    %s4080 = scalar_lea.vmem %s17, 1
    %v4081 = vld [vmem:[%s4080] sm:$0x1]
    %v4082 = vmul.f32 %v4077, 0.5
    %v4083 = vmul.f32 %v4082, 1.442695
    %v4084 = vpow.pop %v4083
    %v4087 = vunpack.c.l.s4 1966171168
    %v4088 = vunpack.c.0.s8 %v4087
    %v4089 = vlaneseq
    %v4090 = vshrl.u32 %v4089, 7
    %v4091 = vsub.s32 %v4088, %v4090
    %v4092 = vrot.slane %v4084, %v4091
    %v4094 = vunpack.c.l.s4 1966171168
    %v4095 = vunpack.c.0.s8 %v4094
    %v4096 = vlaneseq
    %v4097 = vshrl.u32 %v4096, 7
    %v4098 = vsub.s32 %v4095, %v4097
    %v4099 = vrot.slane %v4092, %v4098
    %4100 = vrot.lane.b32.xlu0 %v4099, 112
    %v4101 = vpop.permute.xlu0 %4100
    %v4103 = vmul.f32 %v4081, %v4101
    %v4104 = vadd.f32 %v4103, %v4077
    %s4105 = scalar_lea.vmem %s69, 1
    %4106 = vst.msk [vmem:[%s4105] sm:$0x1] %vm2205, %v3893
    %4108 = vrot.lane.b32.xlu0 %v4077, 32
    %v4109 = vpop.permute.xlu0 %4108
    %4111 = vst.msk [vmem:[%s4105] sm:$0x1] %vm2437, %v4109
    %4112 = vst.msk [vmem:[%s4105] sm:$0x1] %vm2439, %v4109
    %v4114 = vlaneseq
    %v4115 = vshrl.u32 %v4114, 7
    %v4116 = vsub.s32 0, %v4115
    %v4117 = vrot.slane %v4104, %v4116
    %4118 = vrot.lane.b32.xlu0 %v4117, 64
    %v4119 = vpop.permute.xlu0 %4118
    %4121 = vst.msk [vmem:[%s4105] sm:$0x1] %vm2449, %v4119
    // Predicated region
    $region142: #{scaf_encoder_forward.1} parent=1 // pred_check
      _
    $region143: #{scaf_encoder_forward.1} parent=1 // pred_check_branch
      %4123 = sbr.rel (0) target = $region145
    $region144: #{scaf_encoder_forward.1} parent=1 // pred_region
      _
    $region145: #{scaf_encoder_forward.1} parent=1 // pred_fallthru
      _
    // Predicated region
    $region146: #{scaf_encoder_forward.1} parent=1 // pred_check
      _
    $region147: #{scaf_encoder_forward.1} parent=1 // pred_check_branch
      %4125 = sbr.rel (0) target = $region149
    $region148: #{scaf_encoder_forward.1} parent=1 // pred_region
      %s4127 = ssub.s32 128, 128
      %4128 = vsyncadd [#allocation3], %s4127
      %s4129 = sshll.u32 [#allocation5], 4
      %s4130 = int_to_ptr.vmem [resolvable:$true] %s4129
      %4135 = dma.vmem_to_hbm [thread:$0]  %s4130, 128, %s71, [#allocation3], 64, 64, 4
    $region149: #{scaf_encoder_forward.1} parent=1 // pred_fallthru
      _
    // Predicated region
    $region150: #{scaf_encoder_forward.1} parent=1 // pred_check
      _
    $region151: #{scaf_encoder_forward.1} parent=1 // pred_check_branch
      %4137 = sbr.rel (0) target = $region153
    $region152: #{scaf_encoder_forward.1} parent=1 // pred_region
      %s4139 = ssub.s32 512, 512
      %4140 = vsyncadd [#allocation7], %s4139
      %s4141 = sshll.u32 [#allocation6], 4
      %s4142 = int_to_ptr.vmem [resolvable:$true] %s4141
      %4147 = dma.vmem_to_hbm [thread:$0]  %s4142, 512, %s73, [#allocation7], 128, 128, 8
    $region153: #{scaf_encoder_forward.1} parent=1 // pred_fallthru
      _
    // Predicated region
    $region154: #{scaf_encoder_forward.1} parent=1 // pred_check
      _
    $region155: #{scaf_encoder_forward.1} parent=1 // pred_check_branch
      %4149 = sbr.rel (0) target = $region157
    $region156: #{scaf_encoder_forward.1} parent=1 // pred_region
      %s4151 = ssub.s32 512, 512
      %4152 = vsyncadd [#allocation7], %s4151
      %s4153 = sshll.u32 [#allocation8], 4
      %s4154 = int_to_ptr.vmem [resolvable:$true] %s4153
      %4159 = dma.vmem_to_hbm [thread:$0]  %s4154, 512, %s75, [#allocation7], 128, 128, 8
    $region157: #{scaf_encoder_forward.1} parent=1 // pred_fallthru
      _
    // Predicated region
    $region158: #{scaf_encoder_forward.1} parent=1 // pred_check
      _
    $region159: #{scaf_encoder_forward.1} parent=1 // pred_check_branch
      %4161 = sbr.rel (0) target = $region161
    $region160: #{scaf_encoder_forward.1} parent=1 // pred_region
      _
    $region161: #{scaf_encoder_forward.1} parent=1 // pred_fallthru
      _
    // Predicated region
    $region162: #{scaf_encoder_forward.1} parent=1 // pred_check
      _
    $region163: #{scaf_encoder_forward.1} parent=1 // pred_check_branch
      %4163 = sbr.rel (0) target = $region165
    $region164: #{scaf_encoder_forward.1} parent=1 // pred_region
      %4164 = dma.done [#allocation3], 128
    $region165: #{scaf_encoder_forward.1} parent=1 // pred_fallthru
      _
    // Predicated region
    $region166: #{scaf_encoder_forward.1} parent=1 // pred_check
      _
    $region167: #{scaf_encoder_forward.1} parent=1 // pred_check_branch
      %4166 = sbr.rel (0) target = $region169
    $region168: #{scaf_encoder_forward.1} parent=1 // pred_region
      %4167 = dma.done [#allocation7], 512
    $region169: #{scaf_encoder_forward.1} parent=1 // pred_fallthru
      _
    // Predicated region
    $region170: #{scaf_encoder_forward.1} parent=1 // pred_check
      _
    $region171: #{scaf_encoder_forward.1} parent=1 // pred_check_branch
      %4169 = sbr.rel (0) target = $region173
    $region172: #{scaf_encoder_forward.1} parent=1 // pred_region
      %4170 = dma.done [#allocation7], 512
    $region173: #{scaf_encoder_forward.1} parent=1 // pred_fallthru
      _
    %4171 = vsyncpa [#allocation3], 1
    %4172 = vsyncpa [#allocation7], 1
    %4173 = vsyncpa [#allocation4], 1

</llo_original>
